<compile_context>
chip_gen: v7x
topology: tpu7x:2x2x1
jax: 0.10.0
libtpu: 0.0.40
codegen_flags: <defaults>
</compile_context>

<pallas_src>
import math
import jax
import jax.numpy as jnp
from jax.experimental import pallas as pl
from jax.experimental.pallas import tpu as pltpu


# ---------------------------------------------------------------------------
# Single fused Pallas kernel
# ---------------------------------------------------------------------------

def net_kernel(xc_ref, w1_ref, wmi_ref, bmi_ref, wa3_ref, ba3_ref,
               wq_ref, bq_ref, v_ref, wl_ref, bl_ref, out_ref):
    """Full Net forward.

    xc_ref : (T, Bp, 512)  hoisted input projection x*Wx + b for the three
                           first-layer LSTMs.  Columns: 4 gate groups of 128
                           lanes (i, f, g, o), each group = [price|short|long|pad].
    w1_ref : (128, 512)    fused block-diagonal first-layer recurrent weights
                           (rows: [h_price|h_short|h_long|pad]).
    wmi/bmi: (160, 384),(1,384)  MI-LSTM block weights for z = [h1(128) | h_mi(32)],
                           column groups [f_y|o_y|pad][i_y|i_p|i_n|pad][c_y|c_p|c_n|pad].
    wa3/ba3: (H,128),(1,128) cell-attention projection pre-tiled 3x (+pad).
    wq/bq/v: temporal attention;  wl/bl: final Linear(H,1).
    out_ref: (Bp, 1)
    """
    T, Bp = xc_ref.shape[0], xc_ref.shape[1]
    H = wa3_ref.shape[0]
    G = 128                     # lane-aligned gate-group width
    f32 = jnp.float32

    w1 = w1_ref[...]            # (128, 512)
    wmi = wmi_ref[...]          # (160, 384)
    bmi = bmi_ref[...]          # (1, 384)
    wa3 = wa3_ref[...]          # (H, 128)
    ba3 = ba3_ref[...]          # (1, 128)

    # ---- fused, fully unrolled recurrences (layer-1 LSTMs + MI-LSTM) ------
    h1 = jnp.zeros((Bp, G), f32)      # lanes [h_price|h_short|h_long|0]
    c1 = jnp.zeros((Bp, G), f32)
    h_mi = jnp.zeros((Bp, H), f32)
    c_mi = jnp.zeros((Bp, H), f32)
    hs_mi = []

    for t in range(T):
        # -- first layer: 3 independent LSTMs fused into one block matmul ---
        pre1 = xc_ref[t] + jnp.dot(h1, w1, preferred_element_type=f32)  # (Bp,512)
        i_all = jax.nn.sigmoid(pre1[:, 0:G])            # vreg-aligned slices
        f_all = jax.nn.sigmoid(pre1[:, G:2 * G])
        g_all = jnp.tanh(pre1[:, 2 * G:3 * G])
        o_all = jax.nn.sigmoid(pre1[:, 3 * G:4 * G])
        c1 = f_all * c1 + i_all * g_all                  # pad lanes stay 0
        h1 = o_all * jnp.tanh(c1)                        # = [y | p | n | 0]

        # -- MI-LSTM step t (consumes h1 immediately) ------------------------
        z = jnp.concatenate([h1, h_mi], axis=-1)         # (Bp, 160)
        pre2 = jnp.dot(z, wmi, preferred_element_type=f32) + bmi   # (Bp, 384)

        sig = jax.nn.sigmoid(pre2[:, 0:2 * G])           # [f_y|o_y|pad | i_y|i_p|i_n|pad]
        f_y = sig[:, 0:H]
        o_y = sig[:, H:2 * H]
        i_gate = sig[:, G:2 * G]                          # (Bp,128) [i_y|i_p|i_n|0]
        c_cand = jnp.tanh(pre2[:, 2 * G:3 * G])           # (Bp,128) [c_y|c_p|c_n|0]
        l_all = i_gate * c_cand                           # same-offset multiply

        # attention over candidate cell contributions, keyed by c_{t-1}
        u3 = jnp.tanh(jnp.dot(c_mi, wa3, preferred_element_type=f32) + ba3)  # [u|u|u|0]
        prod = l_all * u3                                 # same-offset multiply
        s_y = jnp.sum(prod[:, 0:H], axis=-1, keepdims=True)
        s_p = jnp.sum(prod[:, H:2 * H], axis=-1, keepdims=True)
        s_n = jnp.sum(prod[:, 2 * H:3 * H], axis=-1, keepdims=True)
        m = jnp.maximum(jnp.maximum(s_y, s_p), s_n)
        e_y = jnp.exp(s_y - m)
        e_p = jnp.exp(s_p - m)
        e_n = jnp.exp(s_n - m)
        denom = e_y + e_p + e_n
        l_t = (e_y * l_all[:, 0:H]
               + e_p * l_all[:, H:2 * H]
               + e_n * l_all[:, 2 * H:3 * H]) / denom     # exact normalization

        c_mi = f_y * c_mi + l_t
        h_mi = o_y * jnp.tanh(c_mi)
        hs_mi.append(h_mi)

    # ---- temporal attention + Linear(H,1) + ReLU ---------------------------
    h_all = jnp.concatenate(hs_mi, axis=0)                              # (T*Bp, H)
    proj = jnp.tanh(jnp.dot(h_all, wq_ref[...], preferred_element_type=f32)
                    + bq_ref[...])
    sc = jnp.dot(proj, v_ref[...], preferred_element_type=f32)          # (T*Bp, 1)

    # one (Bp, T) tile -> single vectorized softmax over T
    scores = jnp.concatenate([sc[t * Bp:(t + 1) * Bp, :] for t in range(T)],
                             axis=-1)                                    # (Bp, T)
    m = jnp.max(scores, axis=-1, keepdims=True)
    e = jnp.exp(scores - m)
    a = e / jnp.sum(e, axis=-1, keepdims=True)                           # (Bp, T)

    y_tilde = jnp.zeros((Bp, H), f32)
    for t in range(T):
        y_tilde = y_tilde + a[:, t:t + 1] * hs_mi[t]

    out = (jnp.dot(y_tilde, wl_ref[...], preferred_element_type=f32)
           + bl_ref[...])
    out_ref[...] = jnp.maximum(out, 0.0)                                 # ReLU


# ---------------------------------------------------------------------------
# pallas_call wrapper (everything is one VMEM-resident block; sizes are tiny)
# ---------------------------------------------------------------------------

def _block(shape):
    nd = len(shape)
    return pl.BlockSpec(shape, lambda i, _nd=nd: (0,) * _nd)


def net_forward(packed, stock_price, short_impact, long_impact):
    B, T = stock_price.shape
    Bp = max(8, ((B + 7) // 8) * 8)          # pad batch to full sublanes

    # stack the three input streams, time-major, pad the batch
    x = jnp.stack([stock_price, short_impact, long_impact], axis=-1)    # (B, T, 3)
    x = jnp.transpose(x.astype(jnp.float32), (1, 0, 2))                  # (T, B, 3)
    x = jnp.zeros((T, Bp, 3), jnp.float32).at[:, :B, :].set(x)

    # hoisted first-layer input projection: (T, Bp, 3) @ (3, 512) + (1, 512)
    xc = jnp.einsum("tbs,sc->tbc", x, packed["wx1"]) + packed["b1"]      # (T,Bp,512)

    inputs = (xc, packed["w1"], packed["wmi"], packed["bmi"],
              packed["wa3"], packed["ba3"],
              packed["wq"], packed["bq"], packed["v"],
              packed["wl"], packed["bl"])

    out = pl.pallas_call(
        net_kernel,
        out_shape=jax.ShapeDtypeStruct((Bp, 1), jnp.float32),
        grid=(1,),
        in_specs=[_block(a.shape) for a in inputs],
        out_specs=_block((Bp, 1)),
        compiler_params=pltpu.CompilerParams(dimension_semantics=("arbitrary",)),
    )(*inputs)
    return out[:B]


# ---------------------------------------------------------------------------
# Parameter init (logical per-gate layout, as in the reference module) and
# one-time packing into the 128-lane-aligned fused layouts the kernel consumes.
# ---------------------------------------------------------------------------

def init_params(key, hidden):
    scale = 1.0 / math.sqrt(hidden)
    keys = iter(jax.random.split(key, 40))

    def u(shape):
        return jax.random.uniform(next(keys), shape, jnp.float32, -scale, scale)

    def lstm_p():
        return dict(wx=u((4, 1, hidden)),       # gates i, f, g, o
                    wh=u((4, hidden, hidden)),
                    b=u((4, 1, hidden)))

    return dict(
        lstm_price=lstm_p(),
        lstm_short=lstm_p(),
        lstm_long=lstm_p(),
        milstm=dict(
            wy=u((4, hidden, hidden)), uy=u((4, hidden, hidden)), by=u((4, 1, hidden)),
            wp=u((2, hidden, hidden)), up=u((2, hidden, hidden)), bp=u((2, 1, hidden)),
            wn=u((2, hidden, hidden)), un=u((2, hidden, hidden)), bn=u((2, 1, hidden)),
            wa=u((hidden, hidden)), ba=u((1, hidden)),
        ),
        attn=dict(wq=u((hidden, hidden)), bq=u((1, hidden)), v=u((hidden, 1))),
        lin=dict(w=u((hidden, 1)), b=u((1, 1))),
    )


def pack_params(p, H):
    """Repack per-gate weights into 128-lane-aligned fused block layouts (once)."""
    G = 128
    f32 = jnp.float32
    streams = [p["lstm_price"], p["lstm_short"], p["lstm_long"]]

    # --- first layer: 4 gate groups of 128 lanes, each [price|short|long|pad] ---
    w1 = jnp.zeros((G, 4 * G), f32)      # rows: [h_price|h_short|h_long|pad]
    wx1 = jnp.zeros((3, 4 * G), f32)     # rows: input stream index
    b1 = jnp.zeros((1, 4 * G), f32)
    for g in range(4):                   # gate order i, f, g, o
        for s, st in enumerate(streams):
            c0 = g * G + s * H
            w1 = w1.at[s * H:(s + 1) * H, c0:c0 + H].set(st["wh"][g])
            wx1 = wx1.at[s, c0:c0 + H].set(st["wx"][g][0])
            b1 = b1.at[0, c0:c0 + H].set(st["b"][g][0])

    # --- MI-LSTM block weight: rows = [y(0:32)|p|n|pad(96:128)|h_prev(128:160)],
    #     column groups (128 lanes each): [f_y|o_y|pad][i_y|i_p|i_n|pad][c_y|c_p|c_n|pad]
    m = p["milstm"]                      # wy/uy gate order: i, f, o, c ; wp/wn: i, c
    wmi = jnp.zeros((G + H, 3 * G), f32)
    bmi = jnp.zeros((1, 3 * G), f32)

    def put(wmi_, bmi_, col, x_row, x_w, h_w, bias):
        wmi_ = wmi_.at[x_row * H:(x_row + 1) * H, col:col + H].set(x_w)
        wmi_ = wmi_.at[G:G + H, col:col + H].set(h_w)
        bmi_ = bmi_.at[0, col:col + H].set(bias[0])
        return wmi_, bmi_

    # group A: f_y, o_y
    wmi, bmi = put(wmi, bmi, 0,           0, m["wy"][1], m["uy"][1], m["by"][1])
    wmi, bmi = put(wmi, bmi, H,           0, m["wy"][2], m["uy"][2], m["by"][2])
    # group B: i_y, i_p, i_n
    wmi, bmi = put(wmi, bmi, G,           0, m["wy"][0], m["uy"][0], m["by"][0])
    wmi, bmi = put(wmi, bmi, G + H,       1, m["wp"][0], m["up"][0], m["bp"][0])
    wmi, bmi = put(wmi, bmi, G + 2 * H,   2, m["wn"][0], m["un"][0], m["bn"][0])
    # group C: c~_y, c~_p, c~_n
    wmi, bmi = put(wmi, bmi, 2 * G,         0, m["wy"][3], m["uy"][3], m["by"][3])
    wmi, bmi = put(wmi, bmi, 2 * G + H,     1, m["wp"][1], m["up"][1], m["bp"][1])
    wmi, bmi = put(wmi, bmi, 2 * G + 2 * H, 2, m["wn"][1], m["un"][1], m["bn"][1])

    # cell-attention projection, pre-tiled 3x so u lands lane-aligned with [l_y|l_p|l_n]
    pad_w = jnp.zeros((H, G - 3 * H), f32)
    pad_b = jnp.zeros((1, G - 3 * H), f32)
    wa3 = jnp.concatenate([m["wa"], m["wa"], m["wa"], pad_w], axis=1)   # (H, 128)
    ba3 = jnp.concatenate([m["ba"], m["ba"], m["ba"], pad_b], axis=1)   # (1, 128)

    return dict(w1=w1, wx1=wx1, b1=b1, wmi=wmi, bmi=bmi,
                wa3=wa3, ba3=ba3,
                wq=p["attn"]["wq"], bq=p["attn"]["bq"], v=p["attn"]["v"],
                wl=p["lin"]["w"], bl=p["lin"]["b"])


if __name__ == "__main__":
    B, T, H = 2, 8, 32  # batch, seq_size, hidden_size
    key = jax.random.PRNGKey(0)
    k_par, k_sp, k_si, k_li = jax.random.split(key, 4)

    params = init_params(k_par, H)
    packed = pack_params(params, H)

    stock_price = jax.random.normal(k_sp, (B, T), jnp.float32)
    short_impact = jax.random.normal(k_si, (B, T), jnp.float32)
    long_impact = jax.random.normal(k_li, (B, T), jnp.float32)

    out = net_forward(packed, stock_price, short_impact, long_impact)
    out = jax.block_until_ready(out)
    assert out.shape == (B, 1) and out.dtype == jnp.float32
    assert bool(jnp.all(jnp.isfinite(out))) and bool(jnp.all(out >= 0.0))
    print("KERNEL_OK")
</pallas_src>

<mosaic_0001>
module attributes {stable_mosaic.version = 11 : i64} {
  func.func @net_kernel(%arg0: i32, %arg1: memref<8x8x512xf32, #tpu.memory_space<vmem>>, %arg2: memref<128x512xf32, #tpu.memory_space<vmem>>, %arg3: memref<160x384xf32, #tpu.memory_space<vmem>>, %arg4: memref<1x384xf32, #tpu.memory_space<vmem>>, %arg5: memref<32x128xf32, #tpu.memory_space<vmem>>, %arg6: memref<1x128xf32, #tpu.memory_space<vmem>>, %arg7: memref<32x32xf32, #tpu.memory_space<vmem>>, %arg8: memref<1x32xf32, #tpu.memory_space<vmem>>, %arg9: memref<32x1xf32, #tpu.memory_space<vmem>>, %arg10: memref<32x1xf32, #tpu.memory_space<vmem>>, %arg11: memref<1x1xf32, #tpu.memory_space<vmem>>, %arg12: memref<8x1xf32, #tpu.memory_space<vmem>>) attributes {dimension_semantics = [#tpu.dimension_semantics<arbitrary>], iteration_bounds = array<i64: 1>, scalar_prefetch = 0 : i64, scratch_operands = 0 : i64, tpu.core_type = #tpu.core_type<tc>, window_params = [{pipeline_mode = #tpu.pipeline_mode<synchronous>, transform_indices = @transform_0, window_bounds = array<i64: 8, 8, 512>}, {pipeline_mode = #tpu.pipeline_mode<synchronous>, transform_indices = @transform_1, window_bounds = array<i64: 128, 512>}, {pipeline_mode = #tpu.pipeline_mode<synchronous>, transform_indices = @transform_2, window_bounds = array<i64: 160, 384>}, {pipeline_mode = #tpu.pipeline_mode<synchronous>, transform_indices = @transform_3, window_bounds = array<i64: 1, 384>}, {pipeline_mode = #tpu.pipeline_mode<synchronous>, transform_indices = @transform_4, window_bounds = array<i64: 32, 128>}, {pipeline_mode = #tpu.pipeline_mode<synchronous>, transform_indices = @transform_5, window_bounds = array<i64: 1, 128>}, {pipeline_mode = #tpu.pipeline_mode<synchronous>, transform_indices = @transform_6, window_bounds = array<i64: 32, 32>}, {pipeline_mode = #tpu.pipeline_mode<synchronous>, transform_indices = @transform_7, window_bounds = array<i64: 1, 32>}, {pipeline_mode = #tpu.pipeline_mode<synchronous>, transform_indices = @transform_8, window_bounds = array<i64: 32, 1>}, {pipeline_mode = #tpu.pipeline_mode<synchronous>, transform_indices = @transform_9, window_bounds = array<i64: 32, 1>}, {pipeline_mode = #tpu.pipeline_mode<synchronous>, transform_indices = @transform_10, window_bounds = array<i64: 1, 1>}, {pipeline_mode = #tpu.pipeline_mode<synchronous>, transform_indices = @transform_11, window_bounds = array<i64: 8, 1>}]} {
    %c0 = arith.constant 0 : index
    %c0_0 = arith.constant 0 : index
    %0 = vector.load %arg2[%c0, %c0_0] : memref<128x512xf32, #tpu.memory_space<vmem>>, vector<128x512xf32>
    %c0_1 = arith.constant 0 : index
    %c0_2 = arith.constant 0 : index
    %1 = vector.load %arg3[%c0_1, %c0_2] : memref<160x384xf32, #tpu.memory_space<vmem>>, vector<160x384xf32>
    %c0_3 = arith.constant 0 : index
    %c0_4 = arith.constant 0 : index
    %2 = vector.load %arg4[%c0_3, %c0_4] : memref<1x384xf32, #tpu.memory_space<vmem>>, vector<1x384xf32>
    %c0_5 = arith.constant 0 : index
    %c0_6 = arith.constant 0 : index
    %3 = vector.load %arg5[%c0_5, %c0_6] : memref<32x128xf32, #tpu.memory_space<vmem>>, vector<32x128xf32>
    %c0_7 = arith.constant 0 : index
    %c0_8 = arith.constant 0 : index
    %4 = vector.load %arg6[%c0_7, %c0_8] : memref<1x128xf32, #tpu.memory_space<vmem>>, vector<1x128xf32>
    %cst = arith.constant 0.000000e+00 : f32
    %5 = vector.broadcast %cst : f32 to vector<8x128xf32>
    %cst_9 = arith.constant 0.000000e+00 : f32
    %6 = vector.broadcast %cst_9 : f32 to vector<8x128xf32>
    %cst_10 = arith.constant 0.000000e+00 : f32
    %7 = vector.broadcast %cst_10 : f32 to vector<8x32xf32>
    %cst_11 = arith.constant 0.000000e+00 : f32
    %8 = vector.broadcast %cst_11 : f32 to vector<8x32xf32>
    %c0_12 = arith.constant 0 : index
    %c0_13 = arith.constant 0 : index
    %c0_14 = arith.constant 0 : index
    %9 = vector.load %arg1[%c0_12, %c0_13, %c0_14] : memref<8x8x512xf32, #tpu.memory_space<vmem>>, vector<1x8x512xf32>
    %10 = vector.shape_cast %9 : vector<1x8x512xf32> to vector<8x512xf32>
    %cst_15 = arith.constant dense<0.000000e+00> : vector<8x512xf32>
    %11 = tpu.matmul %5, %0, %cst_15 {dimension_numbers = #tpu.dot_dimension_numbers<[1], [0], [0], [1], [0, 0, 1, 1], [], []>} : vector<8x128xf32>, vector<128x512xf32>, vector<8x512xf32> -> vector<8x512xf32>
    %12 = arith.addf %10, %11 : vector<8x512xf32>
    %13 = vector.extract_strided_slice %12 {offsets = [0, 0], sizes = [8, 128], strides = [1, 1]} : vector<8x512xf32> to vector<8x128xf32>
    %14 = arith.negf %13 : vector<8x128xf32>
    %15 = math.exp %14 : vector<8x128xf32>
    %cst_16 = arith.constant 1.000000e+00 : f32
    %16 = vector.broadcast %cst_16 : f32 to vector<8x128xf32>
    %17 = arith.addf %16, %15 : vector<8x128xf32>
    %18 = arith.divf %16, %17 : vector<8x128xf32>
    %19 = vector.extract_strided_slice %12 {offsets = [0, 128], sizes = [8, 128], strides = [1, 1]} : vector<8x512xf32> to vector<8x128xf32>
    %20 = arith.negf %19 : vector<8x128xf32>
    %21 = math.exp %20 : vector<8x128xf32>
    %cst_17 = arith.constant 1.000000e+00 : f32
    %22 = vector.broadcast %cst_17 : f32 to vector<8x128xf32>
    %23 = arith.addf %22, %21 : vector<8x128xf32>
    %24 = arith.divf %22, %23 : vector<8x128xf32>
    %25 = vector.extract_strided_slice %12 {offsets = [0, 256], sizes = [8, 128], strides = [1, 1]} : vector<8x512xf32> to vector<8x128xf32>
    %26 = math.tanh %25 : vector<8x128xf32>
    %27 = vector.extract_strided_slice %12 {offsets = [0, 384], sizes = [8, 128], strides = [1, 1]} : vector<8x512xf32> to vector<8x128xf32>
    %28 = arith.negf %27 : vector<8x128xf32>
    %29 = math.exp %28 : vector<8x128xf32>
    %cst_18 = arith.constant 1.000000e+00 : f32
    %30 = vector.broadcast %cst_18 : f32 to vector<8x128xf32>
    %31 = arith.addf %30, %29 : vector<8x128xf32>
    %32 = arith.divf %30, %31 : vector<8x128xf32>
    %33 = arith.mulf %24, %6 : vector<8x128xf32>
    %34 = arith.mulf %18, %26 : vector<8x128xf32>
    %35 = arith.addf %33, %34 : vector<8x128xf32>
    %36 = math.tanh %35 : vector<8x128xf32>
    %37 = arith.mulf %32, %36 : vector<8x128xf32>
    %38 = tpu.concatenate %37, %7 in 1 : vector<8x128xf32>, vector<8x32xf32> -> vector<8x160xf32>
    %cst_19 = arith.constant dense<0.000000e+00> : vector<8x384xf32>
    %39 = tpu.matmul %38, %1, %cst_19 {dimension_numbers = #tpu.dot_dimension_numbers<[1], [0], [0], [1], [0, 0, 1, 1], [], []>} : vector<8x160xf32>, vector<160x384xf32>, vector<8x384xf32> -> vector<8x384xf32>
    %40 = vector.broadcast %2 : vector<1x384xf32> to vector<8x384xf32>
    %41 = arith.addf %39, %40 : vector<8x384xf32>
    %42 = vector.extract_strided_slice %41 {offsets = [0, 0], sizes = [8, 256], strides = [1, 1]} : vector<8x384xf32> to vector<8x256xf32>
    %43 = arith.negf %42 : vector<8x256xf32>
    %44 = math.exp %43 : vector<8x256xf32>
    %cst_20 = arith.constant 1.000000e+00 : f32
    %45 = vector.broadcast %cst_20 : f32 to vector<8x256xf32>
    %46 = arith.addf %45, %44 : vector<8x256xf32>
    %47 = arith.divf %45, %46 : vector<8x256xf32>
    %48 = vector.extract_strided_slice %47 {offsets = [0, 0], sizes = [8, 32], strides = [1, 1]} : vector<8x256xf32> to vector<8x32xf32>
    %49 = vector.extract_strided_slice %47 {offsets = [0, 32], sizes = [8, 32], strides = [1, 1]} : vector<8x256xf32> to vector<8x32xf32>
    %50 = vector.extract_strided_slice %47 {offsets = [0, 128], sizes = [8, 128], strides = [1, 1]} : vector<8x256xf32> to vector<8x128xf32>
    %51 = vector.extract_strided_slice %41 {offsets = [0, 256], sizes = [8, 128], strides = [1, 1]} : vector<8x384xf32> to vector<8x128xf32>
    %52 = math.tanh %51 : vector<8x128xf32>
    %53 = arith.mulf %50, %52 : vector<8x128xf32>
    %cst_21 = arith.constant dense<0.000000e+00> : vector<8x128xf32>
    %54 = tpu.matmul %8, %3, %cst_21 {dimension_numbers = #tpu.dot_dimension_numbers<[1], [0], [0], [1], [0, 0, 1, 1], [], []>} : vector<8x32xf32>, vector<32x128xf32>, vector<8x128xf32> -> vector<8x128xf32>
    %55 = vector.broadcast %4 : vector<1x128xf32> to vector<8x128xf32>
    %56 = arith.addf %54, %55 : vector<8x128xf32>
    %57 = math.tanh %56 : vector<8x128xf32>
    %58 = arith.mulf %53, %57 : vector<8x128xf32>
    %59 = vector.extract_strided_slice %58 {offsets = [0, 0], sizes = [8, 32], strides = [1, 1]} : vector<8x128xf32> to vector<8x32xf32>
    %cst_22 = arith.constant dense<0.000000e+00> : vector<8xf32>
    %60 = vector.multi_reduction <add>, %59, %cst_22 [1] : vector<8x32xf32> to vector<8xf32>
    %61 = vector.shape_cast %60 : vector<8xf32> to vector<8x1xf32>
    %62 = vector.extract_strided_slice %58 {offsets = [0, 32], sizes = [8, 32], strides = [1, 1]} : vector<8x128xf32> to vector<8x32xf32>
    %cst_23 = arith.constant dense<0.000000e+00> : vector<8xf32>
    %63 = vector.multi_reduction <add>, %62, %cst_23 [1] : vector<8x32xf32> to vector<8xf32>
    %64 = vector.shape_cast %63 : vector<8xf32> to vector<8x1xf32>
    %65 = vector.extract_strided_slice %58 {offsets = [0, 64], sizes = [8, 32], strides = [1, 1]} : vector<8x128xf32> to vector<8x32xf32>
    %cst_24 = arith.constant dense<0.000000e+00> : vector<8xf32>
    %66 = vector.multi_reduction <add>, %65, %cst_24 [1] : vector<8x32xf32> to vector<8xf32>
    %67 = vector.shape_cast %66 : vector<8xf32> to vector<8x1xf32>
    %68 = arith.maximumf %61, %64 : vector<8x1xf32>
    %69 = arith.maximumf %68, %67 : vector<8x1xf32>
    %70 = arith.subf %61, %69 : vector<8x1xf32>
    %71 = math.exp %70 : vector<8x1xf32>
    %72 = arith.subf %64, %69 : vector<8x1xf32>
    %73 = math.exp %72 : vector<8x1xf32>
    %74 = arith.subf %67, %69 : vector<8x1xf32>
    %75 = math.exp %74 : vector<8x1xf32>
    %76 = arith.addf %71, %73 : vector<8x1xf32>
    %77 = arith.addf %76, %75 : vector<8x1xf32>
    %78 = vector.extract_strided_slice %53 {offsets = [0, 0], sizes = [8, 32], strides = [1, 1]} : vector<8x128xf32> to vector<8x32xf32>
    %79 = vector.broadcast %71 : vector<8x1xf32> to vector<8x32xf32>
    %80 = arith.mulf %79, %78 : vector<8x32xf32>
    %81 = vector.extract_strided_slice %53 {offsets = [0, 32], sizes = [8, 32], strides = [1, 1]} : vector<8x128xf32> to vector<8x32xf32>
    %82 = vector.broadcast %73 : vector<8x1xf32> to vector<8x32xf32>
    %83 = arith.mulf %82, %81 : vector<8x32xf32>
    %84 = arith.addf %80, %83 : vector<8x32xf32>
    %85 = vector.extract_strided_slice %53 {offsets = [0, 64], sizes = [8, 32], strides = [1, 1]} : vector<8x128xf32> to vector<8x32xf32>
    %86 = vector.broadcast %75 : vector<8x1xf32> to vector<8x32xf32>
    %87 = arith.mulf %86, %85 : vector<8x32xf32>
    %88 = arith.addf %84, %87 : vector<8x32xf32>
    %89 = vector.broadcast %77 : vector<8x1xf32> to vector<8x32xf32>
    %90 = arith.divf %88, %89 : vector<8x32xf32>
    %91 = arith.mulf %48, %8 : vector<8x32xf32>
    %92 = arith.addf %91, %90 : vector<8x32xf32>
    %93 = math.tanh %92 : vector<8x32xf32>
    %94 = arith.mulf %49, %93 : vector<8x32xf32>
    %c1 = arith.constant 1 : index
    %c0_25 = arith.constant 0 : index
    %c0_26 = arith.constant 0 : index
    %95 = vector.load %arg1[%c1, %c0_25, %c0_26] : memref<8x8x512xf32, #tpu.memory_space<vmem>>, vector<1x8x512xf32>
    %96 = vector.shape_cast %95 : vector<1x8x512xf32> to vector<8x512xf32>
    %cst_27 = arith.constant dense<0.000000e+00> : vector<8x512xf32>
    %97 = tpu.matmul %37, %0, %cst_27 {dimension_numbers = #tpu.dot_dimension_numbers<[1], [0], [0], [1], [0, 0, 1, 1], [], []>} : vector<8x128xf32>, vector<128x512xf32>, vector<8x512xf32> -> vector<8x512xf32>
    %98 = arith.addf %96, %97 : vector<8x512xf32>
    %99 = vector.extract_strided_slice %98 {offsets = [0, 0], sizes = [8, 128], strides = [1, 1]} : vector<8x512xf32> to vector<8x128xf32>
    %100 = arith.negf %99 : vector<8x128xf32>
    %101 = math.exp %100 : vector<8x128xf32>
    %cst_28 = arith.constant 1.000000e+00 : f32
    %102 = vector.broadcast %cst_28 : f32 to vector<8x128xf32>
    %103 = arith.addf %102, %101 : vector<8x128xf32>
    %104 = arith.divf %102, %103 : vector<8x128xf32>
    %105 = vector.extract_strided_slice %98 {offsets = [0, 128], sizes = [8, 128], strides = [1, 1]} : vector<8x512xf32> to vector<8x128xf32>
    %106 = arith.negf %105 : vector<8x128xf32>
    %107 = math.exp %106 : vector<8x128xf32>
    %cst_29 = arith.constant 1.000000e+00 : f32
    %108 = vector.broadcast %cst_29 : f32 to vector<8x128xf32>
    %109 = arith.addf %108, %107 : vector<8x128xf32>
    %110 = arith.divf %108, %109 : vector<8x128xf32>
    %111 = vector.extract_strided_slice %98 {offsets = [0, 256], sizes = [8, 128], strides = [1, 1]} : vector<8x512xf32> to vector<8x128xf32>
    %112 = math.tanh %111 : vector<8x128xf32>
    %113 = vector.extract_strided_slice %98 {offsets = [0, 384], sizes = [8, 128], strides = [1, 1]} : vector<8x512xf32> to vector<8x128xf32>
    %114 = arith.negf %113 : vector<8x128xf32>
    %115 = math.exp %114 : vector<8x128xf32>
    %cst_30 = arith.constant 1.000000e+00 : f32
    %116 = vector.broadcast %cst_30 : f32 to vector<8x128xf32>
    %117 = arith.addf %116, %115 : vector<8x128xf32>
    %118 = arith.divf %116, %117 : vector<8x128xf32>
    %119 = arith.mulf %110, %35 : vector<8x128xf32>
    %120 = arith.mulf %104, %112 : vector<8x128xf32>
    %121 = arith.addf %119, %120 : vector<8x128xf32>
    %122 = math.tanh %121 : vector<8x128xf32>
    %123 = arith.mulf %118, %122 : vector<8x128xf32>
    %124 = tpu.concatenate %123, %94 in 1 : vector<8x128xf32>, vector<8x32xf32> -> vector<8x160xf32>
    %cst_31 = arith.constant dense<0.000000e+00> : vector<8x384xf32>
    %125 = tpu.matmul %124, %1, %cst_31 {dimension_numbers = #tpu.dot_dimension_numbers<[1], [0], [0], [1], [0, 0, 1, 1], [], []>} : vector<8x160xf32>, vector<160x384xf32>, vector<8x384xf32> -> vector<8x384xf32>
    %126 = vector.broadcast %2 : vector<1x384xf32> to vector<8x384xf32>
    %127 = arith.addf %125, %126 : vector<8x384xf32>
    %128 = vector.extract_strided_slice %127 {offsets = [0, 0], sizes = [8, 256], strides = [1, 1]} : vector<8x384xf32> to vector<8x256xf32>
    %129 = arith.negf %128 : vector<8x256xf32>
    %130 = math.exp %129 : vector<8x256xf32>
    %cst_32 = arith.constant 1.000000e+00 : f32
    %131 = vector.broadcast %cst_32 : f32 to vector<8x256xf32>
    %132 = arith.addf %131, %130 : vector<8x256xf32>
    %133 = arith.divf %131, %132 : vector<8x256xf32>
    %134 = vector.extract_strided_slice %133 {offsets = [0, 0], sizes = [8, 32], strides = [1, 1]} : vector<8x256xf32> to vector<8x32xf32>
    %135 = vector.extract_strided_slice %133 {offsets = [0, 32], sizes = [8, 32], strides = [1, 1]} : vector<8x256xf32> to vector<8x32xf32>
    %136 = vector.extract_strided_slice %133 {offsets = [0, 128], sizes = [8, 128], strides = [1, 1]} : vector<8x256xf32> to vector<8x128xf32>
    %137 = vector.extract_strided_slice %127 {offsets = [0, 256], sizes = [8, 128], strides = [1, 1]} : vector<8x384xf32> to vector<8x128xf32>
    %138 = math.tanh %137 : vector<8x128xf32>
    %139 = arith.mulf %136, %138 : vector<8x128xf32>
    %cst_33 = arith.constant dense<0.000000e+00> : vector<8x128xf32>
    %140 = tpu.matmul %92, %3, %cst_33 {dimension_numbers = #tpu.dot_dimension_numbers<[1], [0], [0], [1], [0, 0, 1, 1], [], []>} : vector<8x32xf32>, vector<32x128xf32>, vector<8x128xf32> -> vector<8x128xf32>
    %141 = vector.broadcast %4 : vector<1x128xf32> to vector<8x128xf32>
    %142 = arith.addf %140, %141 : vector<8x128xf32>
    %143 = math.tanh %142 : vector<8x128xf32>
    %144 = arith.mulf %139, %143 : vector<8x128xf32>
    %145 = vector.extract_strided_slice %144 {offsets = [0, 0], sizes = [8, 32], strides = [1, 1]} : vector<8x128xf32> to vector<8x32xf32>
    %cst_34 = arith.constant dense<0.000000e+00> : vector<8xf32>
    %146 = vector.multi_reduction <add>, %145, %cst_34 [1] : vector<8x32xf32> to vector<8xf32>
    %147 = vector.shape_cast %146 : vector<8xf32> to vector<8x1xf32>
    %148 = vector.extract_strided_slice %144 {offsets = [0, 32], sizes = [8, 32], strides = [1, 1]} : vector<8x128xf32> to vector<8x32xf32>
    %cst_35 = arith.constant dense<0.000000e+00> : vector<8xf32>
    %149 = vector.multi_reduction <add>, %148, %cst_35 [1] : vector<8x32xf32> to vector<8xf32>
    %150 = vector.shape_cast %149 : vector<8xf32> to vector<8x1xf32>
    %151 = vector.extract_strided_slice %144 {offsets = [0, 64], sizes = [8, 32], strides = [1, 1]} : vector<8x128xf32> to vector<8x32xf32>
    %cst_36 = arith.constant dense<0.000000e+00> : vector<8xf32>
    %152 = vector.multi_reduction <add>, %151, %cst_36 [1] : vector<8x32xf32> to vector<8xf32>
    %153 = vector.shape_cast %152 : vector<8xf32> to vector<8x1xf32>
    %154 = arith.maximumf %147, %150 : vector<8x1xf32>
    %155 = arith.maximumf %154, %153 : vector<8x1xf32>
    %156 = arith.subf %147, %155 : vector<8x1xf32>
    %157 = math.exp %156 : vector<8x1xf32>
    %158 = arith.subf %150, %155 : vector<8x1xf32>
    %159 = math.exp %158 : vector<8x1xf32>
    %160 = arith.subf %153, %155 : vector<8x1xf32>
    %161 = math.exp %160 : vector<8x1xf32>
    %162 = arith.addf %157, %159 : vector<8x1xf32>
    %163 = arith.addf %162, %161 : vector<8x1xf32>
    %164 = vector.extract_strided_slice %139 {offsets = [0, 0], sizes = [8, 32], strides = [1, 1]} : vector<8x128xf32> to vector<8x32xf32>
    %165 = vector.broadcast %157 : vector<8x1xf32> to vector<8x32xf32>
    %166 = arith.mulf %165, %164 : vector<8x32xf32>
    %167 = vector.extract_strided_slice %139 {offsets = [0, 32], sizes = [8, 32], strides = [1, 1]} : vector<8x128xf32> to vector<8x32xf32>
    %168 = vector.broadcast %159 : vector<8x1xf32> to vector<8x32xf32>
    %169 = arith.mulf %168, %167 : vector<8x32xf32>
    %170 = arith.addf %166, %169 : vector<8x32xf32>
    %171 = vector.extract_strided_slice %139 {offsets = [0, 64], sizes = [8, 32], strides = [1, 1]} : vector<8x128xf32> to vector<8x32xf32>
    %172 = vector.broadcast %161 : vector<8x1xf32> to vector<8x32xf32>
    %173 = arith.mulf %172, %171 : vector<8x32xf32>
    %174 = arith.addf %170, %173 : vector<8x32xf32>
    %175 = vector.broadcast %163 : vector<8x1xf32> to vector<8x32xf32>
    %176 = arith.divf %174, %175 : vector<8x32xf32>
    %177 = arith.mulf %134, %92 : vector<8x32xf32>
    %178 = arith.addf %177, %176 : vector<8x32xf32>
    %179 = math.tanh %178 : vector<8x32xf32>
    %180 = arith.mulf %135, %179 : vector<8x32xf32>
    %c2 = arith.constant 2 : index
    %c0_37 = arith.constant 0 : index
    %c0_38 = arith.constant 0 : index
    %181 = vector.load %arg1[%c2, %c0_37, %c0_38] : memref<8x8x512xf32, #tpu.memory_space<vmem>>, vector<1x8x512xf32>
    %182 = vector.shape_cast %181 : vector<1x8x512xf32> to vector<8x512xf32>
    %cst_39 = arith.constant dense<0.000000e+00> : vector<8x512xf32>
    %183 = tpu.matmul %123, %0, %cst_39 {dimension_numbers = #tpu.dot_dimension_numbers<[1], [0], [0], [1], [0, 0, 1, 1], [], []>} : vector<8x128xf32>, vector<128x512xf32>, vector<8x512xf32> -> vector<8x512xf32>
    %184 = arith.addf %182, %183 : vector<8x512xf32>
    %185 = vector.extract_strided_slice %184 {offsets = [0, 0], sizes = [8, 128], strides = [1, 1]} : vector<8x512xf32> to vector<8x128xf32>
    %186 = arith.negf %185 : vector<8x128xf32>
    %187 = math.exp %186 : vector<8x128xf32>
    %cst_40 = arith.constant 1.000000e+00 : f32
    %188 = vector.broadcast %cst_40 : f32 to vector<8x128xf32>
    %189 = arith.addf %188, %187 : vector<8x128xf32>
    %190 = arith.divf %188, %189 : vector<8x128xf32>
    %191 = vector.extract_strided_slice %184 {offsets = [0, 128], sizes = [8, 128], strides = [1, 1]} : vector<8x512xf32> to vector<8x128xf32>
    %192 = arith.negf %191 : vector<8x128xf32>
    %193 = math.exp %192 : vector<8x128xf32>
    %cst_41 = arith.constant 1.000000e+00 : f32
    %194 = vector.broadcast %cst_41 : f32 to vector<8x128xf32>
    %195 = arith.addf %194, %193 : vector<8x128xf32>
    %196 = arith.divf %194, %195 : vector<8x128xf32>
    %197 = vector.extract_strided_slice %184 {offsets = [0, 256], sizes = [8, 128], strides = [1, 1]} : vector<8x512xf32> to vector<8x128xf32>
    %198 = math.tanh %197 : vector<8x128xf32>
    %199 = vector.extract_strided_slice %184 {offsets = [0, 384], sizes = [8, 128], strides = [1, 1]} : vector<8x512xf32> to vector<8x128xf32>
    %200 = arith.negf %199 : vector<8x128xf32>
    %201 = math.exp %200 : vector<8x128xf32>
    %cst_42 = arith.constant 1.000000e+00 : f32
    %202 = vector.broadcast %cst_42 : f32 to vector<8x128xf32>
    %203 = arith.addf %202, %201 : vector<8x128xf32>
    %204 = arith.divf %202, %203 : vector<8x128xf32>
    %205 = arith.mulf %196, %121 : vector<8x128xf32>
    %206 = arith.mulf %190, %198 : vector<8x128xf32>
    %207 = arith.addf %205, %206 : vector<8x128xf32>
    %208 = math.tanh %207 : vector<8x128xf32>
    %209 = arith.mulf %204, %208 : vector<8x128xf32>
    %210 = tpu.concatenate %209, %180 in 1 : vector<8x128xf32>, vector<8x32xf32> -> vector<8x160xf32>
    %cst_43 = arith.constant dense<0.000000e+00> : vector<8x384xf32>
    %211 = tpu.matmul %210, %1, %cst_43 {dimension_numbers = #tpu.dot_dimension_numbers<[1], [0], [0], [1], [0, 0, 1, 1], [], []>} : vector<8x160xf32>, vector<160x384xf32>, vector<8x384xf32> -> vector<8x384xf32>
    %212 = vector.broadcast %2 : vector<1x384xf32> to vector<8x384xf32>
    %213 = arith.addf %211, %212 : vector<8x384xf32>
    %214 = vector.extract_strided_slice %213 {offsets = [0, 0], sizes = [8, 256], strides = [1, 1]} : vector<8x384xf32> to vector<8x256xf32>
    %215 = arith.negf %214 : vector<8x256xf32>
    %216 = math.exp %215 : vector<8x256xf32>
    %cst_44 = arith.constant 1.000000e+00 : f32
    %217 = vector.broadcast %cst_44 : f32 to vector<8x256xf32>
    %218 = arith.addf %217, %216 : vector<8x256xf32>
    %219 = arith.divf %217, %218 : vector<8x256xf32>
    %220 = vector.extract_strided_slice %219 {offsets = [0, 0], sizes = [8, 32], strides = [1, 1]} : vector<8x256xf32> to vector<8x32xf32>
    %221 = vector.extract_strided_slice %219 {offsets = [0, 32], sizes = [8, 32], strides = [1, 1]} : vector<8x256xf32> to vector<8x32xf32>
    %222 = vector.extract_strided_slice %219 {offsets = [0, 128], sizes = [8, 128], strides = [1, 1]} : vector<8x256xf32> to vector<8x128xf32>
    %223 = vector.extract_strided_slice %213 {offsets = [0, 256], sizes = [8, 128], strides = [1, 1]} : vector<8x384xf32> to vector<8x128xf32>
    %224 = math.tanh %223 : vector<8x128xf32>
    %225 = arith.mulf %222, %224 : vector<8x128xf32>
    %cst_45 = arith.constant dense<0.000000e+00> : vector<8x128xf32>
    %226 = tpu.matmul %178, %3, %cst_45 {dimension_numbers = #tpu.dot_dimension_numbers<[1], [0], [0], [1], [0, 0, 1, 1], [], []>} : vector<8x32xf32>, vector<32x128xf32>, vector<8x128xf32> -> vector<8x128xf32>
    %227 = vector.broadcast %4 : vector<1x128xf32> to vector<8x128xf32>
    %228 = arith.addf %226, %227 : vector<8x128xf32>
    %229 = math.tanh %228 : vector<8x128xf32>
    %230 = arith.mulf %225, %229 : vector<8x128xf32>
    %231 = vector.extract_strided_slice %230 {offsets = [0, 0], sizes = [8, 32], strides = [1, 1]} : vector<8x128xf32> to vector<8x32xf32>
    %cst_46 = arith.constant dense<0.000000e+00> : vector<8xf32>
    %232 = vector.multi_reduction <add>, %231, %cst_46 [1] : vector<8x32xf32> to vector<8xf32>
    %233 = vector.shape_cast %232 : vector<8xf32> to vector<8x1xf32>
    %234 = vector.extract_strided_slice %230 {offsets = [0, 32], sizes = [8, 32], strides = [1, 1]} : vector<8x128xf32> to vector<8x32xf32>
    %cst_47 = arith.constant dense<0.000000e+00> : vector<8xf32>
    %235 = vector.multi_reduction <add>, %234, %cst_47 [1] : vector<8x32xf32> to vector<8xf32>
    %236 = vector.shape_cast %235 : vector<8xf32> to vector<8x1xf32>
    %237 = vector.extract_strided_slice %230 {offsets = [0, 64], sizes = [8, 32], strides = [1, 1]} : vector<8x128xf32> to vector<8x32xf32>
    %cst_48 = arith.constant dense<0.000000e+00> : vector<8xf32>
    %238 = vector.multi_reduction <add>, %237, %cst_48 [1] : vector<8x32xf32> to vector<8xf32>
    %239 = vector.shape_cast %238 : vector<8xf32> to vector<8x1xf32>
    %240 = arith.maximumf %233, %236 : vector<8x1xf32>
    %241 = arith.maximumf %240, %239 : vector<8x1xf32>
    %242 = arith.subf %233, %241 : vector<8x1xf32>
    %243 = math.exp %242 : vector<8x1xf32>
    %244 = arith.subf %236, %241 : vector<8x1xf32>
    %245 = math.exp %244 : vector<8x1xf32>
    %246 = arith.subf %239, %241 : vector<8x1xf32>
    %247 = math.exp %246 : vector<8x1xf32>
    %248 = arith.addf %243, %245 : vector<8x1xf32>
    %249 = arith.addf %248, %247 : vector<8x1xf32>
    %250 = vector.extract_strided_slice %225 {offsets = [0, 0], sizes = [8, 32], strides = [1, 1]} : vector<8x128xf32> to vector<8x32xf32>
    %251 = vector.broadcast %243 : vector<8x1xf32> to vector<8x32xf32>
    %252 = arith.mulf %251, %250 : vector<8x32xf32>
    %253 = vector.extract_strided_slice %225 {offsets = [0, 32], sizes = [8, 32], strides = [1, 1]} : vector<8x128xf32> to vector<8x32xf32>
    %254 = vector.broadcast %245 : vector<8x1xf32> to vector<8x32xf32>
    %255 = arith.mulf %254, %253 : vector<8x32xf32>
    %256 = arith.addf %252, %255 : vector<8x32xf32>
    %257 = vector.extract_strided_slice %225 {offsets = [0, 64], sizes = [8, 32], strides = [1, 1]} : vector<8x128xf32> to vector<8x32xf32>
    %258 = vector.broadcast %247 : vector<8x1xf32> to vector<8x32xf32>
    %259 = arith.mulf %258, %257 : vector<8x32xf32>
    %260 = arith.addf %256, %259 : vector<8x32xf32>
    %261 = vector.broadcast %249 : vector<8x1xf32> to vector<8x32xf32>
    %262 = arith.divf %260, %261 : vector<8x32xf32>
    %263 = arith.mulf %220, %178 : vector<8x32xf32>
    %264 = arith.addf %263, %262 : vector<8x32xf32>
    %265 = math.tanh %264 : vector<8x32xf32>
    %266 = arith.mulf %221, %265 : vector<8x32xf32>
    %c3 = arith.constant 3 : index
    %c0_49 = arith.constant 0 : index
    %c0_50 = arith.constant 0 : index
    %267 = vector.load %arg1[%c3, %c0_49, %c0_50] : memref<8x8x512xf32, #tpu.memory_space<vmem>>, vector<1x8x512xf32>
    %268 = vector.shape_cast %267 : vector<1x8x512xf32> to vector<8x512xf32>
    %cst_51 = arith.constant dense<0.000000e+00> : vector<8x512xf32>
    %269 = tpu.matmul %209, %0, %cst_51 {dimension_numbers = #tpu.dot_dimension_numbers<[1], [0], [0], [1], [0, 0, 1, 1], [], []>} : vector<8x128xf32>, vector<128x512xf32>, vector<8x512xf32> -> vector<8x512xf32>
    %270 = arith.addf %268, %269 : vector<8x512xf32>
    %271 = vector.extract_strided_slice %270 {offsets = [0, 0], sizes = [8, 128], strides = [1, 1]} : vector<8x512xf32> to vector<8x128xf32>
    %272 = arith.negf %271 : vector<8x128xf32>
    %273 = math.exp %272 : vector<8x128xf32>
    %cst_52 = arith.constant 1.000000e+00 : f32
    %274 = vector.broadcast %cst_52 : f32 to vector<8x128xf32>
    %275 = arith.addf %274, %273 : vector<8x128xf32>
    %276 = arith.divf %274, %275 : vector<8x128xf32>
    %277 = vector.extract_strided_slice %270 {offsets = [0, 128], sizes = [8, 128], strides = [1, 1]} : vector<8x512xf32> to vector<8x128xf32>
    %278 = arith.negf %277 : vector<8x128xf32>
    %279 = math.exp %278 : vector<8x128xf32>
    %cst_53 = arith.constant 1.000000e+00 : f32
    %280 = vector.broadcast %cst_53 : f32 to vector<8x128xf32>
    %281 = arith.addf %280, %279 : vector<8x128xf32>
    %282 = arith.divf %280, %281 : vector<8x128xf32>
    %283 = vector.extract_strided_slice %270 {offsets = [0, 256], sizes = [8, 128], strides = [1, 1]} : vector<8x512xf32> to vector<8x128xf32>
    %284 = math.tanh %283 : vector<8x128xf32>
    %285 = vector.extract_strided_slice %270 {offsets = [0, 384], sizes = [8, 128], strides = [1, 1]} : vector<8x512xf32> to vector<8x128xf32>
    %286 = arith.negf %285 : vector<8x128xf32>
    %287 = math.exp %286 : vector<8x128xf32>
    %cst_54 = arith.constant 1.000000e+00 : f32
    %288 = vector.broadcast %cst_54 : f32 to vector<8x128xf32>
    %289 = arith.addf %288, %287 : vector<8x128xf32>
    %290 = arith.divf %288, %289 : vector<8x128xf32>
    %291 = arith.mulf %282, %207 : vector<8x128xf32>
    %292 = arith.mulf %276, %284 : vector<8x128xf32>
    %293 = arith.addf %291, %292 : vector<8x128xf32>
    %294 = math.tanh %293 : vector<8x128xf32>
    %295 = arith.mulf %290, %294 : vector<8x128xf32>
    %296 = tpu.concatenate %295, %266 in 1 : vector<8x128xf32>, vector<8x32xf32> -> vector<8x160xf32>
    %cst_55 = arith.constant dense<0.000000e+00> : vector<8x384xf32>
    %297 = tpu.matmul %296, %1, %cst_55 {dimension_numbers = #tpu.dot_dimension_numbers<[1], [0], [0], [1], [0, 0, 1, 1], [], []>} : vector<8x160xf32>, vector<160x384xf32>, vector<8x384xf32> -> vector<8x384xf32>
    %298 = vector.broadcast %2 : vector<1x384xf32> to vector<8x384xf32>
    %299 = arith.addf %297, %298 : vector<8x384xf32>
    %300 = vector.extract_strided_slice %299 {offsets = [0, 0], sizes = [8, 256], strides = [1, 1]} : vector<8x384xf32> to vector<8x256xf32>
    %301 = arith.negf %300 : vector<8x256xf32>
    %302 = math.exp %301 : vector<8x256xf32>
    %cst_56 = arith.constant 1.000000e+00 : f32
    %303 = vector.broadcast %cst_56 : f32 to vector<8x256xf32>
    %304 = arith.addf %303, %302 : vector<8x256xf32>
    %305 = arith.divf %303, %304 : vector<8x256xf32>
    %306 = vector.extract_strided_slice %305 {offsets = [0, 0], sizes = [8, 32], strides = [1, 1]} : vector<8x256xf32> to vector<8x32xf32>
    %307 = vector.extract_strided_slice %305 {offsets = [0, 32], sizes = [8, 32], strides = [1, 1]} : vector<8x256xf32> to vector<8x32xf32>
    %308 = vector.extract_strided_slice %305 {offsets = [0, 128], sizes = [8, 128], strides = [1, 1]} : vector<8x256xf32> to vector<8x128xf32>
    %309 = vector.extract_strided_slice %299 {offsets = [0, 256], sizes = [8, 128], strides = [1, 1]} : vector<8x384xf32> to vector<8x128xf32>
    %310 = math.tanh %309 : vector<8x128xf32>
    %311 = arith.mulf %308, %310 : vector<8x128xf32>
    %cst_57 = arith.constant dense<0.000000e+00> : vector<8x128xf32>
    %312 = tpu.matmul %264, %3, %cst_57 {dimension_numbers = #tpu.dot_dimension_numbers<[1], [0], [0], [1], [0, 0, 1, 1], [], []>} : vector<8x32xf32>, vector<32x128xf32>, vector<8x128xf32> -> vector<8x128xf32>
    %313 = vector.broadcast %4 : vector<1x128xf32> to vector<8x128xf32>
    %314 = arith.addf %312, %313 : vector<8x128xf32>
    %315 = math.tanh %314 : vector<8x128xf32>
    %316 = arith.mulf %311, %315 : vector<8x128xf32>
    %317 = vector.extract_strided_slice %316 {offsets = [0, 0], sizes = [8, 32], strides = [1, 1]} : vector<8x128xf32> to vector<8x32xf32>
    %cst_58 = arith.constant dense<0.000000e+00> : vector<8xf32>
    %318 = vector.multi_reduction <add>, %317, %cst_58 [1] : vector<8x32xf32> to vector<8xf32>
    %319 = vector.shape_cast %318 : vector<8xf32> to vector<8x1xf32>
    %320 = vector.extract_strided_slice %316 {offsets = [0, 32], sizes = [8, 32], strides = [1, 1]} : vector<8x128xf32> to vector<8x32xf32>
    %cst_59 = arith.constant dense<0.000000e+00> : vector<8xf32>
    %321 = vector.multi_reduction <add>, %320, %cst_59 [1] : vector<8x32xf32> to vector<8xf32>
    %322 = vector.shape_cast %321 : vector<8xf32> to vector<8x1xf32>
    %323 = vector.extract_strided_slice %316 {offsets = [0, 64], sizes = [8, 32], strides = [1, 1]} : vector<8x128xf32> to vector<8x32xf32>
    %cst_60 = arith.constant dense<0.000000e+00> : vector<8xf32>
    %324 = vector.multi_reduction <add>, %323, %cst_60 [1] : vector<8x32xf32> to vector<8xf32>
    %325 = vector.shape_cast %324 : vector<8xf32> to vector<8x1xf32>
    %326 = arith.maximumf %319, %322 : vector<8x1xf32>
    %327 = arith.maximumf %326, %325 : vector<8x1xf32>
    %328 = arith.subf %319, %327 : vector<8x1xf32>
    %329 = math.exp %328 : vector<8x1xf32>
    %330 = arith.subf %322, %327 : vector<8x1xf32>
    %331 = math.exp %330 : vector<8x1xf32>
    %332 = arith.subf %325, %327 : vector<8x1xf32>
    %333 = math.exp %332 : vector<8x1xf32>
    %334 = arith.addf %329, %331 : vector<8x1xf32>
    %335 = arith.addf %334, %333 : vector<8x1xf32>
    %336 = vector.extract_strided_slice %311 {offsets = [0, 0], sizes = [8, 32], strides = [1, 1]} : vector<8x128xf32> to vector<8x32xf32>
    %337 = vector.broadcast %329 : vector<8x1xf32> to vector<8x32xf32>
    %338 = arith.mulf %337, %336 : vector<8x32xf32>
    %339 = vector.extract_strided_slice %311 {offsets = [0, 32], sizes = [8, 32], strides = [1, 1]} : vector<8x128xf32> to vector<8x32xf32>
    %340 = vector.broadcast %331 : vector<8x1xf32> to vector<8x32xf32>
    %341 = arith.mulf %340, %339 : vector<8x32xf32>
    %342 = arith.addf %338, %341 : vector<8x32xf32>
    %343 = vector.extract_strided_slice %311 {offsets = [0, 64], sizes = [8, 32], strides = [1, 1]} : vector<8x128xf32> to vector<8x32xf32>
    %344 = vector.broadcast %333 : vector<8x1xf32> to vector<8x32xf32>
    %345 = arith.mulf %344, %343 : vector<8x32xf32>
    %346 = arith.addf %342, %345 : vector<8x32xf32>
    %347 = vector.broadcast %335 : vector<8x1xf32> to vector<8x32xf32>
    %348 = arith.divf %346, %347 : vector<8x32xf32>
    %349 = arith.mulf %306, %264 : vector<8x32xf32>
    %350 = arith.addf %349, %348 : vector<8x32xf32>
    %351 = math.tanh %350 : vector<8x32xf32>
    %352 = arith.mulf %307, %351 : vector<8x32xf32>
    %c4 = arith.constant 4 : index
    %c0_61 = arith.constant 0 : index
    %c0_62 = arith.constant 0 : index
    %353 = vector.load %arg1[%c4, %c0_61, %c0_62] : memref<8x8x512xf32, #tpu.memory_space<vmem>>, vector<1x8x512xf32>
    %354 = vector.shape_cast %353 : vector<1x8x512xf32> to vector<8x512xf32>
    %cst_63 = arith.constant dense<0.000000e+00> : vector<8x512xf32>
    %355 = tpu.matmul %295, %0, %cst_63 {dimension_numbers = #tpu.dot_dimension_numbers<[1], [0], [0], [1], [0, 0, 1, 1], [], []>} : vector<8x128xf32>, vector<128x512xf32>, vector<8x512xf32> -> vector<8x512xf32>
    %356 = arith.addf %354, %355 : vector<8x512xf32>
    %357 = vector.extract_strided_slice %356 {offsets = [0, 0], sizes = [8, 128], strides = [1, 1]} : vector<8x512xf32> to vector<8x128xf32>
    %358 = arith.negf %357 : vector<8x128xf32>
    %359 = math.exp %358 : vector<8x128xf32>
    %cst_64 = arith.constant 1.000000e+00 : f32
    %360 = vector.broadcast %cst_64 : f32 to vector<8x128xf32>
    %361 = arith.addf %360, %359 : vector<8x128xf32>
    %362 = arith.divf %360, %361 : vector<8x128xf32>
    %363 = vector.extract_strided_slice %356 {offsets = [0, 128], sizes = [8, 128], strides = [1, 1]} : vector<8x512xf32> to vector<8x128xf32>
    %364 = arith.negf %363 : vector<8x128xf32>
    %365 = math.exp %364 : vector<8x128xf32>
    %cst_65 = arith.constant 1.000000e+00 : f32
    %366 = vector.broadcast %cst_65 : f32 to vector<8x128xf32>
    %367 = arith.addf %366, %365 : vector<8x128xf32>
    %368 = arith.divf %366, %367 : vector<8x128xf32>
    %369 = vector.extract_strided_slice %356 {offsets = [0, 256], sizes = [8, 128], strides = [1, 1]} : vector<8x512xf32> to vector<8x128xf32>
    %370 = math.tanh %369 : vector<8x128xf32>
    %371 = vector.extract_strided_slice %356 {offsets = [0, 384], sizes = [8, 128], strides = [1, 1]} : vector<8x512xf32> to vector<8x128xf32>
    %372 = arith.negf %371 : vector<8x128xf32>
    %373 = math.exp %372 : vector<8x128xf32>
    %cst_66 = arith.constant 1.000000e+00 : f32
    %374 = vector.broadcast %cst_66 : f32 to vector<8x128xf32>
    %375 = arith.addf %374, %373 : vector<8x128xf32>
    %376 = arith.divf %374, %375 : vector<8x128xf32>
    %377 = arith.mulf %368, %293 : vector<8x128xf32>
    %378 = arith.mulf %362, %370 : vector<8x128xf32>
    %379 = arith.addf %377, %378 : vector<8x128xf32>
    %380 = math.tanh %379 : vector<8x128xf32>
    %381 = arith.mulf %376, %380 : vector<8x128xf32>
    %382 = tpu.concatenate %381, %352 in 1 : vector<8x128xf32>, vector<8x32xf32> -> vector<8x160xf32>
    %cst_67 = arith.constant dense<0.000000e+00> : vector<8x384xf32>
    %383 = tpu.matmul %382, %1, %cst_67 {dimension_numbers = #tpu.dot_dimension_numbers<[1], [0], [0], [1], [0, 0, 1, 1], [], []>} : vector<8x160xf32>, vector<160x384xf32>, vector<8x384xf32> -> vector<8x384xf32>
    %384 = vector.broadcast %2 : vector<1x384xf32> to vector<8x384xf32>
    %385 = arith.addf %383, %384 : vector<8x384xf32>
    %386 = vector.extract_strided_slice %385 {offsets = [0, 0], sizes = [8, 256], strides = [1, 1]} : vector<8x384xf32> to vector<8x256xf32>
    %387 = arith.negf %386 : vector<8x256xf32>
    %388 = math.exp %387 : vector<8x256xf32>
    %cst_68 = arith.constant 1.000000e+00 : f32
    %389 = vector.broadcast %cst_68 : f32 to vector<8x256xf32>
    %390 = arith.addf %389, %388 : vector<8x256xf32>
    %391 = arith.divf %389, %390 : vector<8x256xf32>
    %392 = vector.extract_strided_slice %391 {offsets = [0, 0], sizes = [8, 32], strides = [1, 1]} : vector<8x256xf32> to vector<8x32xf32>
    %393 = vector.extract_strided_slice %391 {offsets = [0, 32], sizes = [8, 32], strides = [1, 1]} : vector<8x256xf32> to vector<8x32xf32>
    %394 = vector.extract_strided_slice %391 {offsets = [0, 128], sizes = [8, 128], strides = [1, 1]} : vector<8x256xf32> to vector<8x128xf32>
    %395 = vector.extract_strided_slice %385 {offsets = [0, 256], sizes = [8, 128], strides = [1, 1]} : vector<8x384xf32> to vector<8x128xf32>
    %396 = math.tanh %395 : vector<8x128xf32>
    %397 = arith.mulf %394, %396 : vector<8x128xf32>
    %cst_69 = arith.constant dense<0.000000e+00> : vector<8x128xf32>
    %398 = tpu.matmul %350, %3, %cst_69 {dimension_numbers = #tpu.dot_dimension_numbers<[1], [0], [0], [1], [0, 0, 1, 1], [], []>} : vector<8x32xf32>, vector<32x128xf32>, vector<8x128xf32> -> vector<8x128xf32>
    %399 = vector.broadcast %4 : vector<1x128xf32> to vector<8x128xf32>
    %400 = arith.addf %398, %399 : vector<8x128xf32>
    %401 = math.tanh %400 : vector<8x128xf32>
    %402 = arith.mulf %397, %401 : vector<8x128xf32>
    %403 = vector.extract_strided_slice %402 {offsets = [0, 0], sizes = [8, 32], strides = [1, 1]} : vector<8x128xf32> to vector<8x32xf32>
    %cst_70 = arith.constant dense<0.000000e+00> : vector<8xf32>
    %404 = vector.multi_reduction <add>, %403, %cst_70 [1] : vector<8x32xf32> to vector<8xf32>
    %405 = vector.shape_cast %404 : vector<8xf32> to vector<8x1xf32>
    %406 = vector.extract_strided_slice %402 {offsets = [0, 32], sizes = [8, 32], strides = [1, 1]} : vector<8x128xf32> to vector<8x32xf32>
    %cst_71 = arith.constant dense<0.000000e+00> : vector<8xf32>
    %407 = vector.multi_reduction <add>, %406, %cst_71 [1] : vector<8x32xf32> to vector<8xf32>
    %408 = vector.shape_cast %407 : vector<8xf32> to vector<8x1xf32>
    %409 = vector.extract_strided_slice %402 {offsets = [0, 64], sizes = [8, 32], strides = [1, 1]} : vector<8x128xf32> to vector<8x32xf32>
    %cst_72 = arith.constant dense<0.000000e+00> : vector<8xf32>
    %410 = vector.multi_reduction <add>, %409, %cst_72 [1] : vector<8x32xf32> to vector<8xf32>
    %411 = vector.shape_cast %410 : vector<8xf32> to vector<8x1xf32>
    %412 = arith.maximumf %405, %408 : vector<8x1xf32>
    %413 = arith.maximumf %412, %411 : vector<8x1xf32>
    %414 = arith.subf %405, %413 : vector<8x1xf32>
    %415 = math.exp %414 : vector<8x1xf32>
    %416 = arith.subf %408, %413 : vector<8x1xf32>
    %417 = math.exp %416 : vector<8x1xf32>
    %418 = arith.subf %411, %413 : vector<8x1xf32>
    %419 = math.exp %418 : vector<8x1xf32>
    %420 = arith.addf %415, %417 : vector<8x1xf32>
    %421 = arith.addf %420, %419 : vector<8x1xf32>
    %422 = vector.extract_strided_slice %397 {offsets = [0, 0], sizes = [8, 32], strides = [1, 1]} : vector<8x128xf32> to vector<8x32xf32>
    %423 = vector.broadcast %415 : vector<8x1xf32> to vector<8x32xf32>
    %424 = arith.mulf %423, %422 : vector<8x32xf32>
    %425 = vector.extract_strided_slice %397 {offsets = [0, 32], sizes = [8, 32], strides = [1, 1]} : vector<8x128xf32> to vector<8x32xf32>
    %426 = vector.broadcast %417 : vector<8x1xf32> to vector<8x32xf32>
    %427 = arith.mulf %426, %425 : vector<8x32xf32>
    %428 = arith.addf %424, %427 : vector<8x32xf32>
    %429 = vector.extract_strided_slice %397 {offsets = [0, 64], sizes = [8, 32], strides = [1, 1]} : vector<8x128xf32> to vector<8x32xf32>
    %430 = vector.broadcast %419 : vector<8x1xf32> to vector<8x32xf32>
    %431 = arith.mulf %430, %429 : vector<8x32xf32>
    %432 = arith.addf %428, %431 : vector<8x32xf32>
    %433 = vector.broadcast %421 : vector<8x1xf32> to vector<8x32xf32>
    %434 = arith.divf %432, %433 : vector<8x32xf32>
    %435 = arith.mulf %392, %350 : vector<8x32xf32>
    %436 = arith.addf %435, %434 : vector<8x32xf32>
    %437 = math.tanh %436 : vector<8x32xf32>
    %438 = arith.mulf %393, %437 : vector<8x32xf32>
    %c5 = arith.constant 5 : index
    %c0_73 = arith.constant 0 : index
    %c0_74 = arith.constant 0 : index
    %439 = vector.load %arg1[%c5, %c0_73, %c0_74] : memref<8x8x512xf32, #tpu.memory_space<vmem>>, vector<1x8x512xf32>
    %440 = vector.shape_cast %439 : vector<1x8x512xf32> to vector<8x512xf32>
    %cst_75 = arith.constant dense<0.000000e+00> : vector<8x512xf32>
    %441 = tpu.matmul %381, %0, %cst_75 {dimension_numbers = #tpu.dot_dimension_numbers<[1], [0], [0], [1], [0, 0, 1, 1], [], []>} : vector<8x128xf32>, vector<128x512xf32>, vector<8x512xf32> -> vector<8x512xf32>
    %442 = arith.addf %440, %441 : vector<8x512xf32>
    %443 = vector.extract_strided_slice %442 {offsets = [0, 0], sizes = [8, 128], strides = [1, 1]} : vector<8x512xf32> to vector<8x128xf32>
    %444 = arith.negf %443 : vector<8x128xf32>
    %445 = math.exp %444 : vector<8x128xf32>
    %cst_76 = arith.constant 1.000000e+00 : f32
    %446 = vector.broadcast %cst_76 : f32 to vector<8x128xf32>
    %447 = arith.addf %446, %445 : vector<8x128xf32>
    %448 = arith.divf %446, %447 : vector<8x128xf32>
    %449 = vector.extract_strided_slice %442 {offsets = [0, 128], sizes = [8, 128], strides = [1, 1]} : vector<8x512xf32> to vector<8x128xf32>
    %450 = arith.negf %449 : vector<8x128xf32>
    %451 = math.exp %450 : vector<8x128xf32>
    %cst_77 = arith.constant 1.000000e+00 : f32
    %452 = vector.broadcast %cst_77 : f32 to vector<8x128xf32>
    %453 = arith.addf %452, %451 : vector<8x128xf32>
    %454 = arith.divf %452, %453 : vector<8x128xf32>
    %455 = vector.extract_strided_slice %442 {offsets = [0, 256], sizes = [8, 128], strides = [1, 1]} : vector<8x512xf32> to vector<8x128xf32>
    %456 = math.tanh %455 : vector<8x128xf32>
    %457 = vector.extract_strided_slice %442 {offsets = [0, 384], sizes = [8, 128], strides = [1, 1]} : vector<8x512xf32> to vector<8x128xf32>
    %458 = arith.negf %457 : vector<8x128xf32>
    %459 = math.exp %458 : vector<8x128xf32>
    %cst_78 = arith.constant 1.000000e+00 : f32
    %460 = vector.broadcast %cst_78 : f32 to vector<8x128xf32>
    %461 = arith.addf %460, %459 : vector<8x128xf32>
    %462 = arith.divf %460, %461 : vector<8x128xf32>
    %463 = arith.mulf %454, %379 : vector<8x128xf32>
    %464 = arith.mulf %448, %456 : vector<8x128xf32>
    %465 = arith.addf %463, %464 : vector<8x128xf32>
    %466 = math.tanh %465 : vector<8x128xf32>
    %467 = arith.mulf %462, %466 : vector<8x128xf32>
    %468 = tpu.concatenate %467, %438 in 1 : vector<8x128xf32>, vector<8x32xf32> -> vector<8x160xf32>
    %cst_79 = arith.constant dense<0.000000e+00> : vector<8x384xf32>
    %469 = tpu.matmul %468, %1, %cst_79 {dimension_numbers = #tpu.dot_dimension_numbers<[1], [0], [0], [1], [0, 0, 1, 1], [], []>} : vector<8x160xf32>, vector<160x384xf32>, vector<8x384xf32> -> vector<8x384xf32>
    %470 = vector.broadcast %2 : vector<1x384xf32> to vector<8x384xf32>
    %471 = arith.addf %469, %470 : vector<8x384xf32>
    %472 = vector.extract_strided_slice %471 {offsets = [0, 0], sizes = [8, 256], strides = [1, 1]} : vector<8x384xf32> to vector<8x256xf32>
    %473 = arith.negf %472 : vector<8x256xf32>
    %474 = math.exp %473 : vector<8x256xf32>
    %cst_80 = arith.constant 1.000000e+00 : f32
    %475 = vector.broadcast %cst_80 : f32 to vector<8x256xf32>
    %476 = arith.addf %475, %474 : vector<8x256xf32>
    %477 = arith.divf %475, %476 : vector<8x256xf32>
    %478 = vector.extract_strided_slice %477 {offsets = [0, 0], sizes = [8, 32], strides = [1, 1]} : vector<8x256xf32> to vector<8x32xf32>
    %479 = vector.extract_strided_slice %477 {offsets = [0, 32], sizes = [8, 32], strides = [1, 1]} : vector<8x256xf32> to vector<8x32xf32>
    %480 = vector.extract_strided_slice %477 {offsets = [0, 128], sizes = [8, 128], strides = [1, 1]} : vector<8x256xf32> to vector<8x128xf32>
    %481 = vector.extract_strided_slice %471 {offsets = [0, 256], sizes = [8, 128], strides = [1, 1]} : vector<8x384xf32> to vector<8x128xf32>
    %482 = math.tanh %481 : vector<8x128xf32>
    %483 = arith.mulf %480, %482 : vector<8x128xf32>
    %cst_81 = arith.constant dense<0.000000e+00> : vector<8x128xf32>
    %484 = tpu.matmul %436, %3, %cst_81 {dimension_numbers = #tpu.dot_dimension_numbers<[1], [0], [0], [1], [0, 0, 1, 1], [], []>} : vector<8x32xf32>, vector<32x128xf32>, vector<8x128xf32> -> vector<8x128xf32>
    %485 = vector.broadcast %4 : vector<1x128xf32> to vector<8x128xf32>
    %486 = arith.addf %484, %485 : vector<8x128xf32>
    %487 = math.tanh %486 : vector<8x128xf32>
    %488 = arith.mulf %483, %487 : vector<8x128xf32>
    %489 = vector.extract_strided_slice %488 {offsets = [0, 0], sizes = [8, 32], strides = [1, 1]} : vector<8x128xf32> to vector<8x32xf32>
    %cst_82 = arith.constant dense<0.000000e+00> : vector<8xf32>
    %490 = vector.multi_reduction <add>, %489, %cst_82 [1] : vector<8x32xf32> to vector<8xf32>
    %491 = vector.shape_cast %490 : vector<8xf32> to vector<8x1xf32>
    %492 = vector.extract_strided_slice %488 {offsets = [0, 32], sizes = [8, 32], strides = [1, 1]} : vector<8x128xf32> to vector<8x32xf32>
    %cst_83 = arith.constant dense<0.000000e+00> : vector<8xf32>
    %493 = vector.multi_reduction <add>, %492, %cst_83 [1] : vector<8x32xf32> to vector<8xf32>
    %494 = vector.shape_cast %493 : vector<8xf32> to vector<8x1xf32>
    %495 = vector.extract_strided_slice %488 {offsets = [0, 64], sizes = [8, 32], strides = [1, 1]} : vector<8x128xf32> to vector<8x32xf32>
    %cst_84 = arith.constant dense<0.000000e+00> : vector<8xf32>
    %496 = vector.multi_reduction <add>, %495, %cst_84 [1] : vector<8x32xf32> to vector<8xf32>
    %497 = vector.shape_cast %496 : vector<8xf32> to vector<8x1xf32>
    %498 = arith.maximumf %491, %494 : vector<8x1xf32>
    %499 = arith.maximumf %498, %497 : vector<8x1xf32>
    %500 = arith.subf %491, %499 : vector<8x1xf32>
    %501 = math.exp %500 : vector<8x1xf32>
    %502 = arith.subf %494, %499 : vector<8x1xf32>
    %503 = math.exp %502 : vector<8x1xf32>
    %504 = arith.subf %497, %499 : vector<8x1xf32>
    %505 = math.exp %504 : vector<8x1xf32>
    %506 = arith.addf %501, %503 : vector<8x1xf32>
    %507 = arith.addf %506, %505 : vector<8x1xf32>
    %508 = vector.extract_strided_slice %483 {offsets = [0, 0], sizes = [8, 32], strides = [1, 1]} : vector<8x128xf32> to vector<8x32xf32>
    %509 = vector.broadcast %501 : vector<8x1xf32> to vector<8x32xf32>
    %510 = arith.mulf %509, %508 : vector<8x32xf32>
    %511 = vector.extract_strided_slice %483 {offsets = [0, 32], sizes = [8, 32], strides = [1, 1]} : vector<8x128xf32> to vector<8x32xf32>
    %512 = vector.broadcast %503 : vector<8x1xf32> to vector<8x32xf32>
    %513 = arith.mulf %512, %511 : vector<8x32xf32>
    %514 = arith.addf %510, %513 : vector<8x32xf32>
    %515 = vector.extract_strided_slice %483 {offsets = [0, 64], sizes = [8, 32], strides = [1, 1]} : vector<8x128xf32> to vector<8x32xf32>
    %516 = vector.broadcast %505 : vector<8x1xf32> to vector<8x32xf32>
    %517 = arith.mulf %516, %515 : vector<8x32xf32>
    %518 = arith.addf %514, %517 : vector<8x32xf32>
    %519 = vector.broadcast %507 : vector<8x1xf32> to vector<8x32xf32>
    %520 = arith.divf %518, %519 : vector<8x32xf32>
    %521 = arith.mulf %478, %436 : vector<8x32xf32>
    %522 = arith.addf %521, %520 : vector<8x32xf32>
    %523 = math.tanh %522 : vector<8x32xf32>
    %524 = arith.mulf %479, %523 : vector<8x32xf32>
    %c6 = arith.constant 6 : index
    %c0_85 = arith.constant 0 : index
    %c0_86 = arith.constant 0 : index
    %525 = vector.load %arg1[%c6, %c0_85, %c0_86] : memref<8x8x512xf32, #tpu.memory_space<vmem>>, vector<1x8x512xf32>
    %526 = vector.shape_cast %525 : vector<1x8x512xf32> to vector<8x512xf32>
    %cst_87 = arith.constant dense<0.000000e+00> : vector<8x512xf32>
    %527 = tpu.matmul %467, %0, %cst_87 {dimension_numbers = #tpu.dot_dimension_numbers<[1], [0], [0], [1], [0, 0, 1, 1], [], []>} : vector<8x128xf32>, vector<128x512xf32>, vector<8x512xf32> -> vector<8x512xf32>
    %528 = arith.addf %526, %527 : vector<8x512xf32>
    %529 = vector.extract_strided_slice %528 {offsets = [0, 0], sizes = [8, 128], strides = [1, 1]} : vector<8x512xf32> to vector<8x128xf32>
    %530 = arith.negf %529 : vector<8x128xf32>
    %531 = math.exp %530 : vector<8x128xf32>
    %cst_88 = arith.constant 1.000000e+00 : f32
    %532 = vector.broadcast %cst_88 : f32 to vector<8x128xf32>
    %533 = arith.addf %532, %531 : vector<8x128xf32>
    %534 = arith.divf %532, %533 : vector<8x128xf32>
    %535 = vector.extract_strided_slice %528 {offsets = [0, 128], sizes = [8, 128], strides = [1, 1]} : vector<8x512xf32> to vector<8x128xf32>
    %536 = arith.negf %535 : vector<8x128xf32>
    %537 = math.exp %536 : vector<8x128xf32>
    %cst_89 = arith.constant 1.000000e+00 : f32
    %538 = vector.broadcast %cst_89 : f32 to vector<8x128xf32>
    %539 = arith.addf %538, %537 : vector<8x128xf32>
    %540 = arith.divf %538, %539 : vector<8x128xf32>
    %541 = vector.extract_strided_slice %528 {offsets = [0, 256], sizes = [8, 128], strides = [1, 1]} : vector<8x512xf32> to vector<8x128xf32>
    %542 = math.tanh %541 : vector<8x128xf32>
    %543 = vector.extract_strided_slice %528 {offsets = [0, 384], sizes = [8, 128], strides = [1, 1]} : vector<8x512xf32> to vector<8x128xf32>
    %544 = arith.negf %543 : vector<8x128xf32>
    %545 = math.exp %544 : vector<8x128xf32>
    %cst_90 = arith.constant 1.000000e+00 : f32
    %546 = vector.broadcast %cst_90 : f32 to vector<8x128xf32>
    %547 = arith.addf %546, %545 : vector<8x128xf32>
    %548 = arith.divf %546, %547 : vector<8x128xf32>
    %549 = arith.mulf %540, %465 : vector<8x128xf32>
    %550 = arith.mulf %534, %542 : vector<8x128xf32>
    %551 = arith.addf %549, %550 : vector<8x128xf32>
    %552 = math.tanh %551 : vector<8x128xf32>
    %553 = arith.mulf %548, %552 : vector<8x128xf32>
    %554 = tpu.concatenate %553, %524 in 1 : vector<8x128xf32>, vector<8x32xf32> -> vector<8x160xf32>
    %cst_91 = arith.constant dense<0.000000e+00> : vector<8x384xf32>
    %555 = tpu.matmul %554, %1, %cst_91 {dimension_numbers = #tpu.dot_dimension_numbers<[1], [0], [0], [1], [0, 0, 1, 1], [], []>} : vector<8x160xf32>, vector<160x384xf32>, vector<8x384xf32> -> vector<8x384xf32>
    %556 = vector.broadcast %2 : vector<1x384xf32> to vector<8x384xf32>
    %557 = arith.addf %555, %556 : vector<8x384xf32>
    %558 = vector.extract_strided_slice %557 {offsets = [0, 0], sizes = [8, 256], strides = [1, 1]} : vector<8x384xf32> to vector<8x256xf32>
    %559 = arith.negf %558 : vector<8x256xf32>
    %560 = math.exp %559 : vector<8x256xf32>
    %cst_92 = arith.constant 1.000000e+00 : f32
    %561 = vector.broadcast %cst_92 : f32 to vector<8x256xf32>
    %562 = arith.addf %561, %560 : vector<8x256xf32>
    %563 = arith.divf %561, %562 : vector<8x256xf32>
    %564 = vector.extract_strided_slice %563 {offsets = [0, 0], sizes = [8, 32], strides = [1, 1]} : vector<8x256xf32> to vector<8x32xf32>
    %565 = vector.extract_strided_slice %563 {offsets = [0, 32], sizes = [8, 32], strides = [1, 1]} : vector<8x256xf32> to vector<8x32xf32>
    %566 = vector.extract_strided_slice %563 {offsets = [0, 128], sizes = [8, 128], strides = [1, 1]} : vector<8x256xf32> to vector<8x128xf32>
    %567 = vector.extract_strided_slice %557 {offsets = [0, 256], sizes = [8, 128], strides = [1, 1]} : vector<8x384xf32> to vector<8x128xf32>
    %568 = math.tanh %567 : vector<8x128xf32>
    %569 = arith.mulf %566, %568 : vector<8x128xf32>
    %cst_93 = arith.constant dense<0.000000e+00> : vector<8x128xf32>
    %570 = tpu.matmul %522, %3, %cst_93 {dimension_numbers = #tpu.dot_dimension_numbers<[1], [0], [0], [1], [0, 0, 1, 1], [], []>} : vector<8x32xf32>, vector<32x128xf32>, vector<8x128xf32> -> vector<8x128xf32>
    %571 = vector.broadcast %4 : vector<1x128xf32> to vector<8x128xf32>
    %572 = arith.addf %570, %571 : vector<8x128xf32>
    %573 = math.tanh %572 : vector<8x128xf32>
    %574 = arith.mulf %569, %573 : vector<8x128xf32>
    %575 = vector.extract_strided_slice %574 {offsets = [0, 0], sizes = [8, 32], strides = [1, 1]} : vector<8x128xf32> to vector<8x32xf32>
    %cst_94 = arith.constant dense<0.000000e+00> : vector<8xf32>
    %576 = vector.multi_reduction <add>, %575, %cst_94 [1] : vector<8x32xf32> to vector<8xf32>
    %577 = vector.shape_cast %576 : vector<8xf32> to vector<8x1xf32>
    %578 = vector.extract_strided_slice %574 {offsets = [0, 32], sizes = [8, 32], strides = [1, 1]} : vector<8x128xf32> to vector<8x32xf32>
    %cst_95 = arith.constant dense<0.000000e+00> : vector<8xf32>
    %579 = vector.multi_reduction <add>, %578, %cst_95 [1] : vector<8x32xf32> to vector<8xf32>
    %580 = vector.shape_cast %579 : vector<8xf32> to vector<8x1xf32>
    %581 = vector.extract_strided_slice %574 {offsets = [0, 64], sizes = [8, 32], strides = [1, 1]} : vector<8x128xf32> to vector<8x32xf32>
    %cst_96 = arith.constant dense<0.000000e+00> : vector<8xf32>
    %582 = vector.multi_reduction <add>, %581, %cst_96 [1] : vector<8x32xf32> to vector<8xf32>
    %583 = vector.shape_cast %582 : vector<8xf32> to vector<8x1xf32>
    %584 = arith.maximumf %577, %580 : vector<8x1xf32>
    %585 = arith.maximumf %584, %583 : vector<8x1xf32>
    %586 = arith.subf %577, %585 : vector<8x1xf32>
    %587 = math.exp %586 : vector<8x1xf32>
    %588 = arith.subf %580, %585 : vector<8x1xf32>
    %589 = math.exp %588 : vector<8x1xf32>
    %590 = arith.subf %583, %585 : vector<8x1xf32>
    %591 = math.exp %590 : vector<8x1xf32>
    %592 = arith.addf %587, %589 : vector<8x1xf32>
    %593 = arith.addf %592, %591 : vector<8x1xf32>
    %594 = vector.extract_strided_slice %569 {offsets = [0, 0], sizes = [8, 32], strides = [1, 1]} : vector<8x128xf32> to vector<8x32xf32>
    %595 = vector.broadcast %587 : vector<8x1xf32> to vector<8x32xf32>
    %596 = arith.mulf %595, %594 : vector<8x32xf32>
    %597 = vector.extract_strided_slice %569 {offsets = [0, 32], sizes = [8, 32], strides = [1, 1]} : vector<8x128xf32> to vector<8x32xf32>
    %598 = vector.broadcast %589 : vector<8x1xf32> to vector<8x32xf32>
    %599 = arith.mulf %598, %597 : vector<8x32xf32>
    %600 = arith.addf %596, %599 : vector<8x32xf32>
    %601 = vector.extract_strided_slice %569 {offsets = [0, 64], sizes = [8, 32], strides = [1, 1]} : vector<8x128xf32> to vector<8x32xf32>
    %602 = vector.broadcast %591 : vector<8x1xf32> to vector<8x32xf32>
    %603 = arith.mulf %602, %601 : vector<8x32xf32>
    %604 = arith.addf %600, %603 : vector<8x32xf32>
    %605 = vector.broadcast %593 : vector<8x1xf32> to vector<8x32xf32>
    %606 = arith.divf %604, %605 : vector<8x32xf32>
    %607 = arith.mulf %564, %522 : vector<8x32xf32>
    %608 = arith.addf %607, %606 : vector<8x32xf32>
    %609 = math.tanh %608 : vector<8x32xf32>
    %610 = arith.mulf %565, %609 : vector<8x32xf32>
    %c7 = arith.constant 7 : index
    %c0_97 = arith.constant 0 : index
    %c0_98 = arith.constant 0 : index
    %611 = vector.load %arg1[%c7, %c0_97, %c0_98] : memref<8x8x512xf32, #tpu.memory_space<vmem>>, vector<1x8x512xf32>
    %612 = vector.shape_cast %611 : vector<1x8x512xf32> to vector<8x512xf32>
    %cst_99 = arith.constant dense<0.000000e+00> : vector<8x512xf32>
    %613 = tpu.matmul %553, %0, %cst_99 {dimension_numbers = #tpu.dot_dimension_numbers<[1], [0], [0], [1], [0, 0, 1, 1], [], []>} : vector<8x128xf32>, vector<128x512xf32>, vector<8x512xf32> -> vector<8x512xf32>
    %614 = arith.addf %612, %613 : vector<8x512xf32>
    %615 = vector.extract_strided_slice %614 {offsets = [0, 0], sizes = [8, 128], strides = [1, 1]} : vector<8x512xf32> to vector<8x128xf32>
    %616 = arith.negf %615 : vector<8x128xf32>
    %617 = math.exp %616 : vector<8x128xf32>
    %cst_100 = arith.constant 1.000000e+00 : f32
    %618 = vector.broadcast %cst_100 : f32 to vector<8x128xf32>
    %619 = arith.addf %618, %617 : vector<8x128xf32>
    %620 = arith.divf %618, %619 : vector<8x128xf32>
    %621 = vector.extract_strided_slice %614 {offsets = [0, 128], sizes = [8, 128], strides = [1, 1]} : vector<8x512xf32> to vector<8x128xf32>
    %622 = arith.negf %621 : vector<8x128xf32>
    %623 = math.exp %622 : vector<8x128xf32>
    %cst_101 = arith.constant 1.000000e+00 : f32
    %624 = vector.broadcast %cst_101 : f32 to vector<8x128xf32>
    %625 = arith.addf %624, %623 : vector<8x128xf32>
    %626 = arith.divf %624, %625 : vector<8x128xf32>
    %627 = vector.extract_strided_slice %614 {offsets = [0, 256], sizes = [8, 128], strides = [1, 1]} : vector<8x512xf32> to vector<8x128xf32>
    %628 = math.tanh %627 : vector<8x128xf32>
    %629 = vector.extract_strided_slice %614 {offsets = [0, 384], sizes = [8, 128], strides = [1, 1]} : vector<8x512xf32> to vector<8x128xf32>
    %630 = arith.negf %629 : vector<8x128xf32>
    %631 = math.exp %630 : vector<8x128xf32>
    %cst_102 = arith.constant 1.000000e+00 : f32
    %632 = vector.broadcast %cst_102 : f32 to vector<8x128xf32>
    %633 = arith.addf %632, %631 : vector<8x128xf32>
    %634 = arith.divf %632, %633 : vector<8x128xf32>
    %635 = arith.mulf %626, %551 : vector<8x128xf32>
    %636 = arith.mulf %620, %628 : vector<8x128xf32>
    %637 = arith.addf %635, %636 : vector<8x128xf32>
    %638 = math.tanh %637 : vector<8x128xf32>
    %639 = arith.mulf %634, %638 : vector<8x128xf32>
    %640 = tpu.concatenate %639, %610 in 1 : vector<8x128xf32>, vector<8x32xf32> -> vector<8x160xf32>
    %cst_103 = arith.constant dense<0.000000e+00> : vector<8x384xf32>
    %641 = tpu.matmul %640, %1, %cst_103 {dimension_numbers = #tpu.dot_dimension_numbers<[1], [0], [0], [1], [0, 0, 1, 1], [], []>} : vector<8x160xf32>, vector<160x384xf32>, vector<8x384xf32> -> vector<8x384xf32>
    %642 = vector.broadcast %2 : vector<1x384xf32> to vector<8x384xf32>
    %643 = arith.addf %641, %642 : vector<8x384xf32>
    %644 = vector.extract_strided_slice %643 {offsets = [0, 0], sizes = [8, 256], strides = [1, 1]} : vector<8x384xf32> to vector<8x256xf32>
    %645 = arith.negf %644 : vector<8x256xf32>
    %646 = math.exp %645 : vector<8x256xf32>
    %cst_104 = arith.constant 1.000000e+00 : f32
    %647 = vector.broadcast %cst_104 : f32 to vector<8x256xf32>
    %648 = arith.addf %647, %646 : vector<8x256xf32>
    %649 = arith.divf %647, %648 : vector<8x256xf32>
    %650 = vector.extract_strided_slice %649 {offsets = [0, 0], sizes = [8, 32], strides = [1, 1]} : vector<8x256xf32> to vector<8x32xf32>
    %651 = vector.extract_strided_slice %649 {offsets = [0, 32], sizes = [8, 32], strides = [1, 1]} : vector<8x256xf32> to vector<8x32xf32>
    %652 = vector.extract_strided_slice %649 {offsets = [0, 128], sizes = [8, 128], strides = [1, 1]} : vector<8x256xf32> to vector<8x128xf32>
    %653 = vector.extract_strided_slice %643 {offsets = [0, 256], sizes = [8, 128], strides = [1, 1]} : vector<8x384xf32> to vector<8x128xf32>
    %654 = math.tanh %653 : vector<8x128xf32>
    %655 = arith.mulf %652, %654 : vector<8x128xf32>
    %cst_105 = arith.constant dense<0.000000e+00> : vector<8x128xf32>
    %656 = tpu.matmul %608, %3, %cst_105 {dimension_numbers = #tpu.dot_dimension_numbers<[1], [0], [0], [1], [0, 0, 1, 1], [], []>} : vector<8x32xf32>, vector<32x128xf32>, vector<8x128xf32> -> vector<8x128xf32>
    %657 = vector.broadcast %4 : vector<1x128xf32> to vector<8x128xf32>
    %658 = arith.addf %656, %657 : vector<8x128xf32>
    %659 = math.tanh %658 : vector<8x128xf32>
    %660 = arith.mulf %655, %659 : vector<8x128xf32>
    %661 = vector.extract_strided_slice %660 {offsets = [0, 0], sizes = [8, 32], strides = [1, 1]} : vector<8x128xf32> to vector<8x32xf32>
    %cst_106 = arith.constant dense<0.000000e+00> : vector<8xf32>
    %662 = vector.multi_reduction <add>, %661, %cst_106 [1] : vector<8x32xf32> to vector<8xf32>
    %663 = vector.shape_cast %662 : vector<8xf32> to vector<8x1xf32>
    %664 = vector.extract_strided_slice %660 {offsets = [0, 32], sizes = [8, 32], strides = [1, 1]} : vector<8x128xf32> to vector<8x32xf32>
    %cst_107 = arith.constant dense<0.000000e+00> : vector<8xf32>
    %665 = vector.multi_reduction <add>, %664, %cst_107 [1] : vector<8x32xf32> to vector<8xf32>
    %666 = vector.shape_cast %665 : vector<8xf32> to vector<8x1xf32>
    %667 = vector.extract_strided_slice %660 {offsets = [0, 64], sizes = [8, 32], strides = [1, 1]} : vector<8x128xf32> to vector<8x32xf32>
    %cst_108 = arith.constant dense<0.000000e+00> : vector<8xf32>
    %668 = vector.multi_reduction <add>, %667, %cst_108 [1] : vector<8x32xf32> to vector<8xf32>
    %669 = vector.shape_cast %668 : vector<8xf32> to vector<8x1xf32>
    %670 = arith.maximumf %663, %666 : vector<8x1xf32>
    %671 = arith.maximumf %670, %669 : vector<8x1xf32>
    %672 = arith.subf %663, %671 : vector<8x1xf32>
    %673 = math.exp %672 : vector<8x1xf32>
    %674 = arith.subf %666, %671 : vector<8x1xf32>
    %675 = math.exp %674 : vector<8x1xf32>
    %676 = arith.subf %669, %671 : vector<8x1xf32>
    %677 = math.exp %676 : vector<8x1xf32>
    %678 = arith.addf %673, %675 : vector<8x1xf32>
    %679 = arith.addf %678, %677 : vector<8x1xf32>
    %680 = vector.extract_strided_slice %655 {offsets = [0, 0], sizes = [8, 32], strides = [1, 1]} : vector<8x128xf32> to vector<8x32xf32>
    %681 = vector.broadcast %673 : vector<8x1xf32> to vector<8x32xf32>
    %682 = arith.mulf %681, %680 : vector<8x32xf32>
    %683 = vector.extract_strided_slice %655 {offsets = [0, 32], sizes = [8, 32], strides = [1, 1]} : vector<8x128xf32> to vector<8x32xf32>
    %684 = vector.broadcast %675 : vector<8x1xf32> to vector<8x32xf32>
    %685 = arith.mulf %684, %683 : vector<8x32xf32>
    %686 = arith.addf %682, %685 : vector<8x32xf32>
    %687 = vector.extract_strided_slice %655 {offsets = [0, 64], sizes = [8, 32], strides = [1, 1]} : vector<8x128xf32> to vector<8x32xf32>
    %688 = vector.broadcast %677 : vector<8x1xf32> to vector<8x32xf32>
    %689 = arith.mulf %688, %687 : vector<8x32xf32>
    %690 = arith.addf %686, %689 : vector<8x32xf32>
    %691 = vector.broadcast %679 : vector<8x1xf32> to vector<8x32xf32>
    %692 = arith.divf %690, %691 : vector<8x32xf32>
    %693 = arith.mulf %650, %608 : vector<8x32xf32>
    %694 = arith.addf %693, %692 : vector<8x32xf32>
    %695 = math.tanh %694 : vector<8x32xf32>
    %696 = arith.mulf %651, %695 : vector<8x32xf32>
    %697 = tpu.concatenate %94, %180, %266, %352, %438, %524, %610, %696 in 0 : vector<8x32xf32>, vector<8x32xf32>, vector<8x32xf32>, vector<8x32xf32>, vector<8x32xf32>, vector<8x32xf32>, vector<8x32xf32>, vector<8x32xf32> -> vector<64x32xf32>
    %c0_109 = arith.constant 0 : index
    %c0_110 = arith.constant 0 : index
    %698 = vector.load %arg7[%c0_109, %c0_110] : memref<32x32xf32, #tpu.memory_space<vmem>>, vector<32x32xf32>
    %cst_111 = arith.constant dense<0.000000e+00> : vector<64x32xf32>
    %699 = tpu.matmul %697, %698, %cst_111 {dimension_numbers = #tpu.dot_dimension_numbers<[1], [0], [0], [1], [0, 0, 1, 1], [], []>} : vector<64x32xf32>, vector<32x32xf32>, vector<64x32xf32> -> vector<64x32xf32>
    %c0_112 = arith.constant 0 : index
    %c0_113 = arith.constant 0 : index
    %700 = vector.load %arg8[%c0_112, %c0_113] : memref<1x32xf32, #tpu.memory_space<vmem>>, vector<1x32xf32>
    %701 = vector.broadcast %700 : vector<1x32xf32> to vector<64x32xf32>
    %702 = arith.addf %699, %701 : vector<64x32xf32>
    %703 = math.tanh %702 : vector<64x32xf32>
    %c0_114 = arith.constant 0 : index
    %c0_115 = arith.constant 0 : index
    %704 = vector.load %arg9[%c0_114, %c0_115] : memref<32x1xf32, #tpu.memory_space<vmem>>, vector<32x1xf32>
    %cst_116 = arith.constant dense<0.000000e+00> : vector<64x1xf32>
    %705 = tpu.matmul %703, %704, %cst_116 {dimension_numbers = #tpu.dot_dimension_numbers<[1], [0], [0], [1], [0, 0, 1, 1], [], []>} : vector<64x32xf32>, vector<32x1xf32>, vector<64x1xf32> -> vector<64x1xf32>
    %706 = vector.extract_strided_slice %705 {offsets = [0, 0], sizes = [8, 1], strides = [1, 1]} : vector<64x1xf32> to vector<8x1xf32>
    %707 = vector.extract_strided_slice %705 {offsets = [8, 0], sizes = [8, 1], strides = [1, 1]} : vector<64x1xf32> to vector<8x1xf32>
    %708 = vector.extract_strided_slice %705 {offsets = [16, 0], sizes = [8, 1], strides = [1, 1]} : vector<64x1xf32> to vector<8x1xf32>
    %709 = vector.extract_strided_slice %705 {offsets = [24, 0], sizes = [8, 1], strides = [1, 1]} : vector<64x1xf32> to vector<8x1xf32>
    %710 = vector.extract_strided_slice %705 {offsets = [32, 0], sizes = [8, 1], strides = [1, 1]} : vector<64x1xf32> to vector<8x1xf32>
    %711 = vector.extract_strided_slice %705 {offsets = [40, 0], sizes = [8, 1], strides = [1, 1]} : vector<64x1xf32> to vector<8x1xf32>
    %712 = vector.extract_strided_slice %705 {offsets = [48, 0], sizes = [8, 1], strides = [1, 1]} : vector<64x1xf32> to vector<8x1xf32>
    %713 = vector.extract_strided_slice %705 {offsets = [56, 0], sizes = [8, 1], strides = [1, 1]} : vector<64x1xf32> to vector<8x1xf32>
    %714 = tpu.concatenate %706, %707, %708, %709, %710, %711, %712, %713 in 1 : vector<8x1xf32>, vector<8x1xf32>, vector<8x1xf32>, vector<8x1xf32>, vector<8x1xf32>, vector<8x1xf32>, vector<8x1xf32>, vector<8x1xf32> -> vector<8x8xf32>
    %cst_117 = arith.constant dense<0xFF800000> : vector<8xf32>
    %715 = vector.multi_reduction <maximumf>, %714, %cst_117 [1] : vector<8x8xf32> to vector<8xf32>
    %716 = vector.shape_cast %715 : vector<8xf32> to vector<8x1xf32>
    %717 = vector.broadcast %716 : vector<8x1xf32> to vector<8x8xf32>
    %718 = arith.subf %714, %717 : vector<8x8xf32>
    %719 = math.exp %718 : vector<8x8xf32>
    %cst_118 = arith.constant dense<0.000000e+00> : vector<8xf32>
    %720 = vector.multi_reduction <add>, %719, %cst_118 [1] : vector<8x8xf32> to vector<8xf32>
    %721 = vector.shape_cast %720 : vector<8xf32> to vector<8x1xf32>
    %722 = vector.broadcast %721 : vector<8x1xf32> to vector<8x8xf32>
    %723 = arith.divf %719, %722 : vector<8x8xf32>
    %cst_119 = arith.constant 0.000000e+00 : f32
    %724 = vector.broadcast %cst_119 : f32 to vector<8x32xf32>
    %725 = vector.extract_strided_slice %723 {offsets = [0, 0], sizes = [8, 1], strides = [1, 1]} : vector<8x8xf32> to vector<8x1xf32>
    %726 = vector.broadcast %725 : vector<8x1xf32> to vector<8x32xf32>
    %727 = arith.mulf %726, %94 : vector<8x32xf32>
    %728 = arith.addf %724, %727 : vector<8x32xf32>
    %729 = vector.extract_strided_slice %723 {offsets = [0, 1], sizes = [8, 1], strides = [1, 1]} : vector<8x8xf32> to vector<8x1xf32>
    %730 = vector.broadcast %729 : vector<8x1xf32> to vector<8x32xf32>
    %731 = arith.mulf %730, %180 : vector<8x32xf32>
    %732 = arith.addf %728, %731 : vector<8x32xf32>
    %733 = vector.extract_strided_slice %723 {offsets = [0, 2], sizes = [8, 1], strides = [1, 1]} : vector<8x8xf32> to vector<8x1xf32>
    %734 = vector.broadcast %733 : vector<8x1xf32> to vector<8x32xf32>
    %735 = arith.mulf %734, %266 : vector<8x32xf32>
    %736 = arith.addf %732, %735 : vector<8x32xf32>
    %737 = vector.extract_strided_slice %723 {offsets = [0, 3], sizes = [8, 1], strides = [1, 1]} : vector<8x8xf32> to vector<8x1xf32>
    %738 = vector.broadcast %737 : vector<8x1xf32> to vector<8x32xf32>
    %739 = arith.mulf %738, %352 : vector<8x32xf32>
    %740 = arith.addf %736, %739 : vector<8x32xf32>
    %741 = vector.extract_strided_slice %723 {offsets = [0, 4], sizes = [8, 1], strides = [1, 1]} : vector<8x8xf32> to vector<8x1xf32>
    %742 = vector.broadcast %741 : vector<8x1xf32> to vector<8x32xf32>
    %743 = arith.mulf %742, %438 : vector<8x32xf32>
    %744 = arith.addf %740, %743 : vector<8x32xf32>
    %745 = vector.extract_strided_slice %723 {offsets = [0, 5], sizes = [8, 1], strides = [1, 1]} : vector<8x8xf32> to vector<8x1xf32>
    %746 = vector.broadcast %745 : vector<8x1xf32> to vector<8x32xf32>
    %747 = arith.mulf %746, %524 : vector<8x32xf32>
    %748 = arith.addf %744, %747 : vector<8x32xf32>
    %749 = vector.extract_strided_slice %723 {offsets = [0, 6], sizes = [8, 1], strides = [1, 1]} : vector<8x8xf32> to vector<8x1xf32>
    %750 = vector.broadcast %749 : vector<8x1xf32> to vector<8x32xf32>
    %751 = arith.mulf %750, %610 : vector<8x32xf32>
    %752 = arith.addf %748, %751 : vector<8x32xf32>
    %753 = vector.extract_strided_slice %723 {offsets = [0, 7], sizes = [8, 1], strides = [1, 1]} : vector<8x8xf32> to vector<8x1xf32>
    %754 = vector.broadcast %753 : vector<8x1xf32> to vector<8x32xf32>
    %755 = arith.mulf %754, %696 : vector<8x32xf32>
    %756 = arith.addf %752, %755 : vector<8x32xf32>
    %c0_120 = arith.constant 0 : index
    %c0_121 = arith.constant 0 : index
    %757 = vector.load %arg10[%c0_120, %c0_121] : memref<32x1xf32, #tpu.memory_space<vmem>>, vector<32x1xf32>
    %cst_122 = arith.constant dense<0.000000e+00> : vector<8x1xf32>
    %758 = tpu.matmul %756, %757, %cst_122 {dimension_numbers = #tpu.dot_dimension_numbers<[1], [0], [0], [1], [0, 0, 1, 1], [], []>} : vector<8x32xf32>, vector<32x1xf32>, vector<8x1xf32> -> vector<8x1xf32>
    %c0_123 = arith.constant 0 : index
    %c0_124 = arith.constant 0 : index
    %759 = vector.load %arg11[%c0_123, %c0_124] : memref<1x1xf32, #tpu.memory_space<vmem>>, vector<1x1xf32>
    %760 = vector.broadcast %759 : vector<1x1xf32> to vector<8x1xf32>
    %761 = arith.addf %758, %760 : vector<8x1xf32>
    %cst_125 = arith.constant 0.000000e+00 : f32
    %762 = vector.broadcast %cst_125 : f32 to vector<8x1xf32>
    %763 = arith.maximumf %761, %762 : vector<8x1xf32>
    %c0_126 = arith.constant 0 : index
    %c0_127 = arith.constant 0 : index
    %764 = vector.load %arg12[%c0_126, %c0_127] : memref<8x1xf32, #tpu.memory_space<vmem>>, vector<8x1xf32>
    tpu.vector_store %arg12[%c0_126, %c0_127], %763 {strides = array<i32>} : memref<8x1xf32, #tpu.memory_space<vmem>>, vector<8x1xf32>,
    return
  }
  func.func @transform_0(%arg0: i32) -> (i32, i32, i32) {
    %c0_i32 = arith.constant 0 : i32
    %c0_i32_0 = arith.constant 0 : i32
    %c0_i32_1 = arith.constant 0 : i32
    %c0_i32_2 = arith.constant 0 : i32
    return %c0_i32, %c0_i32_0, %c0_i32_1 : i32, i32, i32
  }
  func.func @transform_1(%arg0: i32) -> (i32, i32) {
    %c0_i32 = arith.constant 0 : i32
    %c0_i32_0 = arith.constant 0 : i32
    %c0_i32_1 = arith.constant 0 : i32
    return %c0_i32, %c0_i32_0 : i32, i32
  }
  func.func @transform_2(%arg0: i32) -> (i32, i32) {
    %c0_i32 = arith.constant 0 : i32
    %c0_i32_0 = arith.constant 0 : i32
    %c0_i32_1 = arith.constant 0 : i32
    return %c0_i32, %c0_i32_0 : i32, i32
  }
  func.func @transform_3(%arg0: i32) -> (i32, i32) {
    %c0_i32 = arith.constant 0 : i32
    %c0_i32_0 = arith.constant 0 : i32
    %c0_i32_1 = arith.constant 0 : i32
    return %c0_i32, %c0_i32_0 : i32, i32
  }
  func.func @transform_4(%arg0: i32) -> (i32, i32) {
    %c0_i32 = arith.constant 0 : i32
    %c0_i32_0 = arith.constant 0 : i32
    %c0_i32_1 = arith.constant 0 : i32
    return %c0_i32, %c0_i32_0 : i32, i32
  }
  func.func @transform_5(%arg0: i32) -> (i32, i32) {
    %c0_i32 = arith.constant 0 : i32
    %c0_i32_0 = arith.constant 0 : i32
    %c0_i32_1 = arith.constant 0 : i32
    return %c0_i32, %c0_i32_0 : i32, i32
  }
  func.func @transform_6(%arg0: i32) -> (i32, i32) {
    %c0_i32 = arith.constant 0 : i32
    %c0_i32_0 = arith.constant 0 : i32
    %c0_i32_1 = arith.constant 0 : i32
    return %c0_i32, %c0_i32_0 : i32, i32
  }
  func.func @transform_7(%arg0: i32) -> (i32, i32) {
    %c0_i32 = arith.constant 0 : i32
    %c0_i32_0 = arith.constant 0 : i32
    %c0_i32_1 = arith.constant 0 : i32
    return %c0_i32, %c0_i32_0 : i32, i32
  }
  func.func @transform_8(%arg0: i32) -> (i32, i32) {
    %c0_i32 = arith.constant 0 : i32
    %c0_i32_0 = arith.constant 0 : i32
    %c0_i32_1 = arith.constant 0 : i32
    return %c0_i32, %c0_i32_0 : i32, i32
  }
  func.func @transform_9(%arg0: i32) -> (i32, i32) {
    %c0_i32 = arith.constant 0 : i32
    %c0_i32_0 = arith.constant 0 : i32
    %c0_i32_1 = arith.constant 0 : i32
    return %c0_i32, %c0_i32_0 : i32, i32
  }
  func.func @transform_10(%arg0: i32) -> (i32, i32) {
    %c0_i32 = arith.constant 0 : i32
    %c0_i32_0 = arith.constant 0 : i32
    %c0_i32_1 = arith.constant 0 : i32
    return %c0_i32, %c0_i32_0 : i32, i32
  }
  func.func @transform_11(%arg0: i32) -> (i32, i32) {
    %c0_i32 = arith.constant 0 : i32
    %c0_i32_0 = arith.constant 0 : i32
    %c0_i32_1 = arith.constant 0 : i32
    return %c0_i32, %c0_i32_0 : i32, i32
  }
}

</mosaic_0001>

<llo_original>
// kernel: tpu_custom_call.1
$region0: #{tpu_custom_call.1}
  #allocation0 [shape = 'u32[]', space=smem, size = 0x4, offset = 0x4, fixed_abs, tag = 'smem constant byte address 0x4 - core index']
  #allocation1 [shape = 'u32[144,128]{1,0:T(1,128)}', space=vmem, size = 0x12000, scoped, tag = 'internal scratch']
  #allocation2 [shape = 'f32[1,1]{1,0:T(1,128)S(1)}', space=vmem, size = 0x200, scoped, tag = 'scoped memory for tpu_custom_call.1']
  %s0 = inlined_call_operand.hbm [shape: f32[8,8,512], index: 0, kind: input, shape index: {}]
  %s1 = inlined_call_operand.hbm [shape: f32[128,512], index: 1, kind: input, shape index: {}]
  %s2 = inlined_call_operand.hbm [shape: f32[160,384], index: 2, kind: input, shape index: {}]
  %s3 = inlined_call_operand.vmem [shape: f32[1,384], index: 3, kind: input, shape index: {}]
  %s4 = inlined_call_operand.vmem [shape: f32[32,128], index: 4, kind: input, shape index: {}]
  %s5 = inlined_call_operand.vmem [shape: f32[1,128], index: 5, kind: input, shape index: {}]
  %s6 = inlined_call_operand.vmem [shape: f32[32,32], index: 6, kind: input, shape index: {}]
  %s7 = inlined_call_operand.vmem [shape: f32[1,32], index: 7, kind: input, shape index: {}]
  %s8 = inlined_call_operand.vmem [shape: f32[32,1], index: 8, kind: input, shape index: {}]
  %s9 = inlined_call_operand.vmem [shape: f32[32,1], index: 9, kind: input, shape index: {}]
  %s10 = inlined_call_operand.<no memory space> [shape: f32[1,1], index: 10, kind: input, shape index: {}]
  %s11 = inlined_call_operand.vmem [shape: f32[8,1], index: 11, kind: output, shape index: {}]
  %s12 = sld [smem:[#allocation0]]
  $region66: #{tpu_custom_call.1} parent=0
    _
  %s14 = ssub.s32 1, %s12
  %s15 = scalar_select 0, %s14, %s12
  %v16 = vstv %s10
  %17 = vst [vmem:[#allocation2] sm:$0x1] %v16
  $region1: #{tpu_custom_call.1} parent=0
    #allocation3 [shape = 'u8[131072]{0}', space=vmem, size = 0x20000, scoped, tag = 'input window, operand 0, single buffered']
    #allocation4 [shape = 's32[1]{0}', space=sflag, size = 0x4, scoped, tag = 'scoped memory for tpu_custom_call.1']
    #allocation5 [shape = 'u8[262144]{0}', space=vmem, size = 0x40000, scoped, tag = 'input window, operand 1, single buffered']
    #allocation6 [shape = 's32[1]{0}', space=sflag, size = 0x4, scoped, tag = 'scoped memory for tpu_custom_call.1']
    #allocation7 [shape = 'u8[245760]{0}', space=vmem, size = 0x3c000, scoped, tag = 'input window, operand 2, single buffered']
    %18 = vsyncpa [#allocation4], 0
    %19 = vsyncpa [#allocation6], 0
    // Predicated region
    $region2: #{tpu_custom_call.1} parent=1 // pred_check
      _
    $region3: #{tpu_custom_call.1} parent=1 // pred_check_branch
      %21 = sbr.rel (0) target = $region5
    $region4: #{tpu_custom_call.1} parent=1 // pred_region
      %s23 = ssub.s32 4096, 4096
      %24 = vsyncadd [#allocation4], %s23
      %s25 = sshll.u32 [#allocation3], 4
      %s26 = int_to_ptr.vmem [resolvable:$true] %s25
      %31 = dma.hbm_to_vmem [thread:$0]  %s0, 4096, %s26, [#allocation4], 512, 512, 32
    $region5: #{tpu_custom_call.1} parent=1 // pred_fallthru
      _
    // Predicated region
    $region6: #{tpu_custom_call.1} parent=1 // pred_check
      _
    $region7: #{tpu_custom_call.1} parent=1 // pred_check_branch
      %33 = sbr.rel (0) target = $region9
    $region8: #{tpu_custom_call.1} parent=1 // pred_region
      %s35 = ssub.s32 8192, 8192
      %36 = vsyncadd [#allocation6], %s35
      %s37 = sshll.u32 [#allocation5], 4
      %s38 = int_to_ptr.vmem [resolvable:$true] %s37
      %43 = dma.hbm_to_vmem [thread:$0]  %s1, 8192, %s38, [#allocation6], 512, 512, 32
    $region9: #{tpu_custom_call.1} parent=1 // pred_fallthru
      _
    // Predicated region
    $region10: #{tpu_custom_call.1} parent=1 // pred_check
      _
    $region11: #{tpu_custom_call.1} parent=1 // pred_check_branch
      %45 = sbr.rel (0) target = $region13
    $region12: #{tpu_custom_call.1} parent=1 // pred_region
      %s47 = ssub.s32 7680, 7680
      %48 = vsyncadd [#allocation6], %s47
      %s49 = sshll.u32 [#allocation7], 4
      %s50 = int_to_ptr.vmem [resolvable:$true] %s49
      %55 = dma.hbm_to_vmem [thread:$0]  %s2, 7680, %s50, [#allocation6], 384, 384, 24
    $region13: #{tpu_custom_call.1} parent=1 // pred_fallthru
      _
    // Predicated region
    $region14: #{tpu_custom_call.1} parent=1 // pred_check
      _
    $region15: #{tpu_custom_call.1} parent=1 // pred_check_branch
      %57 = sbr.rel (0) target = $region17
    $region16: #{tpu_custom_call.1} parent=1 // pred_region
      _
    $region17: #{tpu_custom_call.1} parent=1 // pred_fallthru
      _
    // Predicated region
    $region18: #{tpu_custom_call.1} parent=1 // pred_check
      _
    $region19: #{tpu_custom_call.1} parent=1 // pred_check_branch
      %59 = sbr.rel (0) target = $region21
    $region20: #{tpu_custom_call.1} parent=1 // pred_region
      _
    $region21: #{tpu_custom_call.1} parent=1 // pred_fallthru
      _
    // Predicated region
    $region22: #{tpu_custom_call.1} parent=1 // pred_check
      _
    $region23: #{tpu_custom_call.1} parent=1 // pred_check_branch
      %61 = sbr.rel (0) target = $region25
    $region24: #{tpu_custom_call.1} parent=1 // pred_region
      _
    $region25: #{tpu_custom_call.1} parent=1 // pred_fallthru
      _
    // Predicated region
    $region26: #{tpu_custom_call.1} parent=1 // pred_check
      _
    $region27: #{tpu_custom_call.1} parent=1 // pred_check_branch
      %63 = sbr.rel (0) target = $region29
    $region28: #{tpu_custom_call.1} parent=1 // pred_region
      _
    $region29: #{tpu_custom_call.1} parent=1 // pred_fallthru
      _
    // Predicated region
    $region30: #{tpu_custom_call.1} parent=1 // pred_check
      _
    $region31: #{tpu_custom_call.1} parent=1 // pred_check_branch
      %65 = sbr.rel (0) target = $region33
    $region32: #{tpu_custom_call.1} parent=1 // pred_region
      _
    $region33: #{tpu_custom_call.1} parent=1 // pred_fallthru
      _
    // Predicated region
    $region34: #{tpu_custom_call.1} parent=1 // pred_check
      _
    $region35: #{tpu_custom_call.1} parent=1 // pred_check_branch
      %67 = sbr.rel (0) target = $region37
    $region36: #{tpu_custom_call.1} parent=1 // pred_region
      _
    $region37: #{tpu_custom_call.1} parent=1 // pred_fallthru
      _
    // Predicated region
    $region38: #{tpu_custom_call.1} parent=1 // pred_check
      _
    $region39: #{tpu_custom_call.1} parent=1 // pred_check_branch
      %69 = sbr.rel (0) target = $region41
    $region40: #{tpu_custom_call.1} parent=1 // pred_region
      _
    $region41: #{tpu_custom_call.1} parent=1 // pred_fallthru
      _
    // Predicated region
    $region42: #{tpu_custom_call.1} parent=1 // pred_check
      _
    $region43: #{tpu_custom_call.1} parent=1 // pred_check_branch
      %71 = sbr.rel (0) target = $region45
    $region44: #{tpu_custom_call.1} parent=1 // pred_region
      _
    $region45: #{tpu_custom_call.1} parent=1 // pred_fallthru
      _
    // Predicated region
    $region46: #{tpu_custom_call.1} parent=1 // pred_check
      _
    $region47: #{tpu_custom_call.1} parent=1 // pred_check_branch
      %73 = sbr.rel (0) target = $region49
    $region48: #{tpu_custom_call.1} parent=1 // pred_region
      %74 = dma.done [#allocation4], 4096
    $region49: #{tpu_custom_call.1} parent=1 // pred_fallthru
      _
    // Predicated region
    $region50: #{tpu_custom_call.1} parent=1 // pred_check
      _
    $region51: #{tpu_custom_call.1} parent=1 // pred_check_branch
      %76 = sbr.rel (0) target = $region53
    $region52: #{tpu_custom_call.1} parent=1 // pred_region
      %77 = dma.done [#allocation6], 8192
    $region53: #{tpu_custom_call.1} parent=1 // pred_fallthru
      _
    // Predicated region
    $region54: #{tpu_custom_call.1} parent=1 // pred_check
      _
    $region55: #{tpu_custom_call.1} parent=1 // pred_check_branch
      %79 = sbr.rel (0) target = $region57
    $region56: #{tpu_custom_call.1} parent=1 // pred_region
      %80 = dma.done [#allocation6], 7680
    $region57: #{tpu_custom_call.1} parent=1 // pred_fallthru
      _
    %v81 = vld [vmem:[#allocation5] sm:$0xff]
    %v82 = vld [vmem:[#allocation5 + $0x8] sm:$0xff]
    %v83 = vld [vmem:[#allocation5 + $0x10] sm:$0xff]
    %v84 = vld [vmem:[#allocation5 + $0x18] sm:$0xff]
    %v85 = vld [vmem:[#allocation5 + $0x20] sm:$0xff]
    %v86 = vld [vmem:[#allocation5 + $0x28] sm:$0xff]
    %v87 = vld [vmem:[#allocation5 + $0x30] sm:$0xff]
    %v88 = vld [vmem:[#allocation5 + $0x38] sm:$0xff]
    %v89 = vld [vmem:[#allocation5 + $0x40] sm:$0xff]
    %v90 = vld [vmem:[#allocation5 + $0x48] sm:$0xff]
    %v91 = vld [vmem:[#allocation5 + $0x50] sm:$0xff]
    %v92 = vld [vmem:[#allocation5 + $0x58] sm:$0xff]
    %v93 = vld [vmem:[#allocation5 + $0x60] sm:$0xff]
    %v94 = vld [vmem:[#allocation5 + $0x68] sm:$0xff]
    %v95 = vld [vmem:[#allocation5 + $0x70] sm:$0xff]
    %v96 = vld [vmem:[#allocation5 + $0x78] sm:$0xff]
    %v97 = vld [vmem:[#allocation5 + $0x80] sm:$0xff]
    %v98 = vld [vmem:[#allocation5 + $0x88] sm:$0xff]
    %v99 = vld [vmem:[#allocation5 + $0x90] sm:$0xff]
    %v100 = vld [vmem:[#allocation5 + $0x98] sm:$0xff]
    %v101 = vld [vmem:[#allocation5 + $0xa0] sm:$0xff]
    %v102 = vld [vmem:[#allocation5 + $0xa8] sm:$0xff]
    %v103 = vld [vmem:[#allocation5 + $0xb0] sm:$0xff]
    %v104 = vld [vmem:[#allocation5 + $0xb8] sm:$0xff]
    %v105 = vld [vmem:[#allocation5 + $0xc0] sm:$0xff]
    %v106 = vld [vmem:[#allocation5 + $0xc8] sm:$0xff]
    %v107 = vld [vmem:[#allocation5 + $0xd0] sm:$0xff]
    %v108 = vld [vmem:[#allocation5 + $0xd8] sm:$0xff]
    %v109 = vld [vmem:[#allocation5 + $0xe0] sm:$0xff]
    %v110 = vld [vmem:[#allocation5 + $0xe8] sm:$0xff]
    %v111 = vld [vmem:[#allocation5 + $0xf0] sm:$0xff]
    %v112 = vld [vmem:[#allocation5 + $0xf8] sm:$0xff]
    %v113 = vld [vmem:[#allocation5 + $0x100] sm:$0xff]
    %v114 = vld [vmem:[#allocation5 + $0x108] sm:$0xff]
    %v115 = vld [vmem:[#allocation5 + $0x110] sm:$0xff]
    %v116 = vld [vmem:[#allocation5 + $0x118] sm:$0xff]
    %v117 = vld [vmem:[#allocation5 + $0x120] sm:$0xff]
    %v118 = vld [vmem:[#allocation5 + $0x128] sm:$0xff]
    %v119 = vld [vmem:[#allocation5 + $0x130] sm:$0xff]
    %v120 = vld [vmem:[#allocation5 + $0x138] sm:$0xff]
    %v121 = vld [vmem:[#allocation5 + $0x140] sm:$0xff]
    %v122 = vld [vmem:[#allocation5 + $0x148] sm:$0xff]
    %v123 = vld [vmem:[#allocation5 + $0x150] sm:$0xff]
    %v124 = vld [vmem:[#allocation5 + $0x158] sm:$0xff]
    %v125 = vld [vmem:[#allocation5 + $0x160] sm:$0xff]
    %v126 = vld [vmem:[#allocation5 + $0x168] sm:$0xff]
    %v127 = vld [vmem:[#allocation5 + $0x170] sm:$0xff]
    %v128 = vld [vmem:[#allocation5 + $0x178] sm:$0xff]
    %v129 = vld [vmem:[#allocation5 + $0x180] sm:$0xff]
    %v130 = vld [vmem:[#allocation5 + $0x188] sm:$0xff]
    %v131 = vld [vmem:[#allocation5 + $0x190] sm:$0xff]
    %v132 = vld [vmem:[#allocation5 + $0x198] sm:$0xff]
    %v133 = vld [vmem:[#allocation5 + $0x1a0] sm:$0xff]
    %v134 = vld [vmem:[#allocation5 + $0x1a8] sm:$0xff]
    %v135 = vld [vmem:[#allocation5 + $0x1b0] sm:$0xff]
    %v136 = vld [vmem:[#allocation5 + $0x1b8] sm:$0xff]
    %v137 = vld [vmem:[#allocation5 + $0x1c0] sm:$0xff]
    %v138 = vld [vmem:[#allocation5 + $0x1c8] sm:$0xff]
    %v139 = vld [vmem:[#allocation5 + $0x1d0] sm:$0xff]
    %v140 = vld [vmem:[#allocation5 + $0x1d8] sm:$0xff]
    %v141 = vld [vmem:[#allocation5 + $0x1e0] sm:$0xff]
    %v142 = vld [vmem:[#allocation5 + $0x1e8] sm:$0xff]
    %v143 = vld [vmem:[#allocation5 + $0x1f0] sm:$0xff]
    %v144 = vld [vmem:[#allocation5 + $0x1f8] sm:$0xff]
    %v145 = vld [vmem:[#allocation7] sm:$0xff]
    %v146 = vld [vmem:[#allocation7 + $0x8] sm:$0xff]
    %v147 = vld [vmem:[#allocation7 + $0x10] sm:$0xff]
    %v148 = vld [vmem:[#allocation7 + $0x18] sm:$0xff]
    %v149 = vld [vmem:[#allocation7 + $0x20] sm:$0xff]
    %v150 = vld [vmem:[#allocation7 + $0x28] sm:$0xff]
    %v151 = vld [vmem:[#allocation7 + $0x30] sm:$0xff]
    %v152 = vld [vmem:[#allocation7 + $0x38] sm:$0xff]
    %v153 = vld [vmem:[#allocation7 + $0x40] sm:$0xff]
    %v154 = vld [vmem:[#allocation7 + $0x48] sm:$0xff]
    %v155 = vld [vmem:[#allocation7 + $0x50] sm:$0xff]
    %v156 = vld [vmem:[#allocation7 + $0x58] sm:$0xff]
    %v157 = vld [vmem:[#allocation7 + $0x60] sm:$0xff]
    %v158 = vld [vmem:[#allocation7 + $0x68] sm:$0xff]
    %v159 = vld [vmem:[#allocation7 + $0x70] sm:$0xff]
    %v160 = vld [vmem:[#allocation7 + $0x78] sm:$0xff]
    %v161 = vld [vmem:[#allocation7 + $0x80] sm:$0xff]
    %v162 = vld [vmem:[#allocation7 + $0x88] sm:$0xff]
    %v163 = vld [vmem:[#allocation7 + $0x90] sm:$0xff]
    %v164 = vld [vmem:[#allocation7 + $0x98] sm:$0xff]
    %v165 = vld [vmem:[#allocation7 + $0xa0] sm:$0xff]
    %v166 = vld [vmem:[#allocation7 + $0xa8] sm:$0xff]
    %v167 = vld [vmem:[#allocation7 + $0xb0] sm:$0xff]
    %v168 = vld [vmem:[#allocation7 + $0xb8] sm:$0xff]
    %v169 = vld [vmem:[#allocation7 + $0xc0] sm:$0xff]
    %v170 = vld [vmem:[#allocation7 + $0xc8] sm:$0xff]
    %v171 = vld [vmem:[#allocation7 + $0xd0] sm:$0xff]
    %v172 = vld [vmem:[#allocation7 + $0xd8] sm:$0xff]
    %v173 = vld [vmem:[#allocation7 + $0xe0] sm:$0xff]
    %v174 = vld [vmem:[#allocation7 + $0xe8] sm:$0xff]
    %v175 = vld [vmem:[#allocation7 + $0xf0] sm:$0xff]
    %v176 = vld [vmem:[#allocation7 + $0xf8] sm:$0xff]
    %v177 = vld [vmem:[#allocation7 + $0x100] sm:$0xff]
    %v178 = vld [vmem:[#allocation7 + $0x108] sm:$0xff]
    %v179 = vld [vmem:[#allocation7 + $0x110] sm:$0xff]
    %v180 = vld [vmem:[#allocation7 + $0x118] sm:$0xff]
    %v181 = vld [vmem:[#allocation7 + $0x120] sm:$0xff]
    %v182 = vld [vmem:[#allocation7 + $0x128] sm:$0xff]
    %v183 = vld [vmem:[#allocation7 + $0x130] sm:$0xff]
    %v184 = vld [vmem:[#allocation7 + $0x138] sm:$0xff]
    %v185 = vld [vmem:[#allocation7 + $0x140] sm:$0xff]
    %v186 = vld [vmem:[#allocation7 + $0x148] sm:$0xff]
    %v187 = vld [vmem:[#allocation7 + $0x150] sm:$0xff]
    %v188 = vld [vmem:[#allocation7 + $0x158] sm:$0xff]
    %v189 = vld [vmem:[#allocation7 + $0x160] sm:$0xff]
    %v190 = vld [vmem:[#allocation7 + $0x168] sm:$0xff]
    %v191 = vld [vmem:[#allocation7 + $0x170] sm:$0xff]
    %v192 = vld [vmem:[#allocation7 + $0x178] sm:$0xff]
    %v193 = vld [vmem:[#allocation7 + $0x180] sm:$0xff]
    %v194 = vld [vmem:[#allocation7 + $0x188] sm:$0xff]
    %v195 = vld [vmem:[#allocation7 + $0x190] sm:$0xff]
    %v196 = vld [vmem:[#allocation7 + $0x198] sm:$0xff]
    %v197 = vld [vmem:[#allocation7 + $0x1a0] sm:$0xff]
    %v198 = vld [vmem:[#allocation7 + $0x1a8] sm:$0xff]
    %v199 = vld [vmem:[#allocation7 + $0x1b0] sm:$0xff]
    %v200 = vld [vmem:[#allocation7 + $0x1b8] sm:$0xff]
    %v201 = vld [vmem:[#allocation7 + $0x1c0] sm:$0xff]
    %v202 = vld [vmem:[#allocation7 + $0x1c8] sm:$0xff]
    %v203 = vld [vmem:[#allocation7 + $0x1d0] sm:$0xff]
    %v204 = vld [vmem:[#allocation7 + $0x1d8] sm:$0xff]
    %v205 = vld [vmem:[%s3] sm:$0x7]
    %v206 = vld [vmem:[%s4] sm:$0xff]
    %v207 = vld [vmem:[%s4 + $0x8] sm:$0xff]
    %v208 = vld [vmem:[%s4 + $0x10] sm:$0xff]
    %v209 = vld [vmem:[%s4 + $0x18] sm:$0xff]
    %v210 = vld [vmem:[%s5] sm:$0x1]
    %v211 = vld [vmem:[#allocation3] sm:$0xff]
    %v212 = vld [vmem:[#allocation3 + $0x8] sm:$0xff]
    %v213 = vld [vmem:[#allocation3 + $0x10] sm:$0xff]
    %v214 = vld [vmem:[#allocation3 + $0x18] sm:$0xff]
    %215 = vmatprep.subr.mxu0 %v82
    %216 = vmatpush1.msra.mxu0 %v81
    %217 = vmatprep.subr.mxu0 %v86
    %218 = vmatpush1.msra.mxu0 %v85
    %219 = vmatprep.subr.mxu0 %v90
    %220 = vmatpush1.msra.mxu0 %v89
    %221 = vmatprep.subr.mxu0 %v94
    %222 = vmatpush1.msra.mxu0 %v93
    %223 = vmatprep.subr.mxu0 %v98
    %224 = vmatpush1.msra.mxu0 %v97
    %225 = vmatprep.subr.mxu0 %v102
    %226 = vmatpush1.msra.mxu0 %v101
    %227 = vmatprep.subr.mxu0 %v106
    %228 = vmatpush1.msra.mxu0 %v105
    %229 = vmatprep.subr.mxu0 %v110
    %230 = vmatpush1.msra.mxu0 %v109
    %231 = vmatprep.subr.mxu0 %v114
    %232 = vmatpush1.msra.mxu0 %v113
    %233 = vmatprep.subr.mxu0 %v118
    %234 = vmatpush1.msra.mxu0 %v117
    %235 = vmatprep.subr.mxu0 %v122
    %236 = vmatpush1.msra.mxu0 %v121
    %237 = vmatprep.subr.mxu0 %v126
    %238 = vmatpush1.msra.mxu0 %v125
    %239 = vmatprep.subr.mxu0 %v130
    %240 = vmatpush1.msra.mxu0 %v129
    %241 = vmatprep.subr.mxu0 %v134
    %242 = vmatpush1.msra.mxu0 %v133
    %243 = vmatprep.subr.mxu0 %v138
    %244 = vmatpush1.msra.mxu0 %v137
    %245 = vmatprep.subr.mxu0 %v142
    %246 = vmatpush1.msra.mxu0 %v141
    %247 = vmatprep.subr.mxu0 0.0
    %248 = vmatpush1.msra.mxu0 0.0
    %249 = vmatprep.subr.mxu0 0.0
    %250 = vmatpush1.msra.mxu0 0.0
    %251 = vmatprep.subr.mxu0 0.0
    %252 = vmatpush1.msra.mxu0 0.0
    %253 = vmatprep.subr.mxu0 0.0
    %254 = vmatpush1.msra.mxu0 0.0
    %255 = vmatprep.subr.mxu0 0.0
    %256 = vmatpush1.msra.mxu0 0.0
    %257 = vmatprep.subr.mxu0 0.0
    %258 = vmatpush1.msra.mxu0 0.0
    %259 = vmatprep.subr.mxu0 0.0
    %260 = vmatpush1.msra.mxu0 0.0
    %261 = vmatprep.subr.mxu0 0.0
    %262 = vmatpush1.msra.mxu0 0.0
    %263 = vmatprep.subr.mxu0 0.0
    %264 = vmatpush1.msra.mxu0 0.0
    %265 = vmatprep.subr.mxu0 0.0
    %266 = vmatpush1.msra.mxu0 0.0
    %267 = vmatprep.subr.mxu0 0.0
    %268 = vmatpush1.msra.mxu0 0.0
    %269 = vmatprep.subr.mxu0 0.0
    %270 = vmatpush1.msra.mxu0 0.0
    %271 = vmatprep.subr.mxu0 0.0
    %272 = vmatpush1.msra.mxu0 0.0
    %273 = vmatprep.subr.mxu0 0.0
    %274 = vmatpush1.msra.mxu0 0.0
    %275 = vmatprep.subr.mxu0 0.0
    %276 = vmatpush1.msra.mxu0 0.0
    %277 = vmatprep.subr.mxu0 0.0
    %278 = vmatpush1.msra.mxu0 0.0
    %279 = vmatprep.mubr.f32.mxu0 0.0
    %280 = vmatmul.mubr.f32.gmra.mrb[0].mxu0 0.0
    %v281 = vpop.f32.mrb[0].mxu0
    %v282 = vadd.f32 0.0, %v281
    %v283 = vpop.f32.mrb[0].mxu0
    %v284 = vadd.f32 0.0, %v283
    %285 = vdwg.mxu0
    %286 = vmatprep.subr.mxu0 %v84
    %287 = vmatpush1.msra.mxu0 %v83
    %288 = vmatprep.subr.mxu0 %v88
    %289 = vmatpush1.msra.mxu0 %v87
    %290 = vmatprep.subr.mxu0 %v92
    %291 = vmatpush1.msra.mxu0 %v91
    %292 = vmatprep.subr.mxu0 %v96
    %293 = vmatpush1.msra.mxu0 %v95
    %294 = vmatprep.subr.mxu0 %v100
    %295 = vmatpush1.msra.mxu0 %v99
    %296 = vmatprep.subr.mxu0 %v104
    %297 = vmatpush1.msra.mxu0 %v103
    %298 = vmatprep.subr.mxu0 %v108
    %299 = vmatpush1.msra.mxu0 %v107
    %300 = vmatprep.subr.mxu0 %v112
    %301 = vmatpush1.msra.mxu0 %v111
    %302 = vmatprep.subr.mxu0 %v116
    %303 = vmatpush1.msra.mxu0 %v115
    %304 = vmatprep.subr.mxu0 %v120
    %305 = vmatpush1.msra.mxu0 %v119
    %306 = vmatprep.subr.mxu0 %v124
    %307 = vmatpush1.msra.mxu0 %v123
    %308 = vmatprep.subr.mxu0 %v128
    %309 = vmatpush1.msra.mxu0 %v127
    %310 = vmatprep.subr.mxu0 %v132
    %311 = vmatpush1.msra.mxu0 %v131
    %312 = vmatprep.subr.mxu0 %v136
    %313 = vmatpush1.msra.mxu0 %v135
    %314 = vmatprep.subr.mxu0 %v140
    %315 = vmatpush1.msra.mxu0 %v139
    %316 = vmatprep.subr.mxu0 %v144
    %317 = vmatpush1.msra.mxu0 %v143
    %318 = vmatprep.subr.mxu0 0.0
    %319 = vmatpush1.msra.mxu0 0.0
    %320 = vmatprep.subr.mxu0 0.0
    %321 = vmatpush1.msra.mxu0 0.0
    %322 = vmatprep.subr.mxu0 0.0
    %323 = vmatpush1.msra.mxu0 0.0
    %324 = vmatprep.subr.mxu0 0.0
    %325 = vmatpush1.msra.mxu0 0.0
    %326 = vmatprep.subr.mxu0 0.0
    %327 = vmatpush1.msra.mxu0 0.0
    %328 = vmatprep.subr.mxu0 0.0
    %329 = vmatpush1.msra.mxu0 0.0
    %330 = vmatprep.subr.mxu0 0.0
    %331 = vmatpush1.msra.mxu0 0.0
    %332 = vmatprep.subr.mxu0 0.0
    %333 = vmatpush1.msra.mxu0 0.0
    %334 = vmatprep.subr.mxu0 0.0
    %335 = vmatpush1.msra.mxu0 0.0
    %336 = vmatprep.subr.mxu0 0.0
    %337 = vmatpush1.msra.mxu0 0.0
    %338 = vmatprep.subr.mxu0 0.0
    %339 = vmatpush1.msra.mxu0 0.0
    %340 = vmatprep.subr.mxu0 0.0
    %341 = vmatpush1.msra.mxu0 0.0
    %342 = vmatprep.subr.mxu0 0.0
    %343 = vmatpush1.msra.mxu0 0.0
    %344 = vmatprep.subr.mxu0 0.0
    %345 = vmatpush1.msra.mxu0 0.0
    %346 = vmatprep.subr.mxu0 0.0
    %347 = vmatpush1.msra.mxu0 0.0
    %348 = vmatprep.subr.mxu0 0.0
    %349 = vmatpush1.msra.mxu0 0.0
    %350 = vmatprep.mubr.f32.mxu0 0.0
    %351 = vmatmul.mubr.f32.gmra.mrb[0].mxu0 0.0
    %v352 = vpop.f32.mrb[0].mxu0
    %v353 = vadd.f32 0.0, %v352
    %v354 = vpop.f32.mrb[0].mxu0
    %v355 = vadd.f32 0.0, %v354
    %356 = vdwg.mxu0
    %v357 = vadd.f32 %v211, %v282
    %v358 = vadd.f32 %v212, %v284
    %v359 = vadd.f32 %v213, %v353
    %v360 = vadd.f32 %v214, %v355
    %v361 = vxor.u32 %v357, 2147483648
    %v362 = vmul.f32 %v361, 1.442695
    %v363 = vpow.pop %v362
    %v364 = vadd.f32 %v363, 1.0
    %v365 = vrcp.pop %v364
    %v366 = vmul.f32 1.0, %v365
    %v367 = vxor.u32 %v358, 2147483648
    %v368 = vmul.f32 %v367, 1.442695
    %v369 = vpow.pop %v368
    %v370 = vadd.f32 %v369, 1.0
    %v371 = vrcp.pop %v370
    %v372 = vmul.f32 1.0, %v371
    %v373 = vtanh.pop %v359
    %v374 = vxor.u32 %v360, 2147483648
    %v375 = vmul.f32 %v374, 1.442695
    %v376 = vpow.pop %v375
    %v377 = vadd.f32 %v376, 1.0
    %v378 = vrcp.pop %v377
    %v379 = vmul.f32 1.0, %v378
    %v380 = vmul.f32 %v372, 0.0
    %v381 = vmul.f32 %v366, %v373
    %v382 = vadd.f32 %v380, %v381
    %v383 = vtanh.pop %v382
    %v384 = vmul.f32 %v379, %v383
    %v386 = vlaneseq
    %v387 = vshrl.u32 %v386, 7
    %v388 = vsub.s32 0, %v387
    %v389 = vrot.slane %v205, %v388
    %v390 = vlaneseq
    %v391 = vshrl.u32 %v390, 7
    %v392 = vsub.s32 1, %v391
    %v393 = vrot.slane %v205, %v392
    %v394 = vlaneseq
    %v395 = vshrl.u32 %v394, 7
    %v396 = vsub.s32 2, %v395
    %v397 = vrot.slane %v205, %v396
    %vm401 = vcmask 261120
    %v403 = vsel %vm401, 0.0, 0
    %405 = vmatprep.subr.mxu0 %v146
    %406 = vmatpush1.msra.mxu0 %v145
    %407 = vmatprep.subr.mxu0 %v149
    %408 = vmatpush1.msra.mxu0 %v148
    %409 = vmatprep.subr.mxu0 %v152
    %410 = vmatpush1.msra.mxu0 %v151
    %411 = vmatprep.subr.mxu0 %v155
    %412 = vmatpush1.msra.mxu0 %v154
    %413 = vmatprep.subr.mxu0 %v158
    %414 = vmatpush1.msra.mxu0 %v157
    %415 = vmatprep.subr.mxu0 %v161
    %416 = vmatpush1.msra.mxu0 %v160
    %417 = vmatprep.subr.mxu0 %v164
    %418 = vmatpush1.msra.mxu0 %v163
    %419 = vmatprep.subr.mxu0 %v167
    %420 = vmatpush1.msra.mxu0 %v166
    %421 = vmatprep.subr.mxu0 %v170
    %422 = vmatpush1.msra.mxu0 %v169
    %423 = vmatprep.subr.mxu0 %v173
    %424 = vmatpush1.msra.mxu0 %v172
    %425 = vmatprep.subr.mxu0 %v176
    %426 = vmatpush1.msra.mxu0 %v175
    %427 = vmatprep.subr.mxu0 %v179
    %428 = vmatpush1.msra.mxu0 %v178
    %429 = vmatprep.subr.mxu0 %v182
    %430 = vmatpush1.msra.mxu0 %v181
    %431 = vmatprep.subr.mxu0 %v185
    %432 = vmatpush1.msra.mxu0 %v184
    %433 = vmatprep.subr.mxu0 %v188
    %434 = vmatpush1.msra.mxu0 %v187
    %435 = vmatprep.subr.mxu0 %v191
    %436 = vmatpush1.msra.mxu0 %v190
    %437 = vmatprep.subr.mxu0 %v194
    %438 = vmatpush1.msra.mxu0 %v193
    %439 = vmatprep.subr.mxu0 %v197
    %440 = vmatpush1.msra.mxu0 %v196
    %441 = vmatprep.subr.mxu0 %v200
    %442 = vmatpush1.msra.mxu0 %v199
    %443 = vmatprep.subr.mxu0 %v203
    %444 = vmatpush1.msra.mxu0 %v202
    %445 = vmatprep.subr.mxu0 0.0
    %446 = vmatpush1.msra.mxu0 0.0
    %447 = vmatprep.subr.mxu0 0.0
    %448 = vmatpush1.msra.mxu0 0.0
    %449 = vmatprep.subr.mxu0 0.0
    %450 = vmatpush1.msra.mxu0 0.0
    %451 = vmatprep.subr.mxu0 0.0
    %452 = vmatpush1.msra.mxu0 0.0
    %453 = vmatprep.subr.mxu0 0.0
    %454 = vmatpush1.msra.mxu0 0.0
    %455 = vmatprep.subr.mxu0 0.0
    %456 = vmatpush1.msra.mxu0 0.0
    %457 = vmatprep.subr.mxu0 0.0
    %458 = vmatpush1.msra.mxu0 0.0
    %459 = vmatprep.subr.mxu0 0.0
    %460 = vmatpush1.msra.mxu0 0.0
    %461 = vmatprep.subr.mxu0 0.0
    %462 = vmatpush1.msra.mxu0 0.0
    %463 = vmatprep.subr.mxu0 0.0
    %464 = vmatpush1.msra.mxu0 0.0
    %465 = vmatprep.subr.mxu0 0.0
    %466 = vmatpush1.msra.mxu0 0.0
    %467 = vmatprep.subr.mxu0 0.0
    %468 = vmatpush1.msra.mxu0 0.0
    %469 = vmatprep.mubr.f32.mxu0 %v403
    %470 = vmatmul.mubr.f32.gmra.mrb[0].mxu0 %v384
    %v471 = vpop.f32.mrb[0].mxu0
    %v472 = vadd.f32 %v389, %v471
    %v473 = vpop.f32.mrb[0].mxu0
    %v474 = vadd.f32 %v393, %v473
    %475 = vdwg.mxu0
    %476 = vmatprep.subr.mxu0 0.0
    %477 = vmatpush1.msra.mxu0 %v147
    %478 = vmatprep.subr.mxu0 0.0
    %479 = vmatpush1.msra.mxu0 %v150
    %480 = vmatprep.subr.mxu0 0.0
    %481 = vmatpush1.msra.mxu0 %v153
    %482 = vmatprep.subr.mxu0 0.0
    %483 = vmatpush1.msra.mxu0 %v156
    %484 = vmatprep.subr.mxu0 0.0
    %485 = vmatpush1.msra.mxu0 %v159
    %486 = vmatprep.subr.mxu0 0.0
    %487 = vmatpush1.msra.mxu0 %v162
    %488 = vmatprep.subr.mxu0 0.0
    %489 = vmatpush1.msra.mxu0 %v165
    %490 = vmatprep.subr.mxu0 0.0
    %491 = vmatpush1.msra.mxu0 %v168
    %492 = vmatprep.subr.mxu0 0.0
    %493 = vmatpush1.msra.mxu0 %v171
    %494 = vmatprep.subr.mxu0 0.0
    %495 = vmatpush1.msra.mxu0 %v174
    %496 = vmatprep.subr.mxu0 0.0
    %497 = vmatpush1.msra.mxu0 %v177
    %498 = vmatprep.subr.mxu0 0.0
    %499 = vmatpush1.msra.mxu0 %v180
    %500 = vmatprep.subr.mxu0 0.0
    %501 = vmatpush1.msra.mxu0 %v183
    %502 = vmatprep.subr.mxu0 0.0
    %503 = vmatpush1.msra.mxu0 %v186
    %504 = vmatprep.subr.mxu0 0.0
    %505 = vmatpush1.msra.mxu0 %v189
    %506 = vmatprep.subr.mxu0 0.0
    %507 = vmatpush1.msra.mxu0 %v192
    %508 = vmatprep.subr.mxu0 0.0
    %509 = vmatpush1.msra.mxu0 %v195
    %510 = vmatprep.subr.mxu0 0.0
    %511 = vmatpush1.msra.mxu0 %v198
    %512 = vmatprep.subr.mxu0 0.0
    %513 = vmatpush1.msra.mxu0 %v201
    %514 = vmatprep.subr.mxu0 0.0
    %515 = vmatpush1.msra.mxu0 %v204
    %516 = vmatprep.subr.mxu0 0.0
    %517 = vmatpush1.msra.mxu0 0.0
    %518 = vmatprep.subr.mxu0 0.0
    %519 = vmatpush1.msra.mxu0 0.0
    %520 = vmatprep.subr.mxu0 0.0
    %521 = vmatpush1.msra.mxu0 0.0
    %522 = vmatprep.subr.mxu0 0.0
    %523 = vmatpush1.msra.mxu0 0.0
    %524 = vmatprep.subr.mxu0 0.0
    %525 = vmatpush1.msra.mxu0 0.0
    %526 = vmatprep.subr.mxu0 0.0
    %527 = vmatpush1.msra.mxu0 0.0
    %528 = vmatprep.subr.mxu0 0.0
    %529 = vmatpush1.msra.mxu0 0.0
    %530 = vmatprep.subr.mxu0 0.0
    %531 = vmatpush1.msra.mxu0 0.0
    %532 = vmatprep.subr.mxu0 0.0
    %533 = vmatpush1.msra.mxu0 0.0
    %534 = vmatprep.subr.mxu0 0.0
    %535 = vmatpush1.msra.mxu0 0.0
    %536 = vmatprep.subr.mxu0 0.0
    %537 = vmatpush1.msra.mxu0 0.0
    %538 = vmatprep.subr.mxu0 0.0
    %539 = vmatpush1.msra.mxu0 0.0
    %540 = vmatprep.mubr.f32.mxu0 %v403
    %541 = vmatmul.mubr.f32.gmra.mrb[0].mxu0 %v384
    %v542 = vpop.f32.mrb[0].mxu0
    %v543 = vadd.f32 %v397, %v542
    %v544 = vpop.f32.mrb[0].mxu0
    %545 = vdwg.mxu0
    %v546 = vxor.u32 %v472, 2147483648
    %v547 = vxor.u32 %v474, 2147483648
    %v548 = vmul.f32 %v546, 1.442695
    %v549 = vpow.pop %v548
    %v550 = vmul.f32 %v547, 1.442695
    %v551 = vpow.pop %v550
    %v552 = vadd.f32 %v549, 1.0
    %v553 = vadd.f32 %v551, 1.0
    %v554 = vrcp.pop %v552
    %v555 = vmul.f32 1.0, %v554
    %v556 = vrcp.pop %v553
    %v557 = vmul.f32 1.0, %v556
    %v558 = vtanh.pop %v543
    %v559 = vmul.f32 %v557, %v558
    %v561 = vlaneseq
    %v562 = vshrl.u32 %v561, 7
    %v563 = vsub.s32 0, %v562
    %v564 = vrot.slane %v210, %v563
    %566 = vmatprep.subr.mxu0 0.0
    %567 = vmatpush1.msra.mxu0 %v206
    %568 = vmatprep.subr.mxu0 0.0
    %569 = vmatpush1.msra.mxu0 %v207
    %570 = vmatprep.subr.mxu0 0.0
    %571 = vmatpush1.msra.mxu0 %v208
    %572 = vmatprep.subr.mxu0 0.0
    %573 = vmatpush1.msra.mxu0 %v209
    %574 = vmatprep.subr.mxu0 0.0
    %575 = vmatpush1.msra.mxu0 0.0
    %576 = vmatprep.subr.mxu0 0.0
    %577 = vmatpush1.msra.mxu0 0.0
    %578 = vmatprep.subr.mxu0 0.0
    %579 = vmatpush1.msra.mxu0 0.0
    %580 = vmatprep.subr.mxu0 0.0
    %581 = vmatpush1.msra.mxu0 0.0
    %582 = vmatprep.subr.mxu0 0.0
    %583 = vmatpush1.msra.mxu0 0.0
    %584 = vmatprep.subr.mxu0 0.0
    %585 = vmatpush1.msra.mxu0 0.0
    %586 = vmatprep.subr.mxu0 0.0
    %587 = vmatpush1.msra.mxu0 0.0
    %588 = vmatprep.subr.mxu0 0.0
    %589 = vmatpush1.msra.mxu0 0.0
    %590 = vmatprep.subr.mxu0 0.0
    %591 = vmatpush1.msra.mxu0 0.0
    %592 = vmatprep.subr.mxu0 0.0
    %593 = vmatpush1.msra.mxu0 0.0
    %594 = vmatprep.subr.mxu0 0.0
    %595 = vmatpush1.msra.mxu0 0.0
    %596 = vmatprep.subr.mxu0 0.0
    %597 = vmatpush1.msra.mxu0 0.0
    %598 = vmatprep.subr.mxu0 0.0
    %599 = vmatpush1.msra.mxu0 0.0
    %600 = vmatprep.subr.mxu0 0.0
    %601 = vmatpush1.msra.mxu0 0.0
    %602 = vmatprep.subr.mxu0 0.0
    %603 = vmatpush1.msra.mxu0 0.0
    %604 = vmatprep.subr.mxu0 0.0
    %605 = vmatpush1.msra.mxu0 0.0
    %606 = vmatprep.subr.mxu0 0.0
    %607 = vmatpush1.msra.mxu0 0.0
    %608 = vmatprep.subr.mxu0 0.0
    %609 = vmatpush1.msra.mxu0 0.0
    %610 = vmatprep.subr.mxu0 0.0
    %611 = vmatpush1.msra.mxu0 0.0
    %612 = vmatprep.subr.mxu0 0.0
    %613 = vmatpush1.msra.mxu0 0.0
    %614 = vmatprep.subr.mxu0 0.0
    %615 = vmatpush1.msra.mxu0 0.0
    %616 = vmatprep.subr.mxu0 0.0
    %617 = vmatpush1.msra.mxu0 0.0
    %618 = vmatprep.subr.mxu0 0.0
    %619 = vmatpush1.msra.mxu0 0.0
    %620 = vmatprep.subr.mxu0 0.0
    %621 = vmatpush1.msra.mxu0 0.0
    %622 = vmatprep.subr.mxu0 0.0
    %623 = vmatpush1.msra.mxu0 0.0
    %624 = vmatprep.subr.mxu0 0.0
    %625 = vmatpush1.msra.mxu0 0.0
    %626 = vmatprep.subr.mxu0 0.0
    %627 = vmatpush1.msra.mxu0 0.0
    %628 = vmatprep.subr.mxu0 0.0
    %629 = vmatpush1.msra.mxu0 0.0
    %630 = vmatprep.mubr.f32.mxu0 0.0
    %631 = vmatmul.mubr.f32.gmra.mrb[0].mxu0 %v403
    %v632 = vpop.f32.mrb[0].mxu0
    %v633 = vadd.f32 %v564, %v632
    %v634 = vpop.f32.mrb[0].mxu0
    %635 = vdwg.mxu0
    %v636 = vtanh.pop %v633
    %v637 = vmul.f32 %v559, %v636
    %v638 = vsel %vm401, %v637, 0.0
    %639 = vadd.xlane.f32.xlu0 %v638
    %v640 = vpop.xlane.xlu0 %639
    %642 = vrot.lane.b32.xlu0 %v637, 96
    %v643 = vpop.permute.xlu0 %642
    %v645 = vsel %vm401, %v643, 0.0
    %646 = vadd.xlane.f32.xlu0 %v645
    %v647 = vpop.xlane.xlu0 %646
    %648 = vrot.lane.b32.xlu0 %v637, 64
    %v649 = vpop.permute.xlu0 %648
    %v651 = vsel %vm401, %v649, 0.0
    %652 = vadd.xlane.f32.xlu0 %v651
    %v653 = vpop.xlane.xlu0 %652
    %v654 = vmax.f32 %v640, %v647
    %v655 = vmax.f32 %v654, %v653
    %v656 = vsub.f32 %v640, %v655
    %v657 = vmul.f32 %v656, 1.442695
    %v658 = vpow.pop %v657
    %v659 = vsub.f32 %v647, %v655
    %v660 = vmul.f32 %v659, 1.442695
    %v661 = vpow.pop %v660
    %v662 = vsub.f32 %v653, %v655
    %v663 = vmul.f32 %v662, 1.442695
    %v664 = vpow.pop %v663
    %v665 = vadd.f32 %v658, %v661
    %v666 = vadd.f32 %v665, %v664
    %v667 = vmul.f32 %v658, %v559
    %v668 = vmul.f32 %v661, %v559
    %670 = vrot.lane.b32.xlu0 %v668, 96
    %v671 = vpop.permute.xlu0 %670
    %v673 = vadd.f32 %v667, %v671
    %v674 = vmul.f32 %v664, %v559
    %676 = vrot.lane.b32.xlu0 %v674, 64
    %v677 = vpop.permute.xlu0 %676
    %v679 = vadd.f32 %v673, %v677
    %v680 = vrcp.pop %v666
    %v681 = vmul.f32 %v679, %v680
    %v682 = vmul.f32 %v555, 0.0
    %v683 = vadd.f32 %v682, %v681
    %v684 = vtanh.pop %v683
    %686 = vrot.lane.b32.xlu0 %v684, 32
    %v687 = vpop.permute.xlu0 %686
    %v689 = vmul.f32 %v555, %v687
    %s690 = scalar_lea.vmem [#allocation3], 32
    %v691 = vld [vmem:[%s690] sm:$0xff]
    %v692 = vld [vmem:[%s690 + $0x8] sm:$0xff]
    %v693 = vld [vmem:[%s690 + $0x10] sm:$0xff]
    %v694 = vld [vmem:[%s690 + $0x18] sm:$0xff]
    %695 = vmatprep.subr.mxu0 %v82
    %696 = vmatpush1.msra.mxu0 %v81
    %697 = vmatprep.subr.mxu0 %v86
    %698 = vmatpush1.msra.mxu0 %v85
    %699 = vmatprep.subr.mxu0 %v90
    %700 = vmatpush1.msra.mxu0 %v89
    %701 = vmatprep.subr.mxu0 %v94
    %702 = vmatpush1.msra.mxu0 %v93
    %703 = vmatprep.subr.mxu0 %v98
    %704 = vmatpush1.msra.mxu0 %v97
    %705 = vmatprep.subr.mxu0 %v102
    %706 = vmatpush1.msra.mxu0 %v101
    %707 = vmatprep.subr.mxu0 %v106
    %708 = vmatpush1.msra.mxu0 %v105
    %709 = vmatprep.subr.mxu0 %v110
    %710 = vmatpush1.msra.mxu0 %v109
    %711 = vmatprep.subr.mxu0 %v114
    %712 = vmatpush1.msra.mxu0 %v113
    %713 = vmatprep.subr.mxu0 %v118
    %714 = vmatpush1.msra.mxu0 %v117
    %715 = vmatprep.subr.mxu0 %v122
    %716 = vmatpush1.msra.mxu0 %v121
    %717 = vmatprep.subr.mxu0 %v126
    %718 = vmatpush1.msra.mxu0 %v125
    %719 = vmatprep.subr.mxu0 %v130
    %720 = vmatpush1.msra.mxu0 %v129
    %721 = vmatprep.subr.mxu0 %v134
    %722 = vmatpush1.msra.mxu0 %v133
    %723 = vmatprep.subr.mxu0 %v138
    %724 = vmatpush1.msra.mxu0 %v137
    %725 = vmatprep.subr.mxu0 %v142
    %726 = vmatpush1.msra.mxu0 %v141
    %727 = vmatprep.subr.mxu0 0.0
    %728 = vmatpush1.msra.mxu0 0.0
    %729 = vmatprep.subr.mxu0 0.0
    %730 = vmatpush1.msra.mxu0 0.0
    %731 = vmatprep.subr.mxu0 0.0
    %732 = vmatpush1.msra.mxu0 0.0
    %733 = vmatprep.subr.mxu0 0.0
    %734 = vmatpush1.msra.mxu0 0.0
    %735 = vmatprep.subr.mxu0 0.0
    %736 = vmatpush1.msra.mxu0 0.0
    %737 = vmatprep.subr.mxu0 0.0
    %738 = vmatpush1.msra.mxu0 0.0
    %739 = vmatprep.subr.mxu0 0.0
    %740 = vmatpush1.msra.mxu0 0.0
    %741 = vmatprep.subr.mxu0 0.0
    %742 = vmatpush1.msra.mxu0 0.0
    %743 = vmatprep.subr.mxu0 0.0
    %744 = vmatpush1.msra.mxu0 0.0
    %745 = vmatprep.subr.mxu0 0.0
    %746 = vmatpush1.msra.mxu0 0.0
    %747 = vmatprep.subr.mxu0 0.0
    %748 = vmatpush1.msra.mxu0 0.0
    %749 = vmatprep.subr.mxu0 0.0
    %750 = vmatpush1.msra.mxu0 0.0
    %751 = vmatprep.subr.mxu0 0.0
    %752 = vmatpush1.msra.mxu0 0.0
    %753 = vmatprep.subr.mxu0 0.0
    %754 = vmatpush1.msra.mxu0 0.0
    %755 = vmatprep.subr.mxu0 0.0
    %756 = vmatpush1.msra.mxu0 0.0
    %757 = vmatprep.subr.mxu0 0.0
    %758 = vmatpush1.msra.mxu0 0.0
    %759 = vmatprep.mubr.f32.mxu0 0.0
    %760 = vmatmul.mubr.f32.gmra.mrb[0].mxu0 %v384
    %v761 = vpop.f32.mrb[0].mxu0
    %v762 = vadd.f32 0.0, %v761
    %v763 = vpop.f32.mrb[0].mxu0
    %v764 = vadd.f32 0.0, %v763
    %765 = vdwg.mxu0
    %766 = vmatprep.subr.mxu0 %v84
    %767 = vmatpush1.msra.mxu0 %v83
    %768 = vmatprep.subr.mxu0 %v88
    %769 = vmatpush1.msra.mxu0 %v87
    %770 = vmatprep.subr.mxu0 %v92
    %771 = vmatpush1.msra.mxu0 %v91
    %772 = vmatprep.subr.mxu0 %v96
    %773 = vmatpush1.msra.mxu0 %v95
    %774 = vmatprep.subr.mxu0 %v100
    %775 = vmatpush1.msra.mxu0 %v99
    %776 = vmatprep.subr.mxu0 %v104
    %777 = vmatpush1.msra.mxu0 %v103
    %778 = vmatprep.subr.mxu0 %v108
    %779 = vmatpush1.msra.mxu0 %v107
    %780 = vmatprep.subr.mxu0 %v112
    %781 = vmatpush1.msra.mxu0 %v111
    %782 = vmatprep.subr.mxu0 %v116
    %783 = vmatpush1.msra.mxu0 %v115
    %784 = vmatprep.subr.mxu0 %v120
    %785 = vmatpush1.msra.mxu0 %v119
    %786 = vmatprep.subr.mxu0 %v124
    %787 = vmatpush1.msra.mxu0 %v123
    %788 = vmatprep.subr.mxu0 %v128
    %789 = vmatpush1.msra.mxu0 %v127
    %790 = vmatprep.subr.mxu0 %v132
    %791 = vmatpush1.msra.mxu0 %v131
    %792 = vmatprep.subr.mxu0 %v136
    %793 = vmatpush1.msra.mxu0 %v135
    %794 = vmatprep.subr.mxu0 %v140
    %795 = vmatpush1.msra.mxu0 %v139
    %796 = vmatprep.subr.mxu0 %v144
    %797 = vmatpush1.msra.mxu0 %v143
    %798 = vmatprep.subr.mxu0 0.0
    %799 = vmatpush1.msra.mxu0 0.0
    %800 = vmatprep.subr.mxu0 0.0
    %801 = vmatpush1.msra.mxu0 0.0
    %802 = vmatprep.subr.mxu0 0.0
    %803 = vmatpush1.msra.mxu0 0.0
    %804 = vmatprep.subr.mxu0 0.0
    %805 = vmatpush1.msra.mxu0 0.0
    %806 = vmatprep.subr.mxu0 0.0
    %807 = vmatpush1.msra.mxu0 0.0
    %808 = vmatprep.subr.mxu0 0.0
    %809 = vmatpush1.msra.mxu0 0.0
    %810 = vmatprep.subr.mxu0 0.0
    %811 = vmatpush1.msra.mxu0 0.0
    %812 = vmatprep.subr.mxu0 0.0
    %813 = vmatpush1.msra.mxu0 0.0
    %814 = vmatprep.subr.mxu0 0.0
    %815 = vmatpush1.msra.mxu0 0.0
    %816 = vmatprep.subr.mxu0 0.0
    %817 = vmatpush1.msra.mxu0 0.0
    %818 = vmatprep.subr.mxu0 0.0
    %819 = vmatpush1.msra.mxu0 0.0
    %820 = vmatprep.subr.mxu0 0.0
    %821 = vmatpush1.msra.mxu0 0.0
    %822 = vmatprep.subr.mxu0 0.0
    %823 = vmatpush1.msra.mxu0 0.0
    %824 = vmatprep.subr.mxu0 0.0
    %825 = vmatpush1.msra.mxu0 0.0
    %826 = vmatprep.subr.mxu0 0.0
    %827 = vmatpush1.msra.mxu0 0.0
    %828 = vmatprep.subr.mxu0 0.0
    %829 = vmatpush1.msra.mxu0 0.0
    %830 = vmatprep.mubr.f32.mxu0 0.0
    %831 = vmatmul.mubr.f32.gmra.mrb[0].mxu0 %v384
    %v832 = vpop.f32.mrb[0].mxu0
    %v833 = vadd.f32 0.0, %v832
    %v834 = vpop.f32.mrb[0].mxu0
    %v835 = vadd.f32 0.0, %v834
    %836 = vdwg.mxu0
    %v837 = vadd.f32 %v691, %v762
    %v838 = vadd.f32 %v692, %v764
    %v839 = vadd.f32 %v693, %v833
    %v840 = vadd.f32 %v694, %v835
    %v841 = vxor.u32 %v837, 2147483648
    %v842 = vmul.f32 %v841, 1.442695
    %v843 = vpow.pop %v842
    %v844 = vadd.f32 %v843, 1.0
    %v845 = vrcp.pop %v844
    %v846 = vmul.f32 1.0, %v845
    %v847 = vxor.u32 %v838, 2147483648
    %v848 = vmul.f32 %v847, 1.442695
    %v849 = vpow.pop %v848
    %v850 = vadd.f32 %v849, 1.0
    %v851 = vrcp.pop %v850
    %v852 = vmul.f32 1.0, %v851
    %v853 = vtanh.pop %v839
    %v854 = vxor.u32 %v840, 2147483648
    %v855 = vmul.f32 %v854, 1.442695
    %v856 = vpow.pop %v855
    %v857 = vadd.f32 %v856, 1.0
    %v858 = vrcp.pop %v857
    %v859 = vmul.f32 1.0, %v858
    %v860 = vmul.f32 %v852, %v382
    %v861 = vmul.f32 %v846, %v853
    %v862 = vadd.f32 %v860, %v861
    %v863 = vtanh.pop %v862
    %v864 = vmul.f32 %v859, %v863
    %866 = vrot.lane.b32.xlu0 %v689, 96
    %v867 = vpop.permute.xlu0 %866
    %v868 = vsel %vm401, %v867, 0
    %870 = vmatprep.subr.mxu0 %v146
    %871 = vmatpush1.msra.mxu0 %v145
    %872 = vmatprep.subr.mxu0 %v149
    %873 = vmatpush1.msra.mxu0 %v148
    %874 = vmatprep.subr.mxu0 %v152
    %875 = vmatpush1.msra.mxu0 %v151
    %876 = vmatprep.subr.mxu0 %v155
    %877 = vmatpush1.msra.mxu0 %v154
    %878 = vmatprep.subr.mxu0 %v158
    %879 = vmatpush1.msra.mxu0 %v157
    %880 = vmatprep.subr.mxu0 %v161
    %881 = vmatpush1.msra.mxu0 %v160
    %882 = vmatprep.subr.mxu0 %v164
    %883 = vmatpush1.msra.mxu0 %v163
    %884 = vmatprep.subr.mxu0 %v167
    %885 = vmatpush1.msra.mxu0 %v166
    %886 = vmatprep.subr.mxu0 %v170
    %887 = vmatpush1.msra.mxu0 %v169
    %888 = vmatprep.subr.mxu0 %v173
    %889 = vmatpush1.msra.mxu0 %v172
    %890 = vmatprep.subr.mxu0 %v176
    %891 = vmatpush1.msra.mxu0 %v175
    %892 = vmatprep.subr.mxu0 %v179
    %893 = vmatpush1.msra.mxu0 %v178
    %894 = vmatprep.subr.mxu0 %v182
    %895 = vmatpush1.msra.mxu0 %v181
    %896 = vmatprep.subr.mxu0 %v185
    %897 = vmatpush1.msra.mxu0 %v184
    %898 = vmatprep.subr.mxu0 %v188
    %899 = vmatpush1.msra.mxu0 %v187
    %900 = vmatprep.subr.mxu0 %v191
    %901 = vmatpush1.msra.mxu0 %v190
    %902 = vmatprep.subr.mxu0 %v194
    %903 = vmatpush1.msra.mxu0 %v193
    %904 = vmatprep.subr.mxu0 %v197
    %905 = vmatpush1.msra.mxu0 %v196
    %906 = vmatprep.subr.mxu0 %v200
    %907 = vmatpush1.msra.mxu0 %v199
    %908 = vmatprep.subr.mxu0 %v203
    %909 = vmatpush1.msra.mxu0 %v202
    %910 = vmatprep.subr.mxu0 0.0
    %911 = vmatpush1.msra.mxu0 0.0
    %912 = vmatprep.subr.mxu0 0.0
    %913 = vmatpush1.msra.mxu0 0.0
    %914 = vmatprep.subr.mxu0 0.0
    %915 = vmatpush1.msra.mxu0 0.0
    %916 = vmatprep.subr.mxu0 0.0
    %917 = vmatpush1.msra.mxu0 0.0
    %918 = vmatprep.subr.mxu0 0.0
    %919 = vmatpush1.msra.mxu0 0.0
    %920 = vmatprep.subr.mxu0 0.0
    %921 = vmatpush1.msra.mxu0 0.0
    %922 = vmatprep.subr.mxu0 0.0
    %923 = vmatpush1.msra.mxu0 0.0
    %924 = vmatprep.subr.mxu0 0.0
    %925 = vmatpush1.msra.mxu0 0.0
    %926 = vmatprep.subr.mxu0 0.0
    %927 = vmatpush1.msra.mxu0 0.0
    %928 = vmatprep.subr.mxu0 0.0
    %929 = vmatpush1.msra.mxu0 0.0
    %930 = vmatprep.subr.mxu0 0.0
    %931 = vmatpush1.msra.mxu0 0.0
    %932 = vmatprep.subr.mxu0 0.0
    %933 = vmatpush1.msra.mxu0 0.0
    %934 = vmatprep.mubr.f32.mxu0 %v868
    %935 = vmatmul.mubr.f32.gmra.mrb[0].mxu0 %v864
    %v936 = vpop.f32.mrb[0].mxu0
    %v937 = vadd.f32 %v389, %v936
    %v938 = vpop.f32.mrb[0].mxu0
    %v939 = vadd.f32 %v393, %v938
    %940 = vdwg.mxu0
    %941 = vmatprep.subr.mxu0 0.0
    %942 = vmatpush1.msra.mxu0 %v147
    %943 = vmatprep.subr.mxu0 0.0
    %944 = vmatpush1.msra.mxu0 %v150
    %945 = vmatprep.subr.mxu0 0.0
    %946 = vmatpush1.msra.mxu0 %v153
    %947 = vmatprep.subr.mxu0 0.0
    %948 = vmatpush1.msra.mxu0 %v156
    %949 = vmatprep.subr.mxu0 0.0
    %950 = vmatpush1.msra.mxu0 %v159
    %951 = vmatprep.subr.mxu0 0.0
    %952 = vmatpush1.msra.mxu0 %v162
    %953 = vmatprep.subr.mxu0 0.0
    %954 = vmatpush1.msra.mxu0 %v165
    %955 = vmatprep.subr.mxu0 0.0
    %956 = vmatpush1.msra.mxu0 %v168
    %957 = vmatprep.subr.mxu0 0.0
    %958 = vmatpush1.msra.mxu0 %v171
    %959 = vmatprep.subr.mxu0 0.0
    %960 = vmatpush1.msra.mxu0 %v174
    %961 = vmatprep.subr.mxu0 0.0
    %962 = vmatpush1.msra.mxu0 %v177
    %963 = vmatprep.subr.mxu0 0.0
    %964 = vmatpush1.msra.mxu0 %v180
    %965 = vmatprep.subr.mxu0 0.0
    %966 = vmatpush1.msra.mxu0 %v183
    %967 = vmatprep.subr.mxu0 0.0
    %968 = vmatpush1.msra.mxu0 %v186
    %969 = vmatprep.subr.mxu0 0.0
    %970 = vmatpush1.msra.mxu0 %v189
    %971 = vmatprep.subr.mxu0 0.0
    %972 = vmatpush1.msra.mxu0 %v192
    %973 = vmatprep.subr.mxu0 0.0
    %974 = vmatpush1.msra.mxu0 %v195
    %975 = vmatprep.subr.mxu0 0.0
    %976 = vmatpush1.msra.mxu0 %v198
    %977 = vmatprep.subr.mxu0 0.0
    %978 = vmatpush1.msra.mxu0 %v201
    %979 = vmatprep.subr.mxu0 0.0
    %980 = vmatpush1.msra.mxu0 %v204
    %981 = vmatprep.subr.mxu0 0.0
    %982 = vmatpush1.msra.mxu0 0.0
    %983 = vmatprep.subr.mxu0 0.0
    %984 = vmatpush1.msra.mxu0 0.0
    %985 = vmatprep.subr.mxu0 0.0
    %986 = vmatpush1.msra.mxu0 0.0
    %987 = vmatprep.subr.mxu0 0.0
    %988 = vmatpush1.msra.mxu0 0.0
    %989 = vmatprep.subr.mxu0 0.0
    %990 = vmatpush1.msra.mxu0 0.0
    %991 = vmatprep.subr.mxu0 0.0
    %992 = vmatpush1.msra.mxu0 0.0
    %993 = vmatprep.subr.mxu0 0.0
    %994 = vmatpush1.msra.mxu0 0.0
    %995 = vmatprep.subr.mxu0 0.0
    %996 = vmatpush1.msra.mxu0 0.0
    %997 = vmatprep.subr.mxu0 0.0
    %998 = vmatpush1.msra.mxu0 0.0
    %999 = vmatprep.subr.mxu0 0.0
    %1000 = vmatpush1.msra.mxu0 0.0
    %1001 = vmatprep.subr.mxu0 0.0
    %1002 = vmatpush1.msra.mxu0 0.0
    %1003 = vmatprep.subr.mxu0 0.0
    %1004 = vmatpush1.msra.mxu0 0.0
    %1005 = vmatprep.mubr.f32.mxu0 %v868
    %1006 = vmatmul.mubr.f32.gmra.mrb[0].mxu0 %v864
    %v1007 = vpop.f32.mrb[0].mxu0
    %v1008 = vadd.f32 %v397, %v1007
    %v1009 = vpop.f32.mrb[0].mxu0
    %1010 = vdwg.mxu0
    %v1011 = vxor.u32 %v937, 2147483648
    %v1012 = vxor.u32 %v939, 2147483648
    %v1013 = vmul.f32 %v1011, 1.442695
    %v1014 = vpow.pop %v1013
    %v1015 = vmul.f32 %v1012, 1.442695
    %v1016 = vpow.pop %v1015
    %v1017 = vadd.f32 %v1014, 1.0
    %v1018 = vadd.f32 %v1016, 1.0
    %v1019 = vrcp.pop %v1017
    %v1020 = vmul.f32 1.0, %v1019
    %v1021 = vrcp.pop %v1018
    %v1022 = vmul.f32 1.0, %v1021
    %v1023 = vtanh.pop %v1008
    %v1024 = vmul.f32 %v1022, %v1023
    %v1026 = vsel %vm401, %v683, 0
    %1028 = vmatprep.subr.mxu0 0.0
    %1029 = vmatpush1.msra.mxu0 %v206
    %1030 = vmatprep.subr.mxu0 0.0
    %1031 = vmatpush1.msra.mxu0 %v207
    %1032 = vmatprep.subr.mxu0 0.0
    %1033 = vmatpush1.msra.mxu0 %v208
    %1034 = vmatprep.subr.mxu0 0.0
    %1035 = vmatpush1.msra.mxu0 %v209
    %1036 = vmatprep.subr.mxu0 0.0
    %1037 = vmatpush1.msra.mxu0 0.0
    %1038 = vmatprep.subr.mxu0 0.0
    %1039 = vmatpush1.msra.mxu0 0.0
    %1040 = vmatprep.subr.mxu0 0.0
    %1041 = vmatpush1.msra.mxu0 0.0
    %1042 = vmatprep.subr.mxu0 0.0
    %1043 = vmatpush1.msra.mxu0 0.0
    %1044 = vmatprep.subr.mxu0 0.0
    %1045 = vmatpush1.msra.mxu0 0.0
    %1046 = vmatprep.subr.mxu0 0.0
    %1047 = vmatpush1.msra.mxu0 0.0
    %1048 = vmatprep.subr.mxu0 0.0
    %1049 = vmatpush1.msra.mxu0 0.0
    %1050 = vmatprep.subr.mxu0 0.0
    %1051 = vmatpush1.msra.mxu0 0.0
    %1052 = vmatprep.subr.mxu0 0.0
    %1053 = vmatpush1.msra.mxu0 0.0
    %1054 = vmatprep.subr.mxu0 0.0
    %1055 = vmatpush1.msra.mxu0 0.0
    %1056 = vmatprep.subr.mxu0 0.0
    %1057 = vmatpush1.msra.mxu0 0.0
    %1058 = vmatprep.subr.mxu0 0.0
    %1059 = vmatpush1.msra.mxu0 0.0
    %1060 = vmatprep.subr.mxu0 0.0
    %1061 = vmatpush1.msra.mxu0 0.0
    %1062 = vmatprep.subr.mxu0 0.0
    %1063 = vmatpush1.msra.mxu0 0.0
    %1064 = vmatprep.subr.mxu0 0.0
    %1065 = vmatpush1.msra.mxu0 0.0
    %1066 = vmatprep.subr.mxu0 0.0
    %1067 = vmatpush1.msra.mxu0 0.0
    %1068 = vmatprep.subr.mxu0 0.0
    %1069 = vmatpush1.msra.mxu0 0.0
    %1070 = vmatprep.subr.mxu0 0.0
    %1071 = vmatpush1.msra.mxu0 0.0
    %1072 = vmatprep.subr.mxu0 0.0
    %1073 = vmatpush1.msra.mxu0 0.0
    %1074 = vmatprep.subr.mxu0 0.0
    %1075 = vmatpush1.msra.mxu0 0.0
    %1076 = vmatprep.subr.mxu0 0.0
    %1077 = vmatpush1.msra.mxu0 0.0
    %1078 = vmatprep.subr.mxu0 0.0
    %1079 = vmatpush1.msra.mxu0 0.0
    %1080 = vmatprep.subr.mxu0 0.0
    %1081 = vmatpush1.msra.mxu0 0.0
    %1082 = vmatprep.subr.mxu0 0.0
    %1083 = vmatpush1.msra.mxu0 0.0
    %1084 = vmatprep.subr.mxu0 0.0
    %1085 = vmatpush1.msra.mxu0 0.0
    %1086 = vmatprep.subr.mxu0 0.0
    %1087 = vmatpush1.msra.mxu0 0.0
    %1088 = vmatprep.subr.mxu0 0.0
    %1089 = vmatpush1.msra.mxu0 0.0
    %1090 = vmatprep.subr.mxu0 0.0
    %1091 = vmatpush1.msra.mxu0 0.0
    %1092 = vmatprep.mubr.f32.mxu0 0.0
    %1093 = vmatmul.mubr.f32.gmra.mrb[0].mxu0 %v1026
    %v1094 = vpop.f32.mrb[0].mxu0
    %v1095 = vadd.f32 %v564, %v1094
    %v1096 = vpop.f32.mrb[0].mxu0
    %1097 = vdwg.mxu0
    %v1098 = vtanh.pop %v1095
    %v1099 = vmul.f32 %v1024, %v1098
    %v1100 = vsel %vm401, %v1099, 0.0
    %1101 = vadd.xlane.f32.xlu0 %v1100
    %v1102 = vpop.xlane.xlu0 %1101
    %1104 = vrot.lane.b32.xlu0 %v1099, 96
    %v1105 = vpop.permute.xlu0 %1104
    %v1107 = vsel %vm401, %v1105, 0.0
    %1108 = vadd.xlane.f32.xlu0 %v1107
    %v1109 = vpop.xlane.xlu0 %1108
    %1110 = vrot.lane.b32.xlu0 %v1099, 64
    %v1111 = vpop.permute.xlu0 %1110
    %v1113 = vsel %vm401, %v1111, 0.0
    %1114 = vadd.xlane.f32.xlu0 %v1113
    %v1115 = vpop.xlane.xlu0 %1114
    %v1116 = vmax.f32 %v1102, %v1109
    %v1117 = vmax.f32 %v1116, %v1115
    %v1118 = vsub.f32 %v1102, %v1117
    %v1119 = vmul.f32 %v1118, 1.442695
    %v1120 = vpow.pop %v1119
    %v1121 = vsub.f32 %v1109, %v1117
    %v1122 = vmul.f32 %v1121, 1.442695
    %v1123 = vpow.pop %v1122
    %v1124 = vsub.f32 %v1115, %v1117
    %v1125 = vmul.f32 %v1124, 1.442695
    %v1126 = vpow.pop %v1125
    %v1127 = vadd.f32 %v1120, %v1123
    %v1128 = vadd.f32 %v1127, %v1126
    %v1129 = vmul.f32 %v1120, %v1024
    %v1130 = vmul.f32 %v1123, %v1024
    %1132 = vrot.lane.b32.xlu0 %v1130, 96
    %v1133 = vpop.permute.xlu0 %1132
    %v1135 = vadd.f32 %v1129, %v1133
    %v1136 = vmul.f32 %v1126, %v1024
    %1138 = vrot.lane.b32.xlu0 %v1136, 64
    %v1139 = vpop.permute.xlu0 %1138
    %v1141 = vadd.f32 %v1135, %v1139
    %v1142 = vrcp.pop %v1128
    %v1143 = vmul.f32 %v1141, %v1142
    %v1144 = vmul.f32 %v1020, %v683
    %v1145 = vadd.f32 %v1144, %v1143
    %v1146 = vtanh.pop %v1145
    %1148 = vrot.lane.b32.xlu0 %v1146, 32
    %v1149 = vpop.permute.xlu0 %1148
    %v1151 = vmul.f32 %v1020, %v1149
    %s1152 = scalar_lea.vmem [#allocation3], 64
    %v1153 = vld [vmem:[%s1152] sm:$0xff]
    %v1154 = vld [vmem:[%s1152 + $0x8] sm:$0xff]
    %v1155 = vld [vmem:[%s1152 + $0x10] sm:$0xff]
    %v1156 = vld [vmem:[%s1152 + $0x18] sm:$0xff]
    %1157 = vmatprep.subr.mxu0 %v82
    %1158 = vmatpush1.msra.mxu0 %v81
    %1159 = vmatprep.subr.mxu0 %v86
    %1160 = vmatpush1.msra.mxu0 %v85
    %1161 = vmatprep.subr.mxu0 %v90
    %1162 = vmatpush1.msra.mxu0 %v89
    %1163 = vmatprep.subr.mxu0 %v94
    %1164 = vmatpush1.msra.mxu0 %v93
    %1165 = vmatprep.subr.mxu0 %v98
    %1166 = vmatpush1.msra.mxu0 %v97
    %1167 = vmatprep.subr.mxu0 %v102
    %1168 = vmatpush1.msra.mxu0 %v101
    %1169 = vmatprep.subr.mxu0 %v106
    %1170 = vmatpush1.msra.mxu0 %v105
    %1171 = vmatprep.subr.mxu0 %v110
    %1172 = vmatpush1.msra.mxu0 %v109
    %1173 = vmatprep.subr.mxu0 %v114
    %1174 = vmatpush1.msra.mxu0 %v113
    %1175 = vmatprep.subr.mxu0 %v118
    %1176 = vmatpush1.msra.mxu0 %v117
    %1177 = vmatprep.subr.mxu0 %v122
    %1178 = vmatpush1.msra.mxu0 %v121
    %1179 = vmatprep.subr.mxu0 %v126
    %1180 = vmatpush1.msra.mxu0 %v125
    %1181 = vmatprep.subr.mxu0 %v130
    %1182 = vmatpush1.msra.mxu0 %v129
    %1183 = vmatprep.subr.mxu0 %v134
    %1184 = vmatpush1.msra.mxu0 %v133
    %1185 = vmatprep.subr.mxu0 %v138
    %1186 = vmatpush1.msra.mxu0 %v137
    %1187 = vmatprep.subr.mxu0 %v142
    %1188 = vmatpush1.msra.mxu0 %v141
    %1189 = vmatprep.subr.mxu0 0.0
    %1190 = vmatpush1.msra.mxu0 0.0
    %1191 = vmatprep.subr.mxu0 0.0
    %1192 = vmatpush1.msra.mxu0 0.0
    %1193 = vmatprep.subr.mxu0 0.0
    %1194 = vmatpush1.msra.mxu0 0.0
    %1195 = vmatprep.subr.mxu0 0.0
    %1196 = vmatpush1.msra.mxu0 0.0
    %1197 = vmatprep.subr.mxu0 0.0
    %1198 = vmatpush1.msra.mxu0 0.0
    %1199 = vmatprep.subr.mxu0 0.0
    %1200 = vmatpush1.msra.mxu0 0.0
    %1201 = vmatprep.subr.mxu0 0.0
    %1202 = vmatpush1.msra.mxu0 0.0
    %1203 = vmatprep.subr.mxu0 0.0
    %1204 = vmatpush1.msra.mxu0 0.0
    %1205 = vmatprep.subr.mxu0 0.0
    %1206 = vmatpush1.msra.mxu0 0.0
    %1207 = vmatprep.subr.mxu0 0.0
    %1208 = vmatpush1.msra.mxu0 0.0
    %1209 = vmatprep.subr.mxu0 0.0
    %1210 = vmatpush1.msra.mxu0 0.0
    %1211 = vmatprep.subr.mxu0 0.0
    %1212 = vmatpush1.msra.mxu0 0.0
    %1213 = vmatprep.subr.mxu0 0.0
    %1214 = vmatpush1.msra.mxu0 0.0
    %1215 = vmatprep.subr.mxu0 0.0
    %1216 = vmatpush1.msra.mxu0 0.0
    %1217 = vmatprep.subr.mxu0 0.0
    %1218 = vmatpush1.msra.mxu0 0.0
    %1219 = vmatprep.subr.mxu0 0.0
    %1220 = vmatpush1.msra.mxu0 0.0
    %1221 = vmatprep.mubr.f32.mxu0 0.0
    %1222 = vmatmul.mubr.f32.gmra.mrb[0].mxu0 %v864
    %v1223 = vpop.f32.mrb[0].mxu0
    %v1224 = vadd.f32 0.0, %v1223
    %v1225 = vpop.f32.mrb[0].mxu0
    %v1226 = vadd.f32 0.0, %v1225
    %1227 = vdwg.mxu0
    %1228 = vmatprep.subr.mxu0 %v84
    %1229 = vmatpush1.msra.mxu0 %v83
    %1230 = vmatprep.subr.mxu0 %v88
    %1231 = vmatpush1.msra.mxu0 %v87
    %1232 = vmatprep.subr.mxu0 %v92
    %1233 = vmatpush1.msra.mxu0 %v91
    %1234 = vmatprep.subr.mxu0 %v96
    %1235 = vmatpush1.msra.mxu0 %v95
    %1236 = vmatprep.subr.mxu0 %v100
    %1237 = vmatpush1.msra.mxu0 %v99
    %1238 = vmatprep.subr.mxu0 %v104
    %1239 = vmatpush1.msra.mxu0 %v103
    %1240 = vmatprep.subr.mxu0 %v108
    %1241 = vmatpush1.msra.mxu0 %v107
    %1242 = vmatprep.subr.mxu0 %v112
    %1243 = vmatpush1.msra.mxu0 %v111
    %1244 = vmatprep.subr.mxu0 %v116
    %1245 = vmatpush1.msra.mxu0 %v115
    %1246 = vmatprep.subr.mxu0 %v120
    %1247 = vmatpush1.msra.mxu0 %v119
    %1248 = vmatprep.subr.mxu0 %v124
    %1249 = vmatpush1.msra.mxu0 %v123
    %1250 = vmatprep.subr.mxu0 %v128
    %1251 = vmatpush1.msra.mxu0 %v127
    %1252 = vmatprep.subr.mxu0 %v132
    %1253 = vmatpush1.msra.mxu0 %v131
    %1254 = vmatprep.subr.mxu0 %v136
    %1255 = vmatpush1.msra.mxu0 %v135
    %1256 = vmatprep.subr.mxu0 %v140
    %1257 = vmatpush1.msra.mxu0 %v139
    %1258 = vmatprep.subr.mxu0 %v144
    %1259 = vmatpush1.msra.mxu0 %v143
    %1260 = vmatprep.subr.mxu0 0.0
    %1261 = vmatpush1.msra.mxu0 0.0
    %1262 = vmatprep.subr.mxu0 0.0
    %1263 = vmatpush1.msra.mxu0 0.0
    %1264 = vmatprep.subr.mxu0 0.0
    %1265 = vmatpush1.msra.mxu0 0.0
    %1266 = vmatprep.subr.mxu0 0.0
    %1267 = vmatpush1.msra.mxu0 0.0
    %1268 = vmatprep.subr.mxu0 0.0
    %1269 = vmatpush1.msra.mxu0 0.0
    %1270 = vmatprep.subr.mxu0 0.0
    %1271 = vmatpush1.msra.mxu0 0.0
    %1272 = vmatprep.subr.mxu0 0.0
    %1273 = vmatpush1.msra.mxu0 0.0
    %1274 = vmatprep.subr.mxu0 0.0
    %1275 = vmatpush1.msra.mxu0 0.0
    %1276 = vmatprep.subr.mxu0 0.0
    %1277 = vmatpush1.msra.mxu0 0.0
    %1278 = vmatprep.subr.mxu0 0.0
    %1279 = vmatpush1.msra.mxu0 0.0
    %1280 = vmatprep.subr.mxu0 0.0
    %1281 = vmatpush1.msra.mxu0 0.0
    %1282 = vmatprep.subr.mxu0 0.0
    %1283 = vmatpush1.msra.mxu0 0.0
    %1284 = vmatprep.subr.mxu0 0.0
    %1285 = vmatpush1.msra.mxu0 0.0
    %1286 = vmatprep.subr.mxu0 0.0
    %1287 = vmatpush1.msra.mxu0 0.0
    %1288 = vmatprep.subr.mxu0 0.0
    %1289 = vmatpush1.msra.mxu0 0.0
    %1290 = vmatprep.subr.mxu0 0.0
    %1291 = vmatpush1.msra.mxu0 0.0
    %1292 = vmatprep.mubr.f32.mxu0 0.0
    %1293 = vmatmul.mubr.f32.gmra.mrb[0].mxu0 %v864
    %v1294 = vpop.f32.mrb[0].mxu0
    %v1295 = vadd.f32 0.0, %v1294
    %v1296 = vpop.f32.mrb[0].mxu0
    %v1297 = vadd.f32 0.0, %v1296
    %1298 = vdwg.mxu0
    %v1299 = vadd.f32 %v1153, %v1224
    %v1300 = vadd.f32 %v1154, %v1226
    %v1301 = vadd.f32 %v1155, %v1295
    %v1302 = vadd.f32 %v1156, %v1297
    %v1303 = vxor.u32 %v1299, 2147483648
    %v1304 = vmul.f32 %v1303, 1.442695
    %v1305 = vpow.pop %v1304
    %v1306 = vadd.f32 %v1305, 1.0
    %v1307 = vrcp.pop %v1306
    %v1308 = vmul.f32 1.0, %v1307
    %v1309 = vxor.u32 %v1300, 2147483648
    %v1310 = vmul.f32 %v1309, 1.442695
    %v1311 = vpow.pop %v1310
    %v1312 = vadd.f32 %v1311, 1.0
    %v1313 = vrcp.pop %v1312
    %v1314 = vmul.f32 1.0, %v1313
    %v1315 = vtanh.pop %v1301
    %v1316 = vxor.u32 %v1302, 2147483648
    %v1317 = vmul.f32 %v1316, 1.442695
    %v1318 = vpow.pop %v1317
    %v1319 = vadd.f32 %v1318, 1.0
    %v1320 = vrcp.pop %v1319
    %v1321 = vmul.f32 1.0, %v1320
    %v1322 = vmul.f32 %v1314, %v862
    %v1323 = vmul.f32 %v1308, %v1315
    %v1324 = vadd.f32 %v1322, %v1323
    %v1325 = vtanh.pop %v1324
    %v1326 = vmul.f32 %v1321, %v1325
    %1328 = vrot.lane.b32.xlu0 %v1151, 96
    %v1329 = vpop.permute.xlu0 %1328
    %v1330 = vsel %vm401, %v1329, 0
    %1332 = vmatprep.subr.mxu0 %v146
    %1333 = vmatpush1.msra.mxu0 %v145
    %1334 = vmatprep.subr.mxu0 %v149
    %1335 = vmatpush1.msra.mxu0 %v148
    %1336 = vmatprep.subr.mxu0 %v152
    %1337 = vmatpush1.msra.mxu0 %v151
    %1338 = vmatprep.subr.mxu0 %v155
    %1339 = vmatpush1.msra.mxu0 %v154
    %1340 = vmatprep.subr.mxu0 %v158
    %1341 = vmatpush1.msra.mxu0 %v157
    %1342 = vmatprep.subr.mxu0 %v161
    %1343 = vmatpush1.msra.mxu0 %v160
    %1344 = vmatprep.subr.mxu0 %v164
    %1345 = vmatpush1.msra.mxu0 %v163
    %1346 = vmatprep.subr.mxu0 %v167
    %1347 = vmatpush1.msra.mxu0 %v166
    %1348 = vmatprep.subr.mxu0 %v170
    %1349 = vmatpush1.msra.mxu0 %v169
    %1350 = vmatprep.subr.mxu0 %v173
    %1351 = vmatpush1.msra.mxu0 %v172
    %1352 = vmatprep.subr.mxu0 %v176
    %1353 = vmatpush1.msra.mxu0 %v175
    %1354 = vmatprep.subr.mxu0 %v179
    %1355 = vmatpush1.msra.mxu0 %v178
    %1356 = vmatprep.subr.mxu0 %v182
    %1357 = vmatpush1.msra.mxu0 %v181
    %1358 = vmatprep.subr.mxu0 %v185
    %1359 = vmatpush1.msra.mxu0 %v184
    %1360 = vmatprep.subr.mxu0 %v188
    %1361 = vmatpush1.msra.mxu0 %v187
    %1362 = vmatprep.subr.mxu0 %v191
    %1363 = vmatpush1.msra.mxu0 %v190
    %1364 = vmatprep.subr.mxu0 %v194
    %1365 = vmatpush1.msra.mxu0 %v193
    %1366 = vmatprep.subr.mxu0 %v197
    %1367 = vmatpush1.msra.mxu0 %v196
    %1368 = vmatprep.subr.mxu0 %v200
    %1369 = vmatpush1.msra.mxu0 %v199
    %1370 = vmatprep.subr.mxu0 %v203
    %1371 = vmatpush1.msra.mxu0 %v202
    %1372 = vmatprep.subr.mxu0 0.0
    %1373 = vmatpush1.msra.mxu0 0.0
    %1374 = vmatprep.subr.mxu0 0.0
    %1375 = vmatpush1.msra.mxu0 0.0
    %1376 = vmatprep.subr.mxu0 0.0
    %1377 = vmatpush1.msra.mxu0 0.0
    %1378 = vmatprep.subr.mxu0 0.0
    %1379 = vmatpush1.msra.mxu0 0.0
    %1380 = vmatprep.subr.mxu0 0.0
    %1381 = vmatpush1.msra.mxu0 0.0
    %1382 = vmatprep.subr.mxu0 0.0
    %1383 = vmatpush1.msra.mxu0 0.0
    %1384 = vmatprep.subr.mxu0 0.0
    %1385 = vmatpush1.msra.mxu0 0.0
    %1386 = vmatprep.subr.mxu0 0.0
    %1387 = vmatpush1.msra.mxu0 0.0
    %1388 = vmatprep.subr.mxu0 0.0
    %1389 = vmatpush1.msra.mxu0 0.0
    %1390 = vmatprep.subr.mxu0 0.0
    %1391 = vmatpush1.msra.mxu0 0.0
    %1392 = vmatprep.subr.mxu0 0.0
    %1393 = vmatpush1.msra.mxu0 0.0
    %1394 = vmatprep.subr.mxu0 0.0
    %1395 = vmatpush1.msra.mxu0 0.0
    %1396 = vmatprep.mubr.f32.mxu0 %v1330
    %1397 = vmatmul.mubr.f32.gmra.mrb[0].mxu0 %v1326
    %v1398 = vpop.f32.mrb[0].mxu0
    %v1399 = vadd.f32 %v389, %v1398
    %v1400 = vpop.f32.mrb[0].mxu0
    %v1401 = vadd.f32 %v393, %v1400
    %1402 = vdwg.mxu0
    %1403 = vmatprep.subr.mxu0 0.0
    %1404 = vmatpush1.msra.mxu0 %v147
    %1405 = vmatprep.subr.mxu0 0.0
    %1406 = vmatpush1.msra.mxu0 %v150
    %1407 = vmatprep.subr.mxu0 0.0
    %1408 = vmatpush1.msra.mxu0 %v153
    %1409 = vmatprep.subr.mxu0 0.0
    %1410 = vmatpush1.msra.mxu0 %v156
    %1411 = vmatprep.subr.mxu0 0.0
    %1412 = vmatpush1.msra.mxu0 %v159
    %1413 = vmatprep.subr.mxu0 0.0
    %1414 = vmatpush1.msra.mxu0 %v162
    %1415 = vmatprep.subr.mxu0 0.0
    %1416 = vmatpush1.msra.mxu0 %v165
    %1417 = vmatprep.subr.mxu0 0.0
    %1418 = vmatpush1.msra.mxu0 %v168
    %1419 = vmatprep.subr.mxu0 0.0
    %1420 = vmatpush1.msra.mxu0 %v171
    %1421 = vmatprep.subr.mxu0 0.0
    %1422 = vmatpush1.msra.mxu0 %v174
    %1423 = vmatprep.subr.mxu0 0.0
    %1424 = vmatpush1.msra.mxu0 %v177
    %1425 = vmatprep.subr.mxu0 0.0
    %1426 = vmatpush1.msra.mxu0 %v180
    %1427 = vmatprep.subr.mxu0 0.0
    %1428 = vmatpush1.msra.mxu0 %v183
    %1429 = vmatprep.subr.mxu0 0.0
    %1430 = vmatpush1.msra.mxu0 %v186
    %1431 = vmatprep.subr.mxu0 0.0
    %1432 = vmatpush1.msra.mxu0 %v189
    %1433 = vmatprep.subr.mxu0 0.0
    %1434 = vmatpush1.msra.mxu0 %v192
    %1435 = vmatprep.subr.mxu0 0.0
    %1436 = vmatpush1.msra.mxu0 %v195
    %1437 = vmatprep.subr.mxu0 0.0
    %1438 = vmatpush1.msra.mxu0 %v198
    %1439 = vmatprep.subr.mxu0 0.0
    %1440 = vmatpush1.msra.mxu0 %v201
    %1441 = vmatprep.subr.mxu0 0.0
    %1442 = vmatpush1.msra.mxu0 %v204
    %1443 = vmatprep.subr.mxu0 0.0
    %1444 = vmatpush1.msra.mxu0 0.0
    %1445 = vmatprep.subr.mxu0 0.0
    %1446 = vmatpush1.msra.mxu0 0.0
    %1447 = vmatprep.subr.mxu0 0.0
    %1448 = vmatpush1.msra.mxu0 0.0
    %1449 = vmatprep.subr.mxu0 0.0
    %1450 = vmatpush1.msra.mxu0 0.0
    %1451 = vmatprep.subr.mxu0 0.0
    %1452 = vmatpush1.msra.mxu0 0.0
    %1453 = vmatprep.subr.mxu0 0.0
    %1454 = vmatpush1.msra.mxu0 0.0
    %1455 = vmatprep.subr.mxu0 0.0
    %1456 = vmatpush1.msra.mxu0 0.0
    %1457 = vmatprep.subr.mxu0 0.0
    %1458 = vmatpush1.msra.mxu0 0.0
    %1459 = vmatprep.subr.mxu0 0.0
    %1460 = vmatpush1.msra.mxu0 0.0
    %1461 = vmatprep.subr.mxu0 0.0
    %1462 = vmatpush1.msra.mxu0 0.0
    %1463 = vmatprep.subr.mxu0 0.0
    %1464 = vmatpush1.msra.mxu0 0.0
    %1465 = vmatprep.subr.mxu0 0.0
    %1466 = vmatpush1.msra.mxu0 0.0
    %1467 = vmatprep.mubr.f32.mxu0 %v1330
    %1468 = vmatmul.mubr.f32.gmra.mrb[0].mxu0 %v1326
    %v1469 = vpop.f32.mrb[0].mxu0
    %v1470 = vadd.f32 %v397, %v1469
    %v1471 = vpop.f32.mrb[0].mxu0
    %1472 = vdwg.mxu0
    %v1473 = vxor.u32 %v1399, 2147483648
    %v1474 = vxor.u32 %v1401, 2147483648
    %v1475 = vmul.f32 %v1473, 1.442695
    %v1476 = vpow.pop %v1475
    %v1477 = vmul.f32 %v1474, 1.442695
    %v1478 = vpow.pop %v1477
    %v1479 = vadd.f32 %v1476, 1.0
    %v1480 = vadd.f32 %v1478, 1.0
    %v1481 = vrcp.pop %v1479
    %v1482 = vmul.f32 1.0, %v1481
    %v1483 = vrcp.pop %v1480
    %v1484 = vmul.f32 1.0, %v1483
    %v1485 = vtanh.pop %v1470
    %v1486 = vmul.f32 %v1484, %v1485
    %v1488 = vsel %vm401, %v1145, 0
    %1490 = vmatprep.subr.mxu0 0.0
    %1491 = vmatpush1.msra.mxu0 %v206
    %1492 = vmatprep.subr.mxu0 0.0
    %1493 = vmatpush1.msra.mxu0 %v207
    %1494 = vmatprep.subr.mxu0 0.0
    %1495 = vmatpush1.msra.mxu0 %v208
    %1496 = vmatprep.subr.mxu0 0.0
    %1497 = vmatpush1.msra.mxu0 %v209
    %1498 = vmatprep.subr.mxu0 0.0
    %1499 = vmatpush1.msra.mxu0 0.0
    %1500 = vmatprep.subr.mxu0 0.0
    %1501 = vmatpush1.msra.mxu0 0.0
    %1502 = vmatprep.subr.mxu0 0.0
    %1503 = vmatpush1.msra.mxu0 0.0
    %1504 = vmatprep.subr.mxu0 0.0
    %1505 = vmatpush1.msra.mxu0 0.0
    %1506 = vmatprep.subr.mxu0 0.0
    %1507 = vmatpush1.msra.mxu0 0.0
    %1508 = vmatprep.subr.mxu0 0.0
    %1509 = vmatpush1.msra.mxu0 0.0
    %1510 = vmatprep.subr.mxu0 0.0
    %1511 = vmatpush1.msra.mxu0 0.0
    %1512 = vmatprep.subr.mxu0 0.0
    %1513 = vmatpush1.msra.mxu0 0.0
    %1514 = vmatprep.subr.mxu0 0.0
    %1515 = vmatpush1.msra.mxu0 0.0
    %1516 = vmatprep.subr.mxu0 0.0
    %1517 = vmatpush1.msra.mxu0 0.0
    %1518 = vmatprep.subr.mxu0 0.0
    %1519 = vmatpush1.msra.mxu0 0.0
    %1520 = vmatprep.subr.mxu0 0.0
    %1521 = vmatpush1.msra.mxu0 0.0
    %1522 = vmatprep.subr.mxu0 0.0
    %1523 = vmatpush1.msra.mxu0 0.0
    %1524 = vmatprep.subr.mxu0 0.0
    %1525 = vmatpush1.msra.mxu0 0.0
    %1526 = vmatprep.subr.mxu0 0.0
    %1527 = vmatpush1.msra.mxu0 0.0
    %1528 = vmatprep.subr.mxu0 0.0
    %1529 = vmatpush1.msra.mxu0 0.0
    %1530 = vmatprep.subr.mxu0 0.0
    %1531 = vmatpush1.msra.mxu0 0.0
    %1532 = vmatprep.subr.mxu0 0.0
    %1533 = vmatpush1.msra.mxu0 0.0
    %1534 = vmatprep.subr.mxu0 0.0
    %1535 = vmatpush1.msra.mxu0 0.0
    %1536 = vmatprep.subr.mxu0 0.0
    %1537 = vmatpush1.msra.mxu0 0.0
    %1538 = vmatprep.subr.mxu0 0.0
    %1539 = vmatpush1.msra.mxu0 0.0
    %1540 = vmatprep.subr.mxu0 0.0
    %1541 = vmatpush1.msra.mxu0 0.0
    %1542 = vmatprep.subr.mxu0 0.0
    %1543 = vmatpush1.msra.mxu0 0.0
    %1544 = vmatprep.subr.mxu0 0.0
    %1545 = vmatpush1.msra.mxu0 0.0
    %1546 = vmatprep.subr.mxu0 0.0
    %1547 = vmatpush1.msra.mxu0 0.0
    %1548 = vmatprep.subr.mxu0 0.0
    %1549 = vmatpush1.msra.mxu0 0.0
    %1550 = vmatprep.subr.mxu0 0.0
    %1551 = vmatpush1.msra.mxu0 0.0
    %1552 = vmatprep.subr.mxu0 0.0
    %1553 = vmatpush1.msra.mxu0 0.0
    %1554 = vmatprep.mubr.f32.mxu0 0.0
    %1555 = vmatmul.mubr.f32.gmra.mrb[0].mxu0 %v1488
    %v1556 = vpop.f32.mrb[0].mxu0
    %v1557 = vadd.f32 %v564, %v1556
    %v1558 = vpop.f32.mrb[0].mxu0
    %1559 = vdwg.mxu0
    %v1560 = vtanh.pop %v1557
    %v1561 = vmul.f32 %v1486, %v1560
    %v1562 = vsel %vm401, %v1561, 0.0
    %1563 = vadd.xlane.f32.xlu0 %v1562
    %v1564 = vpop.xlane.xlu0 %1563
    %1566 = vrot.lane.b32.xlu0 %v1561, 96
    %v1567 = vpop.permute.xlu0 %1566
    %v1569 = vsel %vm401, %v1567, 0.0
    %1570 = vadd.xlane.f32.xlu0 %v1569
    %v1571 = vpop.xlane.xlu0 %1570
    %1572 = vrot.lane.b32.xlu0 %v1561, 64
    %v1573 = vpop.permute.xlu0 %1572
    %v1575 = vsel %vm401, %v1573, 0.0
    %1576 = vadd.xlane.f32.xlu0 %v1575
    %v1577 = vpop.xlane.xlu0 %1576
    %v1578 = vmax.f32 %v1564, %v1571
    %v1579 = vmax.f32 %v1578, %v1577
    %v1580 = vsub.f32 %v1564, %v1579
    %v1581 = vmul.f32 %v1580, 1.442695
    %v1582 = vpow.pop %v1581
    %v1583 = vsub.f32 %v1571, %v1579
    %v1584 = vmul.f32 %v1583, 1.442695
    %v1585 = vpow.pop %v1584
    %v1586 = vsub.f32 %v1577, %v1579
    %v1587 = vmul.f32 %v1586, 1.442695
    %v1588 = vpow.pop %v1587
    %v1589 = vadd.f32 %v1582, %v1585
    %v1590 = vadd.f32 %v1589, %v1588
    %v1591 = vmul.f32 %v1582, %v1486
    %v1592 = vmul.f32 %v1585, %v1486
    %1594 = vrot.lane.b32.xlu0 %v1592, 96
    %v1595 = vpop.permute.xlu0 %1594
    %v1597 = vadd.f32 %v1591, %v1595
    %v1598 = vmul.f32 %v1588, %v1486
    %1600 = vrot.lane.b32.xlu0 %v1598, 64
    %v1601 = vpop.permute.xlu0 %1600
    %v1603 = vadd.f32 %v1597, %v1601
    %v1604 = vrcp.pop %v1590
    %v1605 = vmul.f32 %v1603, %v1604
    %v1606 = vmul.f32 %v1482, %v1145
    %v1607 = vadd.f32 %v1606, %v1605
    %v1608 = vtanh.pop %v1607
    %1610 = vrot.lane.b32.xlu0 %v1608, 32
    %v1611 = vpop.permute.xlu0 %1610
    %v1613 = vmul.f32 %v1482, %v1611
    %s1614 = scalar_lea.vmem [#allocation3], 96
    %v1615 = vld [vmem:[%s1614] sm:$0xff]
    %v1616 = vld [vmem:[%s1614 + $0x8] sm:$0xff]
    %v1617 = vld [vmem:[%s1614 + $0x10] sm:$0xff]
    %v1618 = vld [vmem:[%s1614 + $0x18] sm:$0xff]
    %1619 = vmatprep.subr.mxu0 %v82
    %1620 = vmatpush1.msra.mxu0 %v81
    %1621 = vmatprep.subr.mxu0 %v86
    %1622 = vmatpush1.msra.mxu0 %v85
    %1623 = vmatprep.subr.mxu0 %v90
    %1624 = vmatpush1.msra.mxu0 %v89
    %1625 = vmatprep.subr.mxu0 %v94
    %1626 = vmatpush1.msra.mxu0 %v93
    %1627 = vmatprep.subr.mxu0 %v98
    %1628 = vmatpush1.msra.mxu0 %v97
    %1629 = vmatprep.subr.mxu0 %v102
    %1630 = vmatpush1.msra.mxu0 %v101
    %1631 = vmatprep.subr.mxu0 %v106
    %1632 = vmatpush1.msra.mxu0 %v105
    %1633 = vmatprep.subr.mxu0 %v110
    %1634 = vmatpush1.msra.mxu0 %v109
    %1635 = vmatprep.subr.mxu0 %v114
    %1636 = vmatpush1.msra.mxu0 %v113
    %1637 = vmatprep.subr.mxu0 %v118
    %1638 = vmatpush1.msra.mxu0 %v117
    %1639 = vmatprep.subr.mxu0 %v122
    %1640 = vmatpush1.msra.mxu0 %v121
    %1641 = vmatprep.subr.mxu0 %v126
    %1642 = vmatpush1.msra.mxu0 %v125
    %1643 = vmatprep.subr.mxu0 %v130
    %1644 = vmatpush1.msra.mxu0 %v129
    %1645 = vmatprep.subr.mxu0 %v134
    %1646 = vmatpush1.msra.mxu0 %v133
    %1647 = vmatprep.subr.mxu0 %v138
    %1648 = vmatpush1.msra.mxu0 %v137
    %1649 = vmatprep.subr.mxu0 %v142
    %1650 = vmatpush1.msra.mxu0 %v141
    %1651 = vmatprep.subr.mxu0 0.0
    %1652 = vmatpush1.msra.mxu0 0.0
    %1653 = vmatprep.subr.mxu0 0.0
    %1654 = vmatpush1.msra.mxu0 0.0
    %1655 = vmatprep.subr.mxu0 0.0
    %1656 = vmatpush1.msra.mxu0 0.0
    %1657 = vmatprep.subr.mxu0 0.0
    %1658 = vmatpush1.msra.mxu0 0.0
    %1659 = vmatprep.subr.mxu0 0.0
    %1660 = vmatpush1.msra.mxu0 0.0
    %1661 = vmatprep.subr.mxu0 0.0
    %1662 = vmatpush1.msra.mxu0 0.0
    %1663 = vmatprep.subr.mxu0 0.0
    %1664 = vmatpush1.msra.mxu0 0.0
    %1665 = vmatprep.subr.mxu0 0.0
    %1666 = vmatpush1.msra.mxu0 0.0
    %1667 = vmatprep.subr.mxu0 0.0
    %1668 = vmatpush1.msra.mxu0 0.0
    %1669 = vmatprep.subr.mxu0 0.0
    %1670 = vmatpush1.msra.mxu0 0.0
    %1671 = vmatprep.subr.mxu0 0.0
    %1672 = vmatpush1.msra.mxu0 0.0
    %1673 = vmatprep.subr.mxu0 0.0
    %1674 = vmatpush1.msra.mxu0 0.0
    %1675 = vmatprep.subr.mxu0 0.0
    %1676 = vmatpush1.msra.mxu0 0.0
    %1677 = vmatprep.subr.mxu0 0.0
    %1678 = vmatpush1.msra.mxu0 0.0
    %1679 = vmatprep.subr.mxu0 0.0
    %1680 = vmatpush1.msra.mxu0 0.0
    %1681 = vmatprep.subr.mxu0 0.0
    %1682 = vmatpush1.msra.mxu0 0.0
    %1683 = vmatprep.mubr.f32.mxu0 0.0
    %1684 = vmatmul.mubr.f32.gmra.mrb[0].mxu0 %v1326
    %v1685 = vpop.f32.mrb[0].mxu0
    %v1686 = vadd.f32 0.0, %v1685
    %v1687 = vpop.f32.mrb[0].mxu0
    %v1688 = vadd.f32 0.0, %v1687
    %1689 = vdwg.mxu0
    %1690 = vmatprep.subr.mxu0 %v84
    %1691 = vmatpush1.msra.mxu0 %v83
    %1692 = vmatprep.subr.mxu0 %v88
    %1693 = vmatpush1.msra.mxu0 %v87
    %1694 = vmatprep.subr.mxu0 %v92
    %1695 = vmatpush1.msra.mxu0 %v91
    %1696 = vmatprep.subr.mxu0 %v96
    %1697 = vmatpush1.msra.mxu0 %v95
    %1698 = vmatprep.subr.mxu0 %v100
    %1699 = vmatpush1.msra.mxu0 %v99
    %1700 = vmatprep.subr.mxu0 %v104
    %1701 = vmatpush1.msra.mxu0 %v103
    %1702 = vmatprep.subr.mxu0 %v108
    %1703 = vmatpush1.msra.mxu0 %v107
    %1704 = vmatprep.subr.mxu0 %v112
    %1705 = vmatpush1.msra.mxu0 %v111
    %1706 = vmatprep.subr.mxu0 %v116
    %1707 = vmatpush1.msra.mxu0 %v115
    %1708 = vmatprep.subr.mxu0 %v120
    %1709 = vmatpush1.msra.mxu0 %v119
    %1710 = vmatprep.subr.mxu0 %v124
    %1711 = vmatpush1.msra.mxu0 %v123
    %1712 = vmatprep.subr.mxu0 %v128
    %1713 = vmatpush1.msra.mxu0 %v127
    %1714 = vmatprep.subr.mxu0 %v132
    %1715 = vmatpush1.msra.mxu0 %v131
    %1716 = vmatprep.subr.mxu0 %v136
    %1717 = vmatpush1.msra.mxu0 %v135
    %1718 = vmatprep.subr.mxu0 %v140
    %1719 = vmatpush1.msra.mxu0 %v139
    %1720 = vmatprep.subr.mxu0 %v144
    %1721 = vmatpush1.msra.mxu0 %v143
    %1722 = vmatprep.subr.mxu0 0.0
    %1723 = vmatpush1.msra.mxu0 0.0
    %1724 = vmatprep.subr.mxu0 0.0
    %1725 = vmatpush1.msra.mxu0 0.0
    %1726 = vmatprep.subr.mxu0 0.0
    %1727 = vmatpush1.msra.mxu0 0.0
    %1728 = vmatprep.subr.mxu0 0.0
    %1729 = vmatpush1.msra.mxu0 0.0
    %1730 = vmatprep.subr.mxu0 0.0
    %1731 = vmatpush1.msra.mxu0 0.0
    %1732 = vmatprep.subr.mxu0 0.0
    %1733 = vmatpush1.msra.mxu0 0.0
    %1734 = vmatprep.subr.mxu0 0.0
    %1735 = vmatpush1.msra.mxu0 0.0
    %1736 = vmatprep.subr.mxu0 0.0
    %1737 = vmatpush1.msra.mxu0 0.0
    %1738 = vmatprep.subr.mxu0 0.0
    %1739 = vmatpush1.msra.mxu0 0.0
    %1740 = vmatprep.subr.mxu0 0.0
    %1741 = vmatpush1.msra.mxu0 0.0
    %1742 = vmatprep.subr.mxu0 0.0
    %1743 = vmatpush1.msra.mxu0 0.0
    %1744 = vmatprep.subr.mxu0 0.0
    %1745 = vmatpush1.msra.mxu0 0.0
    %1746 = vmatprep.subr.mxu0 0.0
    %1747 = vmatpush1.msra.mxu0 0.0
    %1748 = vmatprep.subr.mxu0 0.0
    %1749 = vmatpush1.msra.mxu0 0.0
    %1750 = vmatprep.subr.mxu0 0.0
    %1751 = vmatpush1.msra.mxu0 0.0
    %1752 = vmatprep.subr.mxu0 0.0
    %1753 = vmatpush1.msra.mxu0 0.0
    %1754 = vmatprep.mubr.f32.mxu0 0.0
    %1755 = vmatmul.mubr.f32.gmra.mrb[0].mxu0 %v1326
    %v1756 = vpop.f32.mrb[0].mxu0
    %v1757 = vadd.f32 0.0, %v1756
    %v1758 = vpop.f32.mrb[0].mxu0
    %v1759 = vadd.f32 0.0, %v1758
    %1760 = vdwg.mxu0
    %v1761 = vadd.f32 %v1615, %v1686
    %v1762 = vadd.f32 %v1616, %v1688
    %v1763 = vadd.f32 %v1617, %v1757
    %v1764 = vadd.f32 %v1618, %v1759
    %v1765 = vxor.u32 %v1761, 2147483648
    %v1766 = vmul.f32 %v1765, 1.442695
    %v1767 = vpow.pop %v1766
    %v1768 = vadd.f32 %v1767, 1.0
    %v1769 = vrcp.pop %v1768
    %v1770 = vmul.f32 1.0, %v1769
    %v1771 = vxor.u32 %v1762, 2147483648
    %v1772 = vmul.f32 %v1771, 1.442695
    %v1773 = vpow.pop %v1772
    %v1774 = vadd.f32 %v1773, 1.0
    %v1775 = vrcp.pop %v1774
    %v1776 = vmul.f32 1.0, %v1775
    %v1777 = vtanh.pop %v1763
    %v1778 = vxor.u32 %v1764, 2147483648
    %v1779 = vmul.f32 %v1778, 1.442695
    %v1780 = vpow.pop %v1779
    %v1781 = vadd.f32 %v1780, 1.0
    %v1782 = vrcp.pop %v1781
    %v1783 = vmul.f32 1.0, %v1782
    %v1784 = vmul.f32 %v1776, %v1324
    %v1785 = vmul.f32 %v1770, %v1777
    %v1786 = vadd.f32 %v1784, %v1785
    %v1787 = vtanh.pop %v1786
    %v1788 = vmul.f32 %v1783, %v1787
    %1790 = vrot.lane.b32.xlu0 %v1613, 96
    %v1791 = vpop.permute.xlu0 %1790
    %v1792 = vsel %vm401, %v1791, 0
    %1794 = vmatprep.subr.mxu0 %v146
    %1795 = vmatpush1.msra.mxu0 %v145
    %1796 = vmatprep.subr.mxu0 %v149
    %1797 = vmatpush1.msra.mxu0 %v148
    %1798 = vmatprep.subr.mxu0 %v152
    %1799 = vmatpush1.msra.mxu0 %v151
    %1800 = vmatprep.subr.mxu0 %v155
    %1801 = vmatpush1.msra.mxu0 %v154
    %1802 = vmatprep.subr.mxu0 %v158
    %1803 = vmatpush1.msra.mxu0 %v157
    %1804 = vmatprep.subr.mxu0 %v161
    %1805 = vmatpush1.msra.mxu0 %v160
    %1806 = vmatprep.subr.mxu0 %v164
    %1807 = vmatpush1.msra.mxu0 %v163
    %1808 = vmatprep.subr.mxu0 %v167
    %1809 = vmatpush1.msra.mxu0 %v166
    %1810 = vmatprep.subr.mxu0 %v170
    %1811 = vmatpush1.msra.mxu0 %v169
    %1812 = vmatprep.subr.mxu0 %v173
    %1813 = vmatpush1.msra.mxu0 %v172
    %1814 = vmatprep.subr.mxu0 %v176
    %1815 = vmatpush1.msra.mxu0 %v175
    %1816 = vmatprep.subr.mxu0 %v179
    %1817 = vmatpush1.msra.mxu0 %v178
    %1818 = vmatprep.subr.mxu0 %v182
    %1819 = vmatpush1.msra.mxu0 %v181
    %1820 = vmatprep.subr.mxu0 %v185
    %1821 = vmatpush1.msra.mxu0 %v184
    %1822 = vmatprep.subr.mxu0 %v188
    %1823 = vmatpush1.msra.mxu0 %v187
    %1824 = vmatprep.subr.mxu0 %v191
    %1825 = vmatpush1.msra.mxu0 %v190
    %1826 = vmatprep.subr.mxu0 %v194
    %1827 = vmatpush1.msra.mxu0 %v193
    %1828 = vmatprep.subr.mxu0 %v197
    %1829 = vmatpush1.msra.mxu0 %v196
    %1830 = vmatprep.subr.mxu0 %v200
    %1831 = vmatpush1.msra.mxu0 %v199
    %1832 = vmatprep.subr.mxu0 %v203
    %1833 = vmatpush1.msra.mxu0 %v202
    %1834 = vmatprep.subr.mxu0 0.0
    %1835 = vmatpush1.msra.mxu0 0.0
    %1836 = vmatprep.subr.mxu0 0.0
    %1837 = vmatpush1.msra.mxu0 0.0
    %1838 = vmatprep.subr.mxu0 0.0
    %1839 = vmatpush1.msra.mxu0 0.0
    %1840 = vmatprep.subr.mxu0 0.0
    %1841 = vmatpush1.msra.mxu0 0.0
    %1842 = vmatprep.subr.mxu0 0.0
    %1843 = vmatpush1.msra.mxu0 0.0
    %1844 = vmatprep.subr.mxu0 0.0
    %1845 = vmatpush1.msra.mxu0 0.0
    %1846 = vmatprep.subr.mxu0 0.0
    %1847 = vmatpush1.msra.mxu0 0.0
    %1848 = vmatprep.subr.mxu0 0.0
    %1849 = vmatpush1.msra.mxu0 0.0
    %1850 = vmatprep.subr.mxu0 0.0
    %1851 = vmatpush1.msra.mxu0 0.0
    %1852 = vmatprep.subr.mxu0 0.0
    %1853 = vmatpush1.msra.mxu0 0.0
    %1854 = vmatprep.subr.mxu0 0.0
    %1855 = vmatpush1.msra.mxu0 0.0
    %1856 = vmatprep.subr.mxu0 0.0
    %1857 = vmatpush1.msra.mxu0 0.0
    %1858 = vmatprep.mubr.f32.mxu0 %v1792
    %1859 = vmatmul.mubr.f32.gmra.mrb[0].mxu0 %v1788
    %v1860 = vpop.f32.mrb[0].mxu0
    %v1861 = vadd.f32 %v389, %v1860
    %v1862 = vpop.f32.mrb[0].mxu0
    %v1863 = vadd.f32 %v393, %v1862
    %1864 = vdwg.mxu0
    %1865 = vmatprep.subr.mxu0 0.0
    %1866 = vmatpush1.msra.mxu0 %v147
    %1867 = vmatprep.subr.mxu0 0.0
    %1868 = vmatpush1.msra.mxu0 %v150
    %1869 = vmatprep.subr.mxu0 0.0
    %1870 = vmatpush1.msra.mxu0 %v153
    %1871 = vmatprep.subr.mxu0 0.0
    %1872 = vmatpush1.msra.mxu0 %v156
    %1873 = vmatprep.subr.mxu0 0.0
    %1874 = vmatpush1.msra.mxu0 %v159
    %1875 = vmatprep.subr.mxu0 0.0
    %1876 = vmatpush1.msra.mxu0 %v162
    %1877 = vmatprep.subr.mxu0 0.0
    %1878 = vmatpush1.msra.mxu0 %v165
    %1879 = vmatprep.subr.mxu0 0.0
    %1880 = vmatpush1.msra.mxu0 %v168
    %1881 = vmatprep.subr.mxu0 0.0
    %1882 = vmatpush1.msra.mxu0 %v171
    %1883 = vmatprep.subr.mxu0 0.0
    %1884 = vmatpush1.msra.mxu0 %v174
    %1885 = vmatprep.subr.mxu0 0.0
    %1886 = vmatpush1.msra.mxu0 %v177
    %1887 = vmatprep.subr.mxu0 0.0
    %1888 = vmatpush1.msra.mxu0 %v180
    %1889 = vmatprep.subr.mxu0 0.0
    %1890 = vmatpush1.msra.mxu0 %v183
    %1891 = vmatprep.subr.mxu0 0.0
    %1892 = vmatpush1.msra.mxu0 %v186
    %1893 = vmatprep.subr.mxu0 0.0
    %1894 = vmatpush1.msra.mxu0 %v189
    %1895 = vmatprep.subr.mxu0 0.0
    %1896 = vmatpush1.msra.mxu0 %v192
    %1897 = vmatprep.subr.mxu0 0.0
    %1898 = vmatpush1.msra.mxu0 %v195
    %1899 = vmatprep.subr.mxu0 0.0
    %1900 = vmatpush1.msra.mxu0 %v198
    %1901 = vmatprep.subr.mxu0 0.0
    %1902 = vmatpush1.msra.mxu0 %v201
    %1903 = vmatprep.subr.mxu0 0.0
    %1904 = vmatpush1.msra.mxu0 %v204
    %1905 = vmatprep.subr.mxu0 0.0
    %1906 = vmatpush1.msra.mxu0 0.0
    %1907 = vmatprep.subr.mxu0 0.0
    %1908 = vmatpush1.msra.mxu0 0.0
    %1909 = vmatprep.subr.mxu0 0.0
    %1910 = vmatpush1.msra.mxu0 0.0
    %1911 = vmatprep.subr.mxu0 0.0
    %1912 = vmatpush1.msra.mxu0 0.0
    %1913 = vmatprep.subr.mxu0 0.0
    %1914 = vmatpush1.msra.mxu0 0.0
    %1915 = vmatprep.subr.mxu0 0.0
    %1916 = vmatpush1.msra.mxu0 0.0
    %1917 = vmatprep.subr.mxu0 0.0
    %1918 = vmatpush1.msra.mxu0 0.0
    %1919 = vmatprep.subr.mxu0 0.0
    %1920 = vmatpush1.msra.mxu0 0.0
    %1921 = vmatprep.subr.mxu0 0.0
    %1922 = vmatpush1.msra.mxu0 0.0
    %1923 = vmatprep.subr.mxu0 0.0
    %1924 = vmatpush1.msra.mxu0 0.0
    %1925 = vmatprep.subr.mxu0 0.0
    %1926 = vmatpush1.msra.mxu0 0.0
    %1927 = vmatprep.subr.mxu0 0.0
    %1928 = vmatpush1.msra.mxu0 0.0
    %1929 = vmatprep.mubr.f32.mxu0 %v1792
    %1930 = vmatmul.mubr.f32.gmra.mrb[0].mxu0 %v1788
    %v1931 = vpop.f32.mrb[0].mxu0
    %v1932 = vadd.f32 %v397, %v1931
    %v1933 = vpop.f32.mrb[0].mxu0
    %1934 = vdwg.mxu0
    %v1935 = vxor.u32 %v1861, 2147483648
    %v1936 = vxor.u32 %v1863, 2147483648
    %v1937 = vmul.f32 %v1935, 1.442695
    %v1938 = vpow.pop %v1937
    %v1939 = vmul.f32 %v1936, 1.442695
    %v1940 = vpow.pop %v1939
    %v1941 = vadd.f32 %v1938, 1.0
    %v1942 = vadd.f32 %v1940, 1.0
    %v1943 = vrcp.pop %v1941
    %v1944 = vmul.f32 1.0, %v1943
    %v1945 = vrcp.pop %v1942
    %v1946 = vmul.f32 1.0, %v1945
    %v1947 = vtanh.pop %v1932
    %v1948 = vmul.f32 %v1946, %v1947
    %v1950 = vsel %vm401, %v1607, 0
    %1952 = vmatprep.subr.mxu0 0.0
    %1953 = vmatpush1.msra.mxu0 %v206
    %1954 = vmatprep.subr.mxu0 0.0
    %1955 = vmatpush1.msra.mxu0 %v207
    %1956 = vmatprep.subr.mxu0 0.0
    %1957 = vmatpush1.msra.mxu0 %v208
    %1958 = vmatprep.subr.mxu0 0.0
    %1959 = vmatpush1.msra.mxu0 %v209
    %1960 = vmatprep.subr.mxu0 0.0
    %1961 = vmatpush1.msra.mxu0 0.0
    %1962 = vmatprep.subr.mxu0 0.0
    %1963 = vmatpush1.msra.mxu0 0.0
    %1964 = vmatprep.subr.mxu0 0.0
    %1965 = vmatpush1.msra.mxu0 0.0
    %1966 = vmatprep.subr.mxu0 0.0
    %1967 = vmatpush1.msra.mxu0 0.0
    %1968 = vmatprep.subr.mxu0 0.0
    %1969 = vmatpush1.msra.mxu0 0.0
    %1970 = vmatprep.subr.mxu0 0.0
    %1971 = vmatpush1.msra.mxu0 0.0
    %1972 = vmatprep.subr.mxu0 0.0
    %1973 = vmatpush1.msra.mxu0 0.0
    %1974 = vmatprep.subr.mxu0 0.0
    %1975 = vmatpush1.msra.mxu0 0.0
    %1976 = vmatprep.subr.mxu0 0.0
    %1977 = vmatpush1.msra.mxu0 0.0
    %1978 = vmatprep.subr.mxu0 0.0
    %1979 = vmatpush1.msra.mxu0 0.0
    %1980 = vmatprep.subr.mxu0 0.0
    %1981 = vmatpush1.msra.mxu0 0.0
    %1982 = vmatprep.subr.mxu0 0.0
    %1983 = vmatpush1.msra.mxu0 0.0
    %1984 = vmatprep.subr.mxu0 0.0
    %1985 = vmatpush1.msra.mxu0 0.0
    %1986 = vmatprep.subr.mxu0 0.0
    %1987 = vmatpush1.msra.mxu0 0.0
    %1988 = vmatprep.subr.mxu0 0.0
    %1989 = vmatpush1.msra.mxu0 0.0
    %1990 = vmatprep.subr.mxu0 0.0
    %1991 = vmatpush1.msra.mxu0 0.0
    %1992 = vmatprep.subr.mxu0 0.0
    %1993 = vmatpush1.msra.mxu0 0.0
    %1994 = vmatprep.subr.mxu0 0.0
    %1995 = vmatpush1.msra.mxu0 0.0
    %1996 = vmatprep.subr.mxu0 0.0
    %1997 = vmatpush1.msra.mxu0 0.0
    %1998 = vmatprep.subr.mxu0 0.0
    %1999 = vmatpush1.msra.mxu0 0.0
    %2000 = vmatprep.subr.mxu0 0.0
    %2001 = vmatpush1.msra.mxu0 0.0
    %2002 = vmatprep.subr.mxu0 0.0
    %2003 = vmatpush1.msra.mxu0 0.0
    %2004 = vmatprep.subr.mxu0 0.0
    %2005 = vmatpush1.msra.mxu0 0.0
    %2006 = vmatprep.subr.mxu0 0.0
    %2007 = vmatpush1.msra.mxu0 0.0
    %2008 = vmatprep.subr.mxu0 0.0
    %2009 = vmatpush1.msra.mxu0 0.0
    %2010 = vmatprep.subr.mxu0 0.0
    %2011 = vmatpush1.msra.mxu0 0.0
    %2012 = vmatprep.subr.mxu0 0.0
    %2013 = vmatpush1.msra.mxu0 0.0
    %2014 = vmatprep.subr.mxu0 0.0
    %2015 = vmatpush1.msra.mxu0 0.0
    %2016 = vmatprep.mubr.f32.mxu0 0.0
    %2017 = vmatmul.mubr.f32.gmra.mrb[0].mxu0 %v1950
    %v2018 = vpop.f32.mrb[0].mxu0
    %v2019 = vadd.f32 %v564, %v2018
    %v2020 = vpop.f32.mrb[0].mxu0
    %2021 = vdwg.mxu0
    %v2022 = vtanh.pop %v2019
    %v2023 = vmul.f32 %v1948, %v2022
    %v2024 = vsel %vm401, %v2023, 0.0
    %2025 = vadd.xlane.f32.xlu0 %v2024
    %v2026 = vpop.xlane.xlu0 %2025
    %2028 = vrot.lane.b32.xlu0 %v2023, 96
    %v2029 = vpop.permute.xlu0 %2028
    %v2031 = vsel %vm401, %v2029, 0.0
    %2032 = vadd.xlane.f32.xlu0 %v2031
    %v2033 = vpop.xlane.xlu0 %2032
    %2034 = vrot.lane.b32.xlu0 %v2023, 64
    %v2035 = vpop.permute.xlu0 %2034
    %v2037 = vsel %vm401, %v2035, 0.0
    %2038 = vadd.xlane.f32.xlu0 %v2037
    %v2039 = vpop.xlane.xlu0 %2038
    %v2040 = vmax.f32 %v2026, %v2033
    %v2041 = vmax.f32 %v2040, %v2039
    %v2042 = vsub.f32 %v2026, %v2041
    %v2043 = vmul.f32 %v2042, 1.442695
    %v2044 = vpow.pop %v2043
    %v2045 = vsub.f32 %v2033, %v2041
    %v2046 = vmul.f32 %v2045, 1.442695
    %v2047 = vpow.pop %v2046
    %v2048 = vsub.f32 %v2039, %v2041
    %v2049 = vmul.f32 %v2048, 1.442695
    %v2050 = vpow.pop %v2049
    %v2051 = vadd.f32 %v2044, %v2047
    %v2052 = vadd.f32 %v2051, %v2050
    %v2053 = vmul.f32 %v2044, %v1948
    %v2054 = vmul.f32 %v2047, %v1948
    %2056 = vrot.lane.b32.xlu0 %v2054, 96
    %v2057 = vpop.permute.xlu0 %2056
    %v2059 = vadd.f32 %v2053, %v2057
    %v2060 = vmul.f32 %v2050, %v1948
    %2062 = vrot.lane.b32.xlu0 %v2060, 64
    %v2063 = vpop.permute.xlu0 %2062
    %v2065 = vadd.f32 %v2059, %v2063
    %v2066 = vrcp.pop %v2052
    %v2067 = vmul.f32 %v2065, %v2066
    %v2068 = vmul.f32 %v1944, %v1607
    %v2069 = vadd.f32 %v2068, %v2067
    %v2070 = vtanh.pop %v2069
    %2072 = vrot.lane.b32.xlu0 %v2070, 32
    %v2073 = vpop.permute.xlu0 %2072
    %v2075 = vmul.f32 %v1944, %v2073
    %s2076 = scalar_lea.vmem [#allocation3], 128
    %v2077 = vld [vmem:[%s2076] sm:$0xff]
    %v2078 = vld [vmem:[%s2076 + $0x8] sm:$0xff]
    %v2079 = vld [vmem:[%s2076 + $0x10] sm:$0xff]
    %v2080 = vld [vmem:[%s2076 + $0x18] sm:$0xff]
    %2081 = vmatprep.subr.mxu0 %v82
    %2082 = vmatpush1.msra.mxu0 %v81
    %2083 = vmatprep.subr.mxu0 %v86
    %2084 = vmatpush1.msra.mxu0 %v85
    %2085 = vmatprep.subr.mxu0 %v90
    %2086 = vmatpush1.msra.mxu0 %v89
    %2087 = vmatprep.subr.mxu0 %v94
    %2088 = vmatpush1.msra.mxu0 %v93
    %2089 = vmatprep.subr.mxu0 %v98
    %2090 = vmatpush1.msra.mxu0 %v97
    %2091 = vmatprep.subr.mxu0 %v102
    %2092 = vmatpush1.msra.mxu0 %v101
    %2093 = vmatprep.subr.mxu0 %v106
    %2094 = vmatpush1.msra.mxu0 %v105
    %2095 = vmatprep.subr.mxu0 %v110
    %2096 = vmatpush1.msra.mxu0 %v109
    %2097 = vmatprep.subr.mxu0 %v114
    %2098 = vmatpush1.msra.mxu0 %v113
    %2099 = vmatprep.subr.mxu0 %v118
    %2100 = vmatpush1.msra.mxu0 %v117
    %2101 = vmatprep.subr.mxu0 %v122
    %2102 = vmatpush1.msra.mxu0 %v121
    %2103 = vmatprep.subr.mxu0 %v126
    %2104 = vmatpush1.msra.mxu0 %v125
    %2105 = vmatprep.subr.mxu0 %v130
    %2106 = vmatpush1.msra.mxu0 %v129
    %2107 = vmatprep.subr.mxu0 %v134
    %2108 = vmatpush1.msra.mxu0 %v133
    %2109 = vmatprep.subr.mxu0 %v138
    %2110 = vmatpush1.msra.mxu0 %v137
    %2111 = vmatprep.subr.mxu0 %v142
    %2112 = vmatpush1.msra.mxu0 %v141
    %2113 = vmatprep.subr.mxu0 0.0
    %2114 = vmatpush1.msra.mxu0 0.0
    %2115 = vmatprep.subr.mxu0 0.0
    %2116 = vmatpush1.msra.mxu0 0.0
    %2117 = vmatprep.subr.mxu0 0.0
    %2118 = vmatpush1.msra.mxu0 0.0
    %2119 = vmatprep.subr.mxu0 0.0
    %2120 = vmatpush1.msra.mxu0 0.0
    %2121 = vmatprep.subr.mxu0 0.0
    %2122 = vmatpush1.msra.mxu0 0.0
    %2123 = vmatprep.subr.mxu0 0.0
    %2124 = vmatpush1.msra.mxu0 0.0
    %2125 = vmatprep.subr.mxu0 0.0
    %2126 = vmatpush1.msra.mxu0 0.0
    %2127 = vmatprep.subr.mxu0 0.0
    %2128 = vmatpush1.msra.mxu0 0.0
    %2129 = vmatprep.subr.mxu0 0.0
    %2130 = vmatpush1.msra.mxu0 0.0
    %2131 = vmatprep.subr.mxu0 0.0
    %2132 = vmatpush1.msra.mxu0 0.0
    %2133 = vmatprep.subr.mxu0 0.0
    %2134 = vmatpush1.msra.mxu0 0.0
    %2135 = vmatprep.subr.mxu0 0.0
    %2136 = vmatpush1.msra.mxu0 0.0
    %2137 = vmatprep.subr.mxu0 0.0
    %2138 = vmatpush1.msra.mxu0 0.0
    %2139 = vmatprep.subr.mxu0 0.0
    %2140 = vmatpush1.msra.mxu0 0.0
    %2141 = vmatprep.subr.mxu0 0.0
    %2142 = vmatpush1.msra.mxu0 0.0
    %2143 = vmatprep.subr.mxu0 0.0
    %2144 = vmatpush1.msra.mxu0 0.0
    %2145 = vmatprep.mubr.f32.mxu0 0.0
    %2146 = vmatmul.mubr.f32.gmra.mrb[0].mxu0 %v1788
    %v2147 = vpop.f32.mrb[0].mxu0
    %v2148 = vadd.f32 0.0, %v2147
    %v2149 = vpop.f32.mrb[0].mxu0
    %v2150 = vadd.f32 0.0, %v2149
    %2151 = vdwg.mxu0
    %2152 = vmatprep.subr.mxu0 %v84
    %2153 = vmatpush1.msra.mxu0 %v83
    %2154 = vmatprep.subr.mxu0 %v88
    %2155 = vmatpush1.msra.mxu0 %v87
    %2156 = vmatprep.subr.mxu0 %v92
    %2157 = vmatpush1.msra.mxu0 %v91
    %2158 = vmatprep.subr.mxu0 %v96
    %2159 = vmatpush1.msra.mxu0 %v95
    %2160 = vmatprep.subr.mxu0 %v100
    %2161 = vmatpush1.msra.mxu0 %v99
    %2162 = vmatprep.subr.mxu0 %v104
    %2163 = vmatpush1.msra.mxu0 %v103
    %2164 = vmatprep.subr.mxu0 %v108
    %2165 = vmatpush1.msra.mxu0 %v107
    %2166 = vmatprep.subr.mxu0 %v112
    %2167 = vmatpush1.msra.mxu0 %v111
    %2168 = vmatprep.subr.mxu0 %v116
    %2169 = vmatpush1.msra.mxu0 %v115
    %2170 = vmatprep.subr.mxu0 %v120
    %2171 = vmatpush1.msra.mxu0 %v119
    %2172 = vmatprep.subr.mxu0 %v124
    %2173 = vmatpush1.msra.mxu0 %v123
    %2174 = vmatprep.subr.mxu0 %v128
    %2175 = vmatpush1.msra.mxu0 %v127
    %2176 = vmatprep.subr.mxu0 %v132
    %2177 = vmatpush1.msra.mxu0 %v131
    %2178 = vmatprep.subr.mxu0 %v136
    %2179 = vmatpush1.msra.mxu0 %v135
    %2180 = vmatprep.subr.mxu0 %v140
    %2181 = vmatpush1.msra.mxu0 %v139
    %2182 = vmatprep.subr.mxu0 %v144
    %2183 = vmatpush1.msra.mxu0 %v143
    %2184 = vmatprep.subr.mxu0 0.0
    %2185 = vmatpush1.msra.mxu0 0.0
    %2186 = vmatprep.subr.mxu0 0.0
    %2187 = vmatpush1.msra.mxu0 0.0
    %2188 = vmatprep.subr.mxu0 0.0
    %2189 = vmatpush1.msra.mxu0 0.0
    %2190 = vmatprep.subr.mxu0 0.0
    %2191 = vmatpush1.msra.mxu0 0.0
    %2192 = vmatprep.subr.mxu0 0.0
    %2193 = vmatpush1.msra.mxu0 0.0
    %2194 = vmatprep.subr.mxu0 0.0
    %2195 = vmatpush1.msra.mxu0 0.0
    %2196 = vmatprep.subr.mxu0 0.0
    %2197 = vmatpush1.msra.mxu0 0.0
    %2198 = vmatprep.subr.mxu0 0.0
    %2199 = vmatpush1.msra.mxu0 0.0
    %2200 = vmatprep.subr.mxu0 0.0
    %2201 = vmatpush1.msra.mxu0 0.0
    %2202 = vmatprep.subr.mxu0 0.0
    %2203 = vmatpush1.msra.mxu0 0.0
    %2204 = vmatprep.subr.mxu0 0.0
    %2205 = vmatpush1.msra.mxu0 0.0
    %2206 = vmatprep.subr.mxu0 0.0
    %2207 = vmatpush1.msra.mxu0 0.0
    %2208 = vmatprep.subr.mxu0 0.0
    %2209 = vmatpush1.msra.mxu0 0.0
    %2210 = vmatprep.subr.mxu0 0.0
    %2211 = vmatpush1.msra.mxu0 0.0
    %2212 = vmatprep.subr.mxu0 0.0
    %2213 = vmatpush1.msra.mxu0 0.0
    %2214 = vmatprep.subr.mxu0 0.0
    %2215 = vmatpush1.msra.mxu0 0.0
    %2216 = vmatprep.mubr.f32.mxu0 0.0
    %2217 = vmatmul.mubr.f32.gmra.mrb[0].mxu0 %v1788
    %v2218 = vpop.f32.mrb[0].mxu0
    %v2219 = vadd.f32 0.0, %v2218
    %v2220 = vpop.f32.mrb[0].mxu0
    %v2221 = vadd.f32 0.0, %v2220
    %2222 = vdwg.mxu0
    %v2223 = vadd.f32 %v2077, %v2148
    %v2224 = vadd.f32 %v2078, %v2150
    %v2225 = vadd.f32 %v2079, %v2219
    %v2226 = vadd.f32 %v2080, %v2221
    %v2227 = vxor.u32 %v2223, 2147483648
    %v2228 = vmul.f32 %v2227, 1.442695
    %v2229 = vpow.pop %v2228
    %v2230 = vadd.f32 %v2229, 1.0
    %v2231 = vrcp.pop %v2230
    %v2232 = vmul.f32 1.0, %v2231
    %v2233 = vxor.u32 %v2224, 2147483648
    %v2234 = vmul.f32 %v2233, 1.442695
    %v2235 = vpow.pop %v2234
    %v2236 = vadd.f32 %v2235, 1.0
    %v2237 = vrcp.pop %v2236
    %v2238 = vmul.f32 1.0, %v2237
    %v2239 = vtanh.pop %v2225
    %v2240 = vxor.u32 %v2226, 2147483648
    %v2241 = vmul.f32 %v2240, 1.442695
    %v2242 = vpow.pop %v2241
    %v2243 = vadd.f32 %v2242, 1.0
    %v2244 = vrcp.pop %v2243
    %v2245 = vmul.f32 1.0, %v2244
    %v2246 = vmul.f32 %v2238, %v1786
    %v2247 = vmul.f32 %v2232, %v2239
    %v2248 = vadd.f32 %v2246, %v2247
    %v2249 = vtanh.pop %v2248
    %v2250 = vmul.f32 %v2245, %v2249
    %2252 = vrot.lane.b32.xlu0 %v2075, 96
    %v2253 = vpop.permute.xlu0 %2252
    %v2254 = vsel %vm401, %v2253, 0
    %2256 = vmatprep.subr.mxu0 %v146
    %2257 = vmatpush1.msra.mxu0 %v145
    %2258 = vmatprep.subr.mxu0 %v149
    %2259 = vmatpush1.msra.mxu0 %v148
    %2260 = vmatprep.subr.mxu0 %v152
    %2261 = vmatpush1.msra.mxu0 %v151
    %2262 = vmatprep.subr.mxu0 %v155
    %2263 = vmatpush1.msra.mxu0 %v154
    %2264 = vmatprep.subr.mxu0 %v158
    %2265 = vmatpush1.msra.mxu0 %v157
    %2266 = vmatprep.subr.mxu0 %v161
    %2267 = vmatpush1.msra.mxu0 %v160
    %2268 = vmatprep.subr.mxu0 %v164
    %2269 = vmatpush1.msra.mxu0 %v163
    %2270 = vmatprep.subr.mxu0 %v167
    %2271 = vmatpush1.msra.mxu0 %v166
    %2272 = vmatprep.subr.mxu0 %v170
    %2273 = vmatpush1.msra.mxu0 %v169
    %2274 = vmatprep.subr.mxu0 %v173
    %2275 = vmatpush1.msra.mxu0 %v172
    %2276 = vmatprep.subr.mxu0 %v176
    %2277 = vmatpush1.msra.mxu0 %v175
    %2278 = vmatprep.subr.mxu0 %v179
    %2279 = vmatpush1.msra.mxu0 %v178
    %2280 = vmatprep.subr.mxu0 %v182
    %2281 = vmatpush1.msra.mxu0 %v181
    %2282 = vmatprep.subr.mxu0 %v185
    %2283 = vmatpush1.msra.mxu0 %v184
    %2284 = vmatprep.subr.mxu0 %v188
    %2285 = vmatpush1.msra.mxu0 %v187
    %2286 = vmatprep.subr.mxu0 %v191
    %2287 = vmatpush1.msra.mxu0 %v190
    %2288 = vmatprep.subr.mxu0 %v194
    %2289 = vmatpush1.msra.mxu0 %v193
    %2290 = vmatprep.subr.mxu0 %v197
    %2291 = vmatpush1.msra.mxu0 %v196
    %2292 = vmatprep.subr.mxu0 %v200
    %2293 = vmatpush1.msra.mxu0 %v199
    %2294 = vmatprep.subr.mxu0 %v203
    %2295 = vmatpush1.msra.mxu0 %v202
    %2296 = vmatprep.subr.mxu0 0.0
    %2297 = vmatpush1.msra.mxu0 0.0
    %2298 = vmatprep.subr.mxu0 0.0
    %2299 = vmatpush1.msra.mxu0 0.0
    %2300 = vmatprep.subr.mxu0 0.0
    %2301 = vmatpush1.msra.mxu0 0.0
    %2302 = vmatprep.subr.mxu0 0.0
    %2303 = vmatpush1.msra.mxu0 0.0
    %2304 = vmatprep.subr.mxu0 0.0
    %2305 = vmatpush1.msra.mxu0 0.0
    %2306 = vmatprep.subr.mxu0 0.0
    %2307 = vmatpush1.msra.mxu0 0.0
    %2308 = vmatprep.subr.mxu0 0.0
    %2309 = vmatpush1.msra.mxu0 0.0
    %2310 = vmatprep.subr.mxu0 0.0
    %2311 = vmatpush1.msra.mxu0 0.0
    %2312 = vmatprep.subr.mxu0 0.0
    %2313 = vmatpush1.msra.mxu0 0.0
    %2314 = vmatprep.subr.mxu0 0.0
    %2315 = vmatpush1.msra.mxu0 0.0
    %2316 = vmatprep.subr.mxu0 0.0
    %2317 = vmatpush1.msra.mxu0 0.0
    %2318 = vmatprep.subr.mxu0 0.0
    %2319 = vmatpush1.msra.mxu0 0.0
    %2320 = vmatprep.mubr.f32.mxu0 %v2254
    %2321 = vmatmul.mubr.f32.gmra.mrb[0].mxu0 %v2250
    %v2322 = vpop.f32.mrb[0].mxu0
    %v2323 = vadd.f32 %v389, %v2322
    %v2324 = vpop.f32.mrb[0].mxu0
    %v2325 = vadd.f32 %v393, %v2324
    %2326 = vdwg.mxu0
    %2327 = vmatprep.subr.mxu0 0.0
    %2328 = vmatpush1.msra.mxu0 %v147
    %2329 = vmatprep.subr.mxu0 0.0
    %2330 = vmatpush1.msra.mxu0 %v150
    %2331 = vmatprep.subr.mxu0 0.0
    %2332 = vmatpush1.msra.mxu0 %v153
    %2333 = vmatprep.subr.mxu0 0.0
    %2334 = vmatpush1.msra.mxu0 %v156
    %2335 = vmatprep.subr.mxu0 0.0
    %2336 = vmatpush1.msra.mxu0 %v159
    %2337 = vmatprep.subr.mxu0 0.0
    %2338 = vmatpush1.msra.mxu0 %v162
    %2339 = vmatprep.subr.mxu0 0.0
    %2340 = vmatpush1.msra.mxu0 %v165
    %2341 = vmatprep.subr.mxu0 0.0
    %2342 = vmatpush1.msra.mxu0 %v168
    %2343 = vmatprep.subr.mxu0 0.0
    %2344 = vmatpush1.msra.mxu0 %v171
    %2345 = vmatprep.subr.mxu0 0.0
    %2346 = vmatpush1.msra.mxu0 %v174
    %2347 = vmatprep.subr.mxu0 0.0
    %2348 = vmatpush1.msra.mxu0 %v177
    %2349 = vmatprep.subr.mxu0 0.0
    %2350 = vmatpush1.msra.mxu0 %v180
    %2351 = vmatprep.subr.mxu0 0.0
    %2352 = vmatpush1.msra.mxu0 %v183
    %2353 = vmatprep.subr.mxu0 0.0
    %2354 = vmatpush1.msra.mxu0 %v186
    %2355 = vmatprep.subr.mxu0 0.0
    %2356 = vmatpush1.msra.mxu0 %v189
    %2357 = vmatprep.subr.mxu0 0.0
    %2358 = vmatpush1.msra.mxu0 %v192
    %2359 = vmatprep.subr.mxu0 0.0
    %2360 = vmatpush1.msra.mxu0 %v195
    %2361 = vmatprep.subr.mxu0 0.0
    %2362 = vmatpush1.msra.mxu0 %v198
    %2363 = vmatprep.subr.mxu0 0.0
    %2364 = vmatpush1.msra.mxu0 %v201
    %2365 = vmatprep.subr.mxu0 0.0
    %2366 = vmatpush1.msra.mxu0 %v204
    %2367 = vmatprep.subr.mxu0 0.0
    %2368 = vmatpush1.msra.mxu0 0.0
    %2369 = vmatprep.subr.mxu0 0.0
    %2370 = vmatpush1.msra.mxu0 0.0
    %2371 = vmatprep.subr.mxu0 0.0
    %2372 = vmatpush1.msra.mxu0 0.0
    %2373 = vmatprep.subr.mxu0 0.0
    %2374 = vmatpush1.msra.mxu0 0.0
    %2375 = vmatprep.subr.mxu0 0.0
    %2376 = vmatpush1.msra.mxu0 0.0
    %2377 = vmatprep.subr.mxu0 0.0
    %2378 = vmatpush1.msra.mxu0 0.0
    %2379 = vmatprep.subr.mxu0 0.0
    %2380 = vmatpush1.msra.mxu0 0.0
    %2381 = vmatprep.subr.mxu0 0.0
    %2382 = vmatpush1.msra.mxu0 0.0
    %2383 = vmatprep.subr.mxu0 0.0
    %2384 = vmatpush1.msra.mxu0 0.0
    %2385 = vmatprep.subr.mxu0 0.0
    %2386 = vmatpush1.msra.mxu0 0.0
    %2387 = vmatprep.subr.mxu0 0.0
    %2388 = vmatpush1.msra.mxu0 0.0
    %2389 = vmatprep.subr.mxu0 0.0
    %2390 = vmatpush1.msra.mxu0 0.0
    %2391 = vmatprep.mubr.f32.mxu0 %v2254
    %2392 = vmatmul.mubr.f32.gmra.mrb[0].mxu0 %v2250
    %v2393 = vpop.f32.mrb[0].mxu0
    %v2394 = vadd.f32 %v397, %v2393
    %v2395 = vpop.f32.mrb[0].mxu0
    %2396 = vdwg.mxu0
    %v2397 = vxor.u32 %v2323, 2147483648
    %v2398 = vxor.u32 %v2325, 2147483648
    %v2399 = vmul.f32 %v2397, 1.442695
    %v2400 = vpow.pop %v2399
    %v2401 = vmul.f32 %v2398, 1.442695
    %v2402 = vpow.pop %v2401
    %v2403 = vadd.f32 %v2400, 1.0
    %v2404 = vadd.f32 %v2402, 1.0
    %v2405 = vrcp.pop %v2403
    %v2406 = vmul.f32 1.0, %v2405
    %v2407 = vrcp.pop %v2404
    %v2408 = vmul.f32 1.0, %v2407
    %v2409 = vtanh.pop %v2394
    %v2410 = vmul.f32 %v2408, %v2409
    %v2412 = vsel %vm401, %v2069, 0
    %2414 = vmatprep.subr.mxu0 0.0
    %2415 = vmatpush1.msra.mxu0 %v206
    %2416 = vmatprep.subr.mxu0 0.0
    %2417 = vmatpush1.msra.mxu0 %v207
    %2418 = vmatprep.subr.mxu0 0.0
    %2419 = vmatpush1.msra.mxu0 %v208
    %2420 = vmatprep.subr.mxu0 0.0
    %2421 = vmatpush1.msra.mxu0 %v209
    %2422 = vmatprep.subr.mxu0 0.0
    %2423 = vmatpush1.msra.mxu0 0.0
    %2424 = vmatprep.subr.mxu0 0.0
    %2425 = vmatpush1.msra.mxu0 0.0
    %2426 = vmatprep.subr.mxu0 0.0
    %2427 = vmatpush1.msra.mxu0 0.0
    %2428 = vmatprep.subr.mxu0 0.0
    %2429 = vmatpush1.msra.mxu0 0.0
    %2430 = vmatprep.subr.mxu0 0.0
    %2431 = vmatpush1.msra.mxu0 0.0
    %2432 = vmatprep.subr.mxu0 0.0
    %2433 = vmatpush1.msra.mxu0 0.0
    %2434 = vmatprep.subr.mxu0 0.0
    %2435 = vmatpush1.msra.mxu0 0.0
    %2436 = vmatprep.subr.mxu0 0.0
    %2437 = vmatpush1.msra.mxu0 0.0
    %2438 = vmatprep.subr.mxu0 0.0
    %2439 = vmatpush1.msra.mxu0 0.0
    %2440 = vmatprep.subr.mxu0 0.0
    %2441 = vmatpush1.msra.mxu0 0.0
    %2442 = vmatprep.subr.mxu0 0.0
    %2443 = vmatpush1.msra.mxu0 0.0
    %2444 = vmatprep.subr.mxu0 0.0
    %2445 = vmatpush1.msra.mxu0 0.0
    %2446 = vmatprep.subr.mxu0 0.0
    %2447 = vmatpush1.msra.mxu0 0.0
    %2448 = vmatprep.subr.mxu0 0.0
    %2449 = vmatpush1.msra.mxu0 0.0
    %2450 = vmatprep.subr.mxu0 0.0
    %2451 = vmatpush1.msra.mxu0 0.0
    %2452 = vmatprep.subr.mxu0 0.0
    %2453 = vmatpush1.msra.mxu0 0.0
    %2454 = vmatprep.subr.mxu0 0.0
    %2455 = vmatpush1.msra.mxu0 0.0
    %2456 = vmatprep.subr.mxu0 0.0
    %2457 = vmatpush1.msra.mxu0 0.0
    %2458 = vmatprep.subr.mxu0 0.0
    %2459 = vmatpush1.msra.mxu0 0.0
    %2460 = vmatprep.subr.mxu0 0.0
    %2461 = vmatpush1.msra.mxu0 0.0
    %2462 = vmatprep.subr.mxu0 0.0
    %2463 = vmatpush1.msra.mxu0 0.0
    %2464 = vmatprep.subr.mxu0 0.0
    %2465 = vmatpush1.msra.mxu0 0.0
    %2466 = vmatprep.subr.mxu0 0.0
    %2467 = vmatpush1.msra.mxu0 0.0
    %2468 = vmatprep.subr.mxu0 0.0
    %2469 = vmatpush1.msra.mxu0 0.0
    %2470 = vmatprep.subr.mxu0 0.0
    %2471 = vmatpush1.msra.mxu0 0.0
    %2472 = vmatprep.subr.mxu0 0.0
    %2473 = vmatpush1.msra.mxu0 0.0
    %2474 = vmatprep.subr.mxu0 0.0
    %2475 = vmatpush1.msra.mxu0 0.0
    %2476 = vmatprep.subr.mxu0 0.0
    %2477 = vmatpush1.msra.mxu0 0.0
    %2478 = vmatprep.mubr.f32.mxu0 0.0
    %2479 = vmatmul.mubr.f32.gmra.mrb[0].mxu0 %v2412
    %v2480 = vpop.f32.mrb[0].mxu0
    %v2481 = vadd.f32 %v564, %v2480
    %v2482 = vpop.f32.mrb[0].mxu0
    %2483 = vdwg.mxu0
    %v2484 = vtanh.pop %v2481
    %v2485 = vmul.f32 %v2410, %v2484
    %v2486 = vsel %vm401, %v2485, 0.0
    %2487 = vadd.xlane.f32.xlu0 %v2486
    %v2488 = vpop.xlane.xlu0 %2487
    %2490 = vrot.lane.b32.xlu0 %v2485, 96
    %v2491 = vpop.permute.xlu0 %2490
    %v2493 = vsel %vm401, %v2491, 0.0
    %2494 = vadd.xlane.f32.xlu0 %v2493
    %v2495 = vpop.xlane.xlu0 %2494
    %2496 = vrot.lane.b32.xlu0 %v2485, 64
    %v2497 = vpop.permute.xlu0 %2496
    %v2499 = vsel %vm401, %v2497, 0.0
    %2500 = vadd.xlane.f32.xlu0 %v2499
    %v2501 = vpop.xlane.xlu0 %2500
    %v2502 = vmax.f32 %v2488, %v2495
    %v2503 = vmax.f32 %v2502, %v2501
    %v2504 = vsub.f32 %v2488, %v2503
    %v2505 = vmul.f32 %v2504, 1.442695
    %v2506 = vpow.pop %v2505
    %v2507 = vsub.f32 %v2495, %v2503
    %v2508 = vmul.f32 %v2507, 1.442695
    %v2509 = vpow.pop %v2508
    %v2510 = vsub.f32 %v2501, %v2503
    %v2511 = vmul.f32 %v2510, 1.442695
    %v2512 = vpow.pop %v2511
    %v2513 = vadd.f32 %v2506, %v2509
    %v2514 = vadd.f32 %v2513, %v2512
    %v2515 = vmul.f32 %v2506, %v2410
    %v2516 = vmul.f32 %v2509, %v2410
    %2518 = vrot.lane.b32.xlu0 %v2516, 96
    %v2519 = vpop.permute.xlu0 %2518
    %v2521 = vadd.f32 %v2515, %v2519
    %v2522 = vmul.f32 %v2512, %v2410
    %2524 = vrot.lane.b32.xlu0 %v2522, 64
    %v2525 = vpop.permute.xlu0 %2524
    %v2527 = vadd.f32 %v2521, %v2525
    %v2528 = vrcp.pop %v2514
    %v2529 = vmul.f32 %v2527, %v2528
    %v2530 = vmul.f32 %v2406, %v2069
    %v2531 = vadd.f32 %v2530, %v2529
    %v2532 = vtanh.pop %v2531
    %2534 = vrot.lane.b32.xlu0 %v2532, 32
    %v2535 = vpop.permute.xlu0 %2534
    %v2537 = vmul.f32 %v2406, %v2535
    %s2538 = scalar_lea.vmem [#allocation3], 160
    %v2539 = vld [vmem:[%s2538] sm:$0xff]
    %v2540 = vld [vmem:[%s2538 + $0x8] sm:$0xff]
    %v2541 = vld [vmem:[%s2538 + $0x10] sm:$0xff]
    %v2542 = vld [vmem:[%s2538 + $0x18] sm:$0xff]
    %2543 = vmatprep.subr.mxu0 %v82
    %2544 = vmatpush1.msra.mxu0 %v81
    %2545 = vmatprep.subr.mxu0 %v86
    %2546 = vmatpush1.msra.mxu0 %v85
    %2547 = vmatprep.subr.mxu0 %v90
    %2548 = vmatpush1.msra.mxu0 %v89
    %2549 = vmatprep.subr.mxu0 %v94
    %2550 = vmatpush1.msra.mxu0 %v93
    %2551 = vmatprep.subr.mxu0 %v98
    %2552 = vmatpush1.msra.mxu0 %v97
    %2553 = vmatprep.subr.mxu0 %v102
    %2554 = vmatpush1.msra.mxu0 %v101
    %2555 = vmatprep.subr.mxu0 %v106
    %2556 = vmatpush1.msra.mxu0 %v105
    %2557 = vmatprep.subr.mxu0 %v110
    %2558 = vmatpush1.msra.mxu0 %v109
    %2559 = vmatprep.subr.mxu0 %v114
    %2560 = vmatpush1.msra.mxu0 %v113
    %2561 = vmatprep.subr.mxu0 %v118
    %2562 = vmatpush1.msra.mxu0 %v117
    %2563 = vmatprep.subr.mxu0 %v122
    %2564 = vmatpush1.msra.mxu0 %v121
    %2565 = vmatprep.subr.mxu0 %v126
    %2566 = vmatpush1.msra.mxu0 %v125
    %2567 = vmatprep.subr.mxu0 %v130
    %2568 = vmatpush1.msra.mxu0 %v129
    %2569 = vmatprep.subr.mxu0 %v134
    %2570 = vmatpush1.msra.mxu0 %v133
    %2571 = vmatprep.subr.mxu0 %v138
    %2572 = vmatpush1.msra.mxu0 %v137
    %2573 = vmatprep.subr.mxu0 %v142
    %2574 = vmatpush1.msra.mxu0 %v141
    %2575 = vmatprep.subr.mxu0 0.0
    %2576 = vmatpush1.msra.mxu0 0.0
    %2577 = vmatprep.subr.mxu0 0.0
    %2578 = vmatpush1.msra.mxu0 0.0
    %2579 = vmatprep.subr.mxu0 0.0
    %2580 = vmatpush1.msra.mxu0 0.0
    %2581 = vmatprep.subr.mxu0 0.0
    %2582 = vmatpush1.msra.mxu0 0.0
    %2583 = vmatprep.subr.mxu0 0.0
    %2584 = vmatpush1.msra.mxu0 0.0
    %2585 = vmatprep.subr.mxu0 0.0
    %2586 = vmatpush1.msra.mxu0 0.0
    %2587 = vmatprep.subr.mxu0 0.0
    %2588 = vmatpush1.msra.mxu0 0.0
    %2589 = vmatprep.subr.mxu0 0.0
    %2590 = vmatpush1.msra.mxu0 0.0
    %2591 = vmatprep.subr.mxu0 0.0
    %2592 = vmatpush1.msra.mxu0 0.0
    %2593 = vmatprep.subr.mxu0 0.0
    %2594 = vmatpush1.msra.mxu0 0.0
    %2595 = vmatprep.subr.mxu0 0.0
    %2596 = vmatpush1.msra.mxu0 0.0
    %2597 = vmatprep.subr.mxu0 0.0
    %2598 = vmatpush1.msra.mxu0 0.0
    %2599 = vmatprep.subr.mxu0 0.0
    %2600 = vmatpush1.msra.mxu0 0.0
    %2601 = vmatprep.subr.mxu0 0.0
    %2602 = vmatpush1.msra.mxu0 0.0
    %2603 = vmatprep.subr.mxu0 0.0
    %2604 = vmatpush1.msra.mxu0 0.0
    %2605 = vmatprep.subr.mxu0 0.0
    %2606 = vmatpush1.msra.mxu0 0.0
    %2607 = vmatprep.mubr.f32.mxu0 0.0
    %2608 = vmatmul.mubr.f32.gmra.mrb[0].mxu0 %v2250
    %v2609 = vpop.f32.mrb[0].mxu0
    %v2610 = vadd.f32 0.0, %v2609
    %v2611 = vpop.f32.mrb[0].mxu0
    %v2612 = vadd.f32 0.0, %v2611
    %2613 = vdwg.mxu0
    %2614 = vmatprep.subr.mxu0 %v84
    %2615 = vmatpush1.msra.mxu0 %v83
    %2616 = vmatprep.subr.mxu0 %v88
    %2617 = vmatpush1.msra.mxu0 %v87
    %2618 = vmatprep.subr.mxu0 %v92
    %2619 = vmatpush1.msra.mxu0 %v91
    %2620 = vmatprep.subr.mxu0 %v96
    %2621 = vmatpush1.msra.mxu0 %v95
    %2622 = vmatprep.subr.mxu0 %v100
    %2623 = vmatpush1.msra.mxu0 %v99
    %2624 = vmatprep.subr.mxu0 %v104
    %2625 = vmatpush1.msra.mxu0 %v103
    %2626 = vmatprep.subr.mxu0 %v108
    %2627 = vmatpush1.msra.mxu0 %v107
    %2628 = vmatprep.subr.mxu0 %v112
    %2629 = vmatpush1.msra.mxu0 %v111
    %2630 = vmatprep.subr.mxu0 %v116
    %2631 = vmatpush1.msra.mxu0 %v115
    %2632 = vmatprep.subr.mxu0 %v120
    %2633 = vmatpush1.msra.mxu0 %v119
    %2634 = vmatprep.subr.mxu0 %v124
    %2635 = vmatpush1.msra.mxu0 %v123
    %2636 = vmatprep.subr.mxu0 %v128
    %2637 = vmatpush1.msra.mxu0 %v127
    %2638 = vmatprep.subr.mxu0 %v132
    %2639 = vmatpush1.msra.mxu0 %v131
    %2640 = vmatprep.subr.mxu0 %v136
    %2641 = vmatpush1.msra.mxu0 %v135
    %2642 = vmatprep.subr.mxu0 %v140
    %2643 = vmatpush1.msra.mxu0 %v139
    %2644 = vmatprep.subr.mxu0 %v144
    %2645 = vmatpush1.msra.mxu0 %v143
    %2646 = vmatprep.subr.mxu0 0.0
    %2647 = vmatpush1.msra.mxu0 0.0
    %2648 = vmatprep.subr.mxu0 0.0
    %2649 = vmatpush1.msra.mxu0 0.0
    %2650 = vmatprep.subr.mxu0 0.0
    %2651 = vmatpush1.msra.mxu0 0.0
    %2652 = vmatprep.subr.mxu0 0.0
    %2653 = vmatpush1.msra.mxu0 0.0
    %2654 = vmatprep.subr.mxu0 0.0
    %2655 = vmatpush1.msra.mxu0 0.0
    %2656 = vmatprep.subr.mxu0 0.0
    %2657 = vmatpush1.msra.mxu0 0.0
    %2658 = vmatprep.subr.mxu0 0.0
    %2659 = vmatpush1.msra.mxu0 0.0
    %2660 = vmatprep.subr.mxu0 0.0
    %2661 = vmatpush1.msra.mxu0 0.0
    %2662 = vmatprep.subr.mxu0 0.0
    %2663 = vmatpush1.msra.mxu0 0.0
    %2664 = vmatprep.subr.mxu0 0.0
    %2665 = vmatpush1.msra.mxu0 0.0
    %2666 = vmatprep.subr.mxu0 0.0
    %2667 = vmatpush1.msra.mxu0 0.0
    %2668 = vmatprep.subr.mxu0 0.0
    %2669 = vmatpush1.msra.mxu0 0.0
    %2670 = vmatprep.subr.mxu0 0.0
    %2671 = vmatpush1.msra.mxu0 0.0
    %2672 = vmatprep.subr.mxu0 0.0
    %2673 = vmatpush1.msra.mxu0 0.0
    %2674 = vmatprep.subr.mxu0 0.0
    %2675 = vmatpush1.msra.mxu0 0.0
    %2676 = vmatprep.subr.mxu0 0.0
    %2677 = vmatpush1.msra.mxu0 0.0
    %2678 = vmatprep.mubr.f32.mxu0 0.0
    %2679 = vmatmul.mubr.f32.gmra.mrb[0].mxu0 %v2250
    %v2680 = vpop.f32.mrb[0].mxu0
    %v2681 = vadd.f32 0.0, %v2680
    %v2682 = vpop.f32.mrb[0].mxu0
    %v2683 = vadd.f32 0.0, %v2682
    %2684 = vdwg.mxu0
    %v2685 = vadd.f32 %v2539, %v2610
    %v2686 = vadd.f32 %v2540, %v2612
    %v2687 = vadd.f32 %v2541, %v2681
    %v2688 = vadd.f32 %v2542, %v2683
    %v2689 = vxor.u32 %v2685, 2147483648
    %v2690 = vmul.f32 %v2689, 1.442695
    %v2691 = vpow.pop %v2690
    %v2692 = vadd.f32 %v2691, 1.0
    %v2693 = vrcp.pop %v2692
    %v2694 = vmul.f32 1.0, %v2693
    %v2695 = vxor.u32 %v2686, 2147483648
    %v2696 = vmul.f32 %v2695, 1.442695
    %v2697 = vpow.pop %v2696
    %v2698 = vadd.f32 %v2697, 1.0
    %v2699 = vrcp.pop %v2698
    %v2700 = vmul.f32 1.0, %v2699
    %v2701 = vtanh.pop %v2687
    %v2702 = vxor.u32 %v2688, 2147483648
    %v2703 = vmul.f32 %v2702, 1.442695
    %v2704 = vpow.pop %v2703
    %v2705 = vadd.f32 %v2704, 1.0
    %v2706 = vrcp.pop %v2705
    %v2707 = vmul.f32 1.0, %v2706
    %v2708 = vmul.f32 %v2700, %v2248
    %v2709 = vmul.f32 %v2694, %v2701
    %v2710 = vadd.f32 %v2708, %v2709
    %v2711 = vtanh.pop %v2710
    %v2712 = vmul.f32 %v2707, %v2711
    %2714 = vrot.lane.b32.xlu0 %v2537, 96
    %v2715 = vpop.permute.xlu0 %2714
    %v2716 = vsel %vm401, %v2715, 0
    %2718 = vmatprep.subr.mxu0 %v146
    %2719 = vmatpush1.msra.mxu0 %v145
    %2720 = vmatprep.subr.mxu0 %v149
    %2721 = vmatpush1.msra.mxu0 %v148
    %2722 = vmatprep.subr.mxu0 %v152
    %2723 = vmatpush1.msra.mxu0 %v151
    %2724 = vmatprep.subr.mxu0 %v155
    %2725 = vmatpush1.msra.mxu0 %v154
    %2726 = vmatprep.subr.mxu0 %v158
    %2727 = vmatpush1.msra.mxu0 %v157
    %2728 = vmatprep.subr.mxu0 %v161
    %2729 = vmatpush1.msra.mxu0 %v160
    %2730 = vmatprep.subr.mxu0 %v164
    %2731 = vmatpush1.msra.mxu0 %v163
    %2732 = vmatprep.subr.mxu0 %v167
    %2733 = vmatpush1.msra.mxu0 %v166
    %2734 = vmatprep.subr.mxu0 %v170
    %2735 = vmatpush1.msra.mxu0 %v169
    %2736 = vmatprep.subr.mxu0 %v173
    %2737 = vmatpush1.msra.mxu0 %v172
    %2738 = vmatprep.subr.mxu0 %v176
    %2739 = vmatpush1.msra.mxu0 %v175
    %2740 = vmatprep.subr.mxu0 %v179
    %2741 = vmatpush1.msra.mxu0 %v178
    %2742 = vmatprep.subr.mxu0 %v182
    %2743 = vmatpush1.msra.mxu0 %v181
    %2744 = vmatprep.subr.mxu0 %v185
    %2745 = vmatpush1.msra.mxu0 %v184
    %2746 = vmatprep.subr.mxu0 %v188
    %2747 = vmatpush1.msra.mxu0 %v187
    %2748 = vmatprep.subr.mxu0 %v191
    %2749 = vmatpush1.msra.mxu0 %v190
    %2750 = vmatprep.subr.mxu0 %v194
    %2751 = vmatpush1.msra.mxu0 %v193
    %2752 = vmatprep.subr.mxu0 %v197
    %2753 = vmatpush1.msra.mxu0 %v196
    %2754 = vmatprep.subr.mxu0 %v200
    %2755 = vmatpush1.msra.mxu0 %v199
    %2756 = vmatprep.subr.mxu0 %v203
    %2757 = vmatpush1.msra.mxu0 %v202
    %2758 = vmatprep.subr.mxu0 0.0
    %2759 = vmatpush1.msra.mxu0 0.0
    %2760 = vmatprep.subr.mxu0 0.0
    %2761 = vmatpush1.msra.mxu0 0.0
    %2762 = vmatprep.subr.mxu0 0.0
    %2763 = vmatpush1.msra.mxu0 0.0
    %2764 = vmatprep.subr.mxu0 0.0
    %2765 = vmatpush1.msra.mxu0 0.0
    %2766 = vmatprep.subr.mxu0 0.0
    %2767 = vmatpush1.msra.mxu0 0.0
    %2768 = vmatprep.subr.mxu0 0.0
    %2769 = vmatpush1.msra.mxu0 0.0
    %2770 = vmatprep.subr.mxu0 0.0
    %2771 = vmatpush1.msra.mxu0 0.0
    %2772 = vmatprep.subr.mxu0 0.0
    %2773 = vmatpush1.msra.mxu0 0.0
    %2774 = vmatprep.subr.mxu0 0.0
    %2775 = vmatpush1.msra.mxu0 0.0
    %2776 = vmatprep.subr.mxu0 0.0
    %2777 = vmatpush1.msra.mxu0 0.0
    %2778 = vmatprep.subr.mxu0 0.0
    %2779 = vmatpush1.msra.mxu0 0.0
    %2780 = vmatprep.subr.mxu0 0.0
    %2781 = vmatpush1.msra.mxu0 0.0
    %2782 = vmatprep.mubr.f32.mxu0 %v2716
    %2783 = vmatmul.mubr.f32.gmra.mrb[0].mxu0 %v2712
    %v2784 = vpop.f32.mrb[0].mxu0
    %v2785 = vadd.f32 %v389, %v2784
    %v2786 = vpop.f32.mrb[0].mxu0
    %v2787 = vadd.f32 %v393, %v2786
    %2788 = vdwg.mxu0
    %2789 = vmatprep.subr.mxu0 0.0
    %2790 = vmatpush1.msra.mxu0 %v147
    %2791 = vmatprep.subr.mxu0 0.0
    %2792 = vmatpush1.msra.mxu0 %v150
    %2793 = vmatprep.subr.mxu0 0.0
    %2794 = vmatpush1.msra.mxu0 %v153
    %2795 = vmatprep.subr.mxu0 0.0
    %2796 = vmatpush1.msra.mxu0 %v156
    %2797 = vmatprep.subr.mxu0 0.0
    %2798 = vmatpush1.msra.mxu0 %v159
    %2799 = vmatprep.subr.mxu0 0.0
    %2800 = vmatpush1.msra.mxu0 %v162
    %2801 = vmatprep.subr.mxu0 0.0
    %2802 = vmatpush1.msra.mxu0 %v165
    %2803 = vmatprep.subr.mxu0 0.0
    %2804 = vmatpush1.msra.mxu0 %v168
    %2805 = vmatprep.subr.mxu0 0.0
    %2806 = vmatpush1.msra.mxu0 %v171
    %2807 = vmatprep.subr.mxu0 0.0
    %2808 = vmatpush1.msra.mxu0 %v174
    %2809 = vmatprep.subr.mxu0 0.0
    %2810 = vmatpush1.msra.mxu0 %v177
    %2811 = vmatprep.subr.mxu0 0.0
    %2812 = vmatpush1.msra.mxu0 %v180
    %2813 = vmatprep.subr.mxu0 0.0
    %2814 = vmatpush1.msra.mxu0 %v183
    %2815 = vmatprep.subr.mxu0 0.0
    %2816 = vmatpush1.msra.mxu0 %v186
    %2817 = vmatprep.subr.mxu0 0.0
    %2818 = vmatpush1.msra.mxu0 %v189
    %2819 = vmatprep.subr.mxu0 0.0
    %2820 = vmatpush1.msra.mxu0 %v192
    %2821 = vmatprep.subr.mxu0 0.0
    %2822 = vmatpush1.msra.mxu0 %v195
    %2823 = vmatprep.subr.mxu0 0.0
    %2824 = vmatpush1.msra.mxu0 %v198
    %2825 = vmatprep.subr.mxu0 0.0
    %2826 = vmatpush1.msra.mxu0 %v201
    %2827 = vmatprep.subr.mxu0 0.0
    %2828 = vmatpush1.msra.mxu0 %v204
    %2829 = vmatprep.subr.mxu0 0.0
    %2830 = vmatpush1.msra.mxu0 0.0
    %2831 = vmatprep.subr.mxu0 0.0
    %2832 = vmatpush1.msra.mxu0 0.0
    %2833 = vmatprep.subr.mxu0 0.0
    %2834 = vmatpush1.msra.mxu0 0.0
    %2835 = vmatprep.subr.mxu0 0.0
    %2836 = vmatpush1.msra.mxu0 0.0
    %2837 = vmatprep.subr.mxu0 0.0
    %2838 = vmatpush1.msra.mxu0 0.0
    %2839 = vmatprep.subr.mxu0 0.0
    %2840 = vmatpush1.msra.mxu0 0.0
    %2841 = vmatprep.subr.mxu0 0.0
    %2842 = vmatpush1.msra.mxu0 0.0
    %2843 = vmatprep.subr.mxu0 0.0
    %2844 = vmatpush1.msra.mxu0 0.0
    %2845 = vmatprep.subr.mxu0 0.0
    %2846 = vmatpush1.msra.mxu0 0.0
    %2847 = vmatprep.subr.mxu0 0.0
    %2848 = vmatpush1.msra.mxu0 0.0
    %2849 = vmatprep.subr.mxu0 0.0
    %2850 = vmatpush1.msra.mxu0 0.0
    %2851 = vmatprep.subr.mxu0 0.0
    %2852 = vmatpush1.msra.mxu0 0.0
    %2853 = vmatprep.mubr.f32.mxu0 %v2716
    %2854 = vmatmul.mubr.f32.gmra.mrb[0].mxu0 %v2712
    %v2855 = vpop.f32.mrb[0].mxu0
    %v2856 = vadd.f32 %v397, %v2855
    %v2857 = vpop.f32.mrb[0].mxu0
    %2858 = vdwg.mxu0
    %v2859 = vxor.u32 %v2785, 2147483648
    %v2860 = vxor.u32 %v2787, 2147483648
    %v2861 = vmul.f32 %v2859, 1.442695
    %v2862 = vpow.pop %v2861
    %v2863 = vmul.f32 %v2860, 1.442695
    %v2864 = vpow.pop %v2863
    %v2865 = vadd.f32 %v2862, 1.0
    %v2866 = vadd.f32 %v2864, 1.0
    %v2867 = vrcp.pop %v2865
    %v2868 = vmul.f32 1.0, %v2867
    %v2869 = vrcp.pop %v2866
    %v2870 = vmul.f32 1.0, %v2869
    %v2871 = vtanh.pop %v2856
    %v2872 = vmul.f32 %v2870, %v2871
    %v2874 = vsel %vm401, %v2531, 0
    %2876 = vmatprep.subr.mxu0 0.0
    %2877 = vmatpush1.msra.mxu0 %v206
    %2878 = vmatprep.subr.mxu0 0.0
    %2879 = vmatpush1.msra.mxu0 %v207
    %2880 = vmatprep.subr.mxu0 0.0
    %2881 = vmatpush1.msra.mxu0 %v208
    %2882 = vmatprep.subr.mxu0 0.0
    %2883 = vmatpush1.msra.mxu0 %v209
    %2884 = vmatprep.subr.mxu0 0.0
    %2885 = vmatpush1.msra.mxu0 0.0
    %2886 = vmatprep.subr.mxu0 0.0
    %2887 = vmatpush1.msra.mxu0 0.0
    %2888 = vmatprep.subr.mxu0 0.0
    %2889 = vmatpush1.msra.mxu0 0.0
    %2890 = vmatprep.subr.mxu0 0.0
    %2891 = vmatpush1.msra.mxu0 0.0
    %2892 = vmatprep.subr.mxu0 0.0
    %2893 = vmatpush1.msra.mxu0 0.0
    %2894 = vmatprep.subr.mxu0 0.0
    %2895 = vmatpush1.msra.mxu0 0.0
    %2896 = vmatprep.subr.mxu0 0.0
    %2897 = vmatpush1.msra.mxu0 0.0
    %2898 = vmatprep.subr.mxu0 0.0
    %2899 = vmatpush1.msra.mxu0 0.0
    %2900 = vmatprep.subr.mxu0 0.0
    %2901 = vmatpush1.msra.mxu0 0.0
    %2902 = vmatprep.subr.mxu0 0.0
    %2903 = vmatpush1.msra.mxu0 0.0
    %2904 = vmatprep.subr.mxu0 0.0
    %2905 = vmatpush1.msra.mxu0 0.0
    %2906 = vmatprep.subr.mxu0 0.0
    %2907 = vmatpush1.msra.mxu0 0.0
    %2908 = vmatprep.subr.mxu0 0.0
    %2909 = vmatpush1.msra.mxu0 0.0
    %2910 = vmatprep.subr.mxu0 0.0
    %2911 = vmatpush1.msra.mxu0 0.0
    %2912 = vmatprep.subr.mxu0 0.0
    %2913 = vmatpush1.msra.mxu0 0.0
    %2914 = vmatprep.subr.mxu0 0.0
    %2915 = vmatpush1.msra.mxu0 0.0
    %2916 = vmatprep.subr.mxu0 0.0
    %2917 = vmatpush1.msra.mxu0 0.0
    %2918 = vmatprep.subr.mxu0 0.0
    %2919 = vmatpush1.msra.mxu0 0.0
    %2920 = vmatprep.subr.mxu0 0.0
    %2921 = vmatpush1.msra.mxu0 0.0
    %2922 = vmatprep.subr.mxu0 0.0
    %2923 = vmatpush1.msra.mxu0 0.0
    %2924 = vmatprep.subr.mxu0 0.0
    %2925 = vmatpush1.msra.mxu0 0.0
    %2926 = vmatprep.subr.mxu0 0.0
    %2927 = vmatpush1.msra.mxu0 0.0
    %2928 = vmatprep.subr.mxu0 0.0
    %2929 = vmatpush1.msra.mxu0 0.0
    %2930 = vmatprep.subr.mxu0 0.0
    %2931 = vmatpush1.msra.mxu0 0.0
    %2932 = vmatprep.subr.mxu0 0.0
    %2933 = vmatpush1.msra.mxu0 0.0
    %2934 = vmatprep.subr.mxu0 0.0
    %2935 = vmatpush1.msra.mxu0 0.0
    %2936 = vmatprep.subr.mxu0 0.0
    %2937 = vmatpush1.msra.mxu0 0.0
    %2938 = vmatprep.subr.mxu0 0.0
    %2939 = vmatpush1.msra.mxu0 0.0
    %2940 = vmatprep.mubr.f32.mxu0 0.0
    %2941 = vmatmul.mubr.f32.gmra.mrb[0].mxu0 %v2874
    %v2942 = vpop.f32.mrb[0].mxu0
    %v2943 = vadd.f32 %v564, %v2942
    %v2944 = vpop.f32.mrb[0].mxu0
    %2945 = vdwg.mxu0
    %v2946 = vtanh.pop %v2943
    %v2947 = vmul.f32 %v2872, %v2946
    %v2948 = vsel %vm401, %v2947, 0.0
    %2949 = vadd.xlane.f32.xlu0 %v2948
    %v2950 = vpop.xlane.xlu0 %2949
    %2952 = vrot.lane.b32.xlu0 %v2947, 96
    %v2953 = vpop.permute.xlu0 %2952
    %v2955 = vsel %vm401, %v2953, 0.0
    %2956 = vadd.xlane.f32.xlu0 %v2955
    %v2957 = vpop.xlane.xlu0 %2956
    %2958 = vrot.lane.b32.xlu0 %v2947, 64
    %v2959 = vpop.permute.xlu0 %2958
    %v2961 = vsel %vm401, %v2959, 0.0
    %2962 = vadd.xlane.f32.xlu0 %v2961
    %v2963 = vpop.xlane.xlu0 %2962
    %v2964 = vmax.f32 %v2950, %v2957
    %v2965 = vmax.f32 %v2964, %v2963
    %v2966 = vsub.f32 %v2950, %v2965
    %v2967 = vmul.f32 %v2966, 1.442695
    %v2968 = vpow.pop %v2967
    %v2969 = vsub.f32 %v2957, %v2965
    %v2970 = vmul.f32 %v2969, 1.442695
    %v2971 = vpow.pop %v2970
    %v2972 = vsub.f32 %v2963, %v2965
    %v2973 = vmul.f32 %v2972, 1.442695
    %v2974 = vpow.pop %v2973
    %v2975 = vadd.f32 %v2968, %v2971
    %v2976 = vadd.f32 %v2975, %v2974
    %v2977 = vmul.f32 %v2968, %v2872
    %v2978 = vmul.f32 %v2971, %v2872
    %2980 = vrot.lane.b32.xlu0 %v2978, 96
    %v2981 = vpop.permute.xlu0 %2980
    %v2983 = vadd.f32 %v2977, %v2981
    %v2984 = vmul.f32 %v2974, %v2872
    %2986 = vrot.lane.b32.xlu0 %v2984, 64
    %v2987 = vpop.permute.xlu0 %2986
    %v2989 = vadd.f32 %v2983, %v2987
    %v2990 = vrcp.pop %v2976
    %v2991 = vmul.f32 %v2989, %v2990
    %v2992 = vmul.f32 %v2868, %v2531
    %v2993 = vadd.f32 %v2992, %v2991
    %v2994 = vtanh.pop %v2993
    %2996 = vrot.lane.b32.xlu0 %v2994, 32
    %v2997 = vpop.permute.xlu0 %2996
    %v2999 = vmul.f32 %v2868, %v2997
    %s3000 = scalar_lea.vmem [#allocation3], 192
    %v3001 = vld [vmem:[%s3000] sm:$0xff]
    %v3002 = vld [vmem:[%s3000 + $0x8] sm:$0xff]
    %v3003 = vld [vmem:[%s3000 + $0x10] sm:$0xff]
    %v3004 = vld [vmem:[%s3000 + $0x18] sm:$0xff]
    %3005 = vmatprep.subr.mxu0 %v82
    %3006 = vmatpush1.msra.mxu0 %v81
    %3007 = vmatprep.subr.mxu0 %v86
    %3008 = vmatpush1.msra.mxu0 %v85
    %3009 = vmatprep.subr.mxu0 %v90
    %3010 = vmatpush1.msra.mxu0 %v89
    %3011 = vmatprep.subr.mxu0 %v94
    %3012 = vmatpush1.msra.mxu0 %v93
    %3013 = vmatprep.subr.mxu0 %v98
    %3014 = vmatpush1.msra.mxu0 %v97
    %3015 = vmatprep.subr.mxu0 %v102
    %3016 = vmatpush1.msra.mxu0 %v101
    %3017 = vmatprep.subr.mxu0 %v106
    %3018 = vmatpush1.msra.mxu0 %v105
    %3019 = vmatprep.subr.mxu0 %v110
    %3020 = vmatpush1.msra.mxu0 %v109
    %3021 = vmatprep.subr.mxu0 %v114
    %3022 = vmatpush1.msra.mxu0 %v113
    %3023 = vmatprep.subr.mxu0 %v118
    %3024 = vmatpush1.msra.mxu0 %v117
    %3025 = vmatprep.subr.mxu0 %v122
    %3026 = vmatpush1.msra.mxu0 %v121
    %3027 = vmatprep.subr.mxu0 %v126
    %3028 = vmatpush1.msra.mxu0 %v125
    %3029 = vmatprep.subr.mxu0 %v130
    %3030 = vmatpush1.msra.mxu0 %v129
    %3031 = vmatprep.subr.mxu0 %v134
    %3032 = vmatpush1.msra.mxu0 %v133
    %3033 = vmatprep.subr.mxu0 %v138
    %3034 = vmatpush1.msra.mxu0 %v137
    %3035 = vmatprep.subr.mxu0 %v142
    %3036 = vmatpush1.msra.mxu0 %v141
    %3037 = vmatprep.subr.mxu0 0.0
    %3038 = vmatpush1.msra.mxu0 0.0
    %3039 = vmatprep.subr.mxu0 0.0
    %3040 = vmatpush1.msra.mxu0 0.0
    %3041 = vmatprep.subr.mxu0 0.0
    %3042 = vmatpush1.msra.mxu0 0.0
    %3043 = vmatprep.subr.mxu0 0.0
    %3044 = vmatpush1.msra.mxu0 0.0
    %3045 = vmatprep.subr.mxu0 0.0
    %3046 = vmatpush1.msra.mxu0 0.0
    %3047 = vmatprep.subr.mxu0 0.0
    %3048 = vmatpush1.msra.mxu0 0.0
    %3049 = vmatprep.subr.mxu0 0.0
    %3050 = vmatpush1.msra.mxu0 0.0
    %3051 = vmatprep.subr.mxu0 0.0
    %3052 = vmatpush1.msra.mxu0 0.0
    %3053 = vmatprep.subr.mxu0 0.0
    %3054 = vmatpush1.msra.mxu0 0.0
    %3055 = vmatprep.subr.mxu0 0.0
    %3056 = vmatpush1.msra.mxu0 0.0
    %3057 = vmatprep.subr.mxu0 0.0
    %3058 = vmatpush1.msra.mxu0 0.0
    %3059 = vmatprep.subr.mxu0 0.0
    %3060 = vmatpush1.msra.mxu0 0.0
    %3061 = vmatprep.subr.mxu0 0.0
    %3062 = vmatpush1.msra.mxu0 0.0
    %3063 = vmatprep.subr.mxu0 0.0
    %3064 = vmatpush1.msra.mxu0 0.0
    %3065 = vmatprep.subr.mxu0 0.0
    %3066 = vmatpush1.msra.mxu0 0.0
    %3067 = vmatprep.subr.mxu0 0.0
    %3068 = vmatpush1.msra.mxu0 0.0
    %3069 = vmatprep.mubr.f32.mxu0 0.0
    %3070 = vmatmul.mubr.f32.gmra.mrb[0].mxu0 %v2712
    %v3071 = vpop.f32.mrb[0].mxu0
    %v3072 = vadd.f32 0.0, %v3071
    %v3073 = vpop.f32.mrb[0].mxu0
    %v3074 = vadd.f32 0.0, %v3073
    %3075 = vdwg.mxu0
    %3076 = vmatprep.subr.mxu0 %v84
    %3077 = vmatpush1.msra.mxu0 %v83
    %3078 = vmatprep.subr.mxu0 %v88
    %3079 = vmatpush1.msra.mxu0 %v87
    %3080 = vmatprep.subr.mxu0 %v92
    %3081 = vmatpush1.msra.mxu0 %v91
    %3082 = vmatprep.subr.mxu0 %v96
    %3083 = vmatpush1.msra.mxu0 %v95
    %3084 = vmatprep.subr.mxu0 %v100
    %3085 = vmatpush1.msra.mxu0 %v99
    %3086 = vmatprep.subr.mxu0 %v104
    %3087 = vmatpush1.msra.mxu0 %v103
    %3088 = vmatprep.subr.mxu0 %v108
    %3089 = vmatpush1.msra.mxu0 %v107
    %3090 = vmatprep.subr.mxu0 %v112
    %3091 = vmatpush1.msra.mxu0 %v111
    %3092 = vmatprep.subr.mxu0 %v116
    %3093 = vmatpush1.msra.mxu0 %v115
    %3094 = vmatprep.subr.mxu0 %v120
    %3095 = vmatpush1.msra.mxu0 %v119
    %3096 = vmatprep.subr.mxu0 %v124
    %3097 = vmatpush1.msra.mxu0 %v123
    %3098 = vmatprep.subr.mxu0 %v128
    %3099 = vmatpush1.msra.mxu0 %v127
    %3100 = vmatprep.subr.mxu0 %v132
    %3101 = vmatpush1.msra.mxu0 %v131
    %3102 = vmatprep.subr.mxu0 %v136
    %3103 = vmatpush1.msra.mxu0 %v135
    %3104 = vmatprep.subr.mxu0 %v140
    %3105 = vmatpush1.msra.mxu0 %v139
    %3106 = vmatprep.subr.mxu0 %v144
    %3107 = vmatpush1.msra.mxu0 %v143
    %3108 = vmatprep.subr.mxu0 0.0
    %3109 = vmatpush1.msra.mxu0 0.0
    %3110 = vmatprep.subr.mxu0 0.0
    %3111 = vmatpush1.msra.mxu0 0.0
    %3112 = vmatprep.subr.mxu0 0.0
    %3113 = vmatpush1.msra.mxu0 0.0
    %3114 = vmatprep.subr.mxu0 0.0
    %3115 = vmatpush1.msra.mxu0 0.0
    %3116 = vmatprep.subr.mxu0 0.0
    %3117 = vmatpush1.msra.mxu0 0.0
    %3118 = vmatprep.subr.mxu0 0.0
    %3119 = vmatpush1.msra.mxu0 0.0
    %3120 = vmatprep.subr.mxu0 0.0
    %3121 = vmatpush1.msra.mxu0 0.0
    %3122 = vmatprep.subr.mxu0 0.0
    %3123 = vmatpush1.msra.mxu0 0.0
    %3124 = vmatprep.subr.mxu0 0.0
    %3125 = vmatpush1.msra.mxu0 0.0
    %3126 = vmatprep.subr.mxu0 0.0
    %3127 = vmatpush1.msra.mxu0 0.0
    %3128 = vmatprep.subr.mxu0 0.0
    %3129 = vmatpush1.msra.mxu0 0.0
    %3130 = vmatprep.subr.mxu0 0.0
    %3131 = vmatpush1.msra.mxu0 0.0
    %3132 = vmatprep.subr.mxu0 0.0
    %3133 = vmatpush1.msra.mxu0 0.0
    %3134 = vmatprep.subr.mxu0 0.0
    %3135 = vmatpush1.msra.mxu0 0.0
    %3136 = vmatprep.subr.mxu0 0.0
    %3137 = vmatpush1.msra.mxu0 0.0
    %3138 = vmatprep.subr.mxu0 0.0
    %3139 = vmatpush1.msra.mxu0 0.0
    %3140 = vmatprep.mubr.f32.mxu0 0.0
    %3141 = vmatmul.mubr.f32.gmra.mrb[0].mxu0 %v2712
    %v3142 = vpop.f32.mrb[0].mxu0
    %v3143 = vadd.f32 0.0, %v3142
    %v3144 = vpop.f32.mrb[0].mxu0
    %v3145 = vadd.f32 0.0, %v3144
    %3146 = vdwg.mxu0
    %v3147 = vadd.f32 %v3001, %v3072
    %v3148 = vadd.f32 %v3002, %v3074
    %v3149 = vadd.f32 %v3003, %v3143
    %v3150 = vadd.f32 %v3004, %v3145
    %v3151 = vxor.u32 %v3147, 2147483648
    %v3152 = vmul.f32 %v3151, 1.442695
    %v3153 = vpow.pop %v3152
    %v3154 = vadd.f32 %v3153, 1.0
    %v3155 = vrcp.pop %v3154
    %v3156 = vmul.f32 1.0, %v3155
    %v3157 = vxor.u32 %v3148, 2147483648
    %v3158 = vmul.f32 %v3157, 1.442695
    %v3159 = vpow.pop %v3158
    %v3160 = vadd.f32 %v3159, 1.0
    %v3161 = vrcp.pop %v3160
    %v3162 = vmul.f32 1.0, %v3161
    %v3163 = vtanh.pop %v3149
    %v3164 = vxor.u32 %v3150, 2147483648
    %v3165 = vmul.f32 %v3164, 1.442695
    %v3166 = vpow.pop %v3165
    %v3167 = vadd.f32 %v3166, 1.0
    %v3168 = vrcp.pop %v3167
    %v3169 = vmul.f32 1.0, %v3168
    %v3170 = vmul.f32 %v3162, %v2710
    %v3171 = vmul.f32 %v3156, %v3163
    %v3172 = vadd.f32 %v3170, %v3171
    %v3173 = vtanh.pop %v3172
    %v3174 = vmul.f32 %v3169, %v3173
    %3176 = vrot.lane.b32.xlu0 %v2999, 96
    %v3177 = vpop.permute.xlu0 %3176
    %v3178 = vsel %vm401, %v3177, 0
    %3180 = vmatprep.subr.mxu0 %v146
    %3181 = vmatpush1.msra.mxu0 %v145
    %3182 = vmatprep.subr.mxu0 %v149
    %3183 = vmatpush1.msra.mxu0 %v148
    %3184 = vmatprep.subr.mxu0 %v152
    %3185 = vmatpush1.msra.mxu0 %v151
    %3186 = vmatprep.subr.mxu0 %v155
    %3187 = vmatpush1.msra.mxu0 %v154
    %3188 = vmatprep.subr.mxu0 %v158
    %3189 = vmatpush1.msra.mxu0 %v157
    %3190 = vmatprep.subr.mxu0 %v161
    %3191 = vmatpush1.msra.mxu0 %v160
    %3192 = vmatprep.subr.mxu0 %v164
    %3193 = vmatpush1.msra.mxu0 %v163
    %3194 = vmatprep.subr.mxu0 %v167
    %3195 = vmatpush1.msra.mxu0 %v166
    %3196 = vmatprep.subr.mxu0 %v170
    %3197 = vmatpush1.msra.mxu0 %v169
    %3198 = vmatprep.subr.mxu0 %v173
    %3199 = vmatpush1.msra.mxu0 %v172
    %3200 = vmatprep.subr.mxu0 %v176
    %3201 = vmatpush1.msra.mxu0 %v175
    %3202 = vmatprep.subr.mxu0 %v179
    %3203 = vmatpush1.msra.mxu0 %v178
    %3204 = vmatprep.subr.mxu0 %v182
    %3205 = vmatpush1.msra.mxu0 %v181
    %3206 = vmatprep.subr.mxu0 %v185
    %3207 = vmatpush1.msra.mxu0 %v184
    %3208 = vmatprep.subr.mxu0 %v188
    %3209 = vmatpush1.msra.mxu0 %v187
    %3210 = vmatprep.subr.mxu0 %v191
    %3211 = vmatpush1.msra.mxu0 %v190
    %3212 = vmatprep.subr.mxu0 %v194
    %3213 = vmatpush1.msra.mxu0 %v193
    %3214 = vmatprep.subr.mxu0 %v197
    %3215 = vmatpush1.msra.mxu0 %v196
    %3216 = vmatprep.subr.mxu0 %v200
    %3217 = vmatpush1.msra.mxu0 %v199
    %3218 = vmatprep.subr.mxu0 %v203
    %3219 = vmatpush1.msra.mxu0 %v202
    %3220 = vmatprep.subr.mxu0 0.0
    %3221 = vmatpush1.msra.mxu0 0.0
    %3222 = vmatprep.subr.mxu0 0.0
    %3223 = vmatpush1.msra.mxu0 0.0
    %3224 = vmatprep.subr.mxu0 0.0
    %3225 = vmatpush1.msra.mxu0 0.0
    %3226 = vmatprep.subr.mxu0 0.0
    %3227 = vmatpush1.msra.mxu0 0.0
    %3228 = vmatprep.subr.mxu0 0.0
    %3229 = vmatpush1.msra.mxu0 0.0
    %3230 = vmatprep.subr.mxu0 0.0
    %3231 = vmatpush1.msra.mxu0 0.0
    %3232 = vmatprep.subr.mxu0 0.0
    %3233 = vmatpush1.msra.mxu0 0.0
    %3234 = vmatprep.subr.mxu0 0.0
    %3235 = vmatpush1.msra.mxu0 0.0
    %3236 = vmatprep.subr.mxu0 0.0
    %3237 = vmatpush1.msra.mxu0 0.0
    %3238 = vmatprep.subr.mxu0 0.0
    %3239 = vmatpush1.msra.mxu0 0.0
    %3240 = vmatprep.subr.mxu0 0.0
    %3241 = vmatpush1.msra.mxu0 0.0
    %3242 = vmatprep.subr.mxu0 0.0
    %3243 = vmatpush1.msra.mxu0 0.0
    %3244 = vmatprep.mubr.f32.mxu0 %v3178
    %3245 = vmatmul.mubr.f32.gmra.mrb[0].mxu0 %v3174
    %v3246 = vpop.f32.mrb[0].mxu0
    %v3247 = vadd.f32 %v389, %v3246
    %v3248 = vpop.f32.mrb[0].mxu0
    %v3249 = vadd.f32 %v393, %v3248
    %3250 = vdwg.mxu0
    %3251 = vmatprep.subr.mxu0 0.0
    %3252 = vmatpush1.msra.mxu0 %v147
    %3253 = vmatprep.subr.mxu0 0.0
    %3254 = vmatpush1.msra.mxu0 %v150
    %3255 = vmatprep.subr.mxu0 0.0
    %3256 = vmatpush1.msra.mxu0 %v153
    %3257 = vmatprep.subr.mxu0 0.0
    %3258 = vmatpush1.msra.mxu0 %v156
    %3259 = vmatprep.subr.mxu0 0.0
    %3260 = vmatpush1.msra.mxu0 %v159
    %3261 = vmatprep.subr.mxu0 0.0
    %3262 = vmatpush1.msra.mxu0 %v162
    %3263 = vmatprep.subr.mxu0 0.0
    %3264 = vmatpush1.msra.mxu0 %v165
    %3265 = vmatprep.subr.mxu0 0.0
    %3266 = vmatpush1.msra.mxu0 %v168
    %3267 = vmatprep.subr.mxu0 0.0
    %3268 = vmatpush1.msra.mxu0 %v171
    %3269 = vmatprep.subr.mxu0 0.0
    %3270 = vmatpush1.msra.mxu0 %v174
    %3271 = vmatprep.subr.mxu0 0.0
    %3272 = vmatpush1.msra.mxu0 %v177
    %3273 = vmatprep.subr.mxu0 0.0
    %3274 = vmatpush1.msra.mxu0 %v180
    %3275 = vmatprep.subr.mxu0 0.0
    %3276 = vmatpush1.msra.mxu0 %v183
    %3277 = vmatprep.subr.mxu0 0.0
    %3278 = vmatpush1.msra.mxu0 %v186
    %3279 = vmatprep.subr.mxu0 0.0
    %3280 = vmatpush1.msra.mxu0 %v189
    %3281 = vmatprep.subr.mxu0 0.0
    %3282 = vmatpush1.msra.mxu0 %v192
    %3283 = vmatprep.subr.mxu0 0.0
    %3284 = vmatpush1.msra.mxu0 %v195
    %3285 = vmatprep.subr.mxu0 0.0
    %3286 = vmatpush1.msra.mxu0 %v198
    %3287 = vmatprep.subr.mxu0 0.0
    %3288 = vmatpush1.msra.mxu0 %v201
    %3289 = vmatprep.subr.mxu0 0.0
    %3290 = vmatpush1.msra.mxu0 %v204
    %3291 = vmatprep.subr.mxu0 0.0
    %3292 = vmatpush1.msra.mxu0 0.0
    %3293 = vmatprep.subr.mxu0 0.0
    %3294 = vmatpush1.msra.mxu0 0.0
    %3295 = vmatprep.subr.mxu0 0.0
    %3296 = vmatpush1.msra.mxu0 0.0
    %3297 = vmatprep.subr.mxu0 0.0
    %3298 = vmatpush1.msra.mxu0 0.0
    %3299 = vmatprep.subr.mxu0 0.0
    %3300 = vmatpush1.msra.mxu0 0.0
    %3301 = vmatprep.subr.mxu0 0.0
    %3302 = vmatpush1.msra.mxu0 0.0
    %3303 = vmatprep.subr.mxu0 0.0
    %3304 = vmatpush1.msra.mxu0 0.0
    %3305 = vmatprep.subr.mxu0 0.0
    %3306 = vmatpush1.msra.mxu0 0.0
    %3307 = vmatprep.subr.mxu0 0.0
    %3308 = vmatpush1.msra.mxu0 0.0
    %3309 = vmatprep.subr.mxu0 0.0
    %3310 = vmatpush1.msra.mxu0 0.0
    %3311 = vmatprep.subr.mxu0 0.0
    %3312 = vmatpush1.msra.mxu0 0.0
    %3313 = vmatprep.subr.mxu0 0.0
    %3314 = vmatpush1.msra.mxu0 0.0
    %3315 = vmatprep.mubr.f32.mxu0 %v3178
    %3316 = vmatmul.mubr.f32.gmra.mrb[0].mxu0 %v3174
    %v3317 = vpop.f32.mrb[0].mxu0
    %v3318 = vadd.f32 %v397, %v3317
    %v3319 = vpop.f32.mrb[0].mxu0
    %3320 = vdwg.mxu0
    %v3321 = vxor.u32 %v3247, 2147483648
    %v3322 = vxor.u32 %v3249, 2147483648
    %v3323 = vmul.f32 %v3321, 1.442695
    %v3324 = vpow.pop %v3323
    %v3325 = vmul.f32 %v3322, 1.442695
    %v3326 = vpow.pop %v3325
    %v3327 = vadd.f32 %v3324, 1.0
    %v3328 = vadd.f32 %v3326, 1.0
    %v3329 = vrcp.pop %v3327
    %v3330 = vmul.f32 1.0, %v3329
    %v3331 = vrcp.pop %v3328
    %v3332 = vmul.f32 1.0, %v3331
    %v3333 = vtanh.pop %v3318
    %v3334 = vmul.f32 %v3332, %v3333
    %v3336 = vsel %vm401, %v2993, 0
    %3338 = vmatprep.subr.mxu0 0.0
    %3339 = vmatpush1.msra.mxu0 %v206
    %3340 = vmatprep.subr.mxu0 0.0
    %3341 = vmatpush1.msra.mxu0 %v207
    %3342 = vmatprep.subr.mxu0 0.0
    %3343 = vmatpush1.msra.mxu0 %v208
    %3344 = vmatprep.subr.mxu0 0.0
    %3345 = vmatpush1.msra.mxu0 %v209
    %3346 = vmatprep.subr.mxu0 0.0
    %3347 = vmatpush1.msra.mxu0 0.0
    %3348 = vmatprep.subr.mxu0 0.0
    %3349 = vmatpush1.msra.mxu0 0.0
    %3350 = vmatprep.subr.mxu0 0.0
    %3351 = vmatpush1.msra.mxu0 0.0
    %3352 = vmatprep.subr.mxu0 0.0
    %3353 = vmatpush1.msra.mxu0 0.0
    %3354 = vmatprep.subr.mxu0 0.0
    %3355 = vmatpush1.msra.mxu0 0.0
    %3356 = vmatprep.subr.mxu0 0.0
    %3357 = vmatpush1.msra.mxu0 0.0
    %3358 = vmatprep.subr.mxu0 0.0
    %3359 = vmatpush1.msra.mxu0 0.0
    %3360 = vmatprep.subr.mxu0 0.0
    %3361 = vmatpush1.msra.mxu0 0.0
    %3362 = vmatprep.subr.mxu0 0.0
    %3363 = vmatpush1.msra.mxu0 0.0
    %3364 = vmatprep.subr.mxu0 0.0
    %3365 = vmatpush1.msra.mxu0 0.0
    %3366 = vmatprep.subr.mxu0 0.0
    %3367 = vmatpush1.msra.mxu0 0.0
    %3368 = vmatprep.subr.mxu0 0.0
    %3369 = vmatpush1.msra.mxu0 0.0
    %3370 = vmatprep.subr.mxu0 0.0
    %3371 = vmatpush1.msra.mxu0 0.0
    %3372 = vmatprep.subr.mxu0 0.0
    %3373 = vmatpush1.msra.mxu0 0.0
    %3374 = vmatprep.subr.mxu0 0.0
    %3375 = vmatpush1.msra.mxu0 0.0
    %3376 = vmatprep.subr.mxu0 0.0
    %3377 = vmatpush1.msra.mxu0 0.0
    %3378 = vmatprep.subr.mxu0 0.0
    %3379 = vmatpush1.msra.mxu0 0.0
    %3380 = vmatprep.subr.mxu0 0.0
    %3381 = vmatpush1.msra.mxu0 0.0
    %3382 = vmatprep.subr.mxu0 0.0
    %3383 = vmatpush1.msra.mxu0 0.0
    %3384 = vmatprep.subr.mxu0 0.0
    %3385 = vmatpush1.msra.mxu0 0.0
    %3386 = vmatprep.subr.mxu0 0.0
    %3387 = vmatpush1.msra.mxu0 0.0
    %3388 = vmatprep.subr.mxu0 0.0
    %3389 = vmatpush1.msra.mxu0 0.0
    %3390 = vmatprep.subr.mxu0 0.0
    %3391 = vmatpush1.msra.mxu0 0.0
    %3392 = vmatprep.subr.mxu0 0.0
    %3393 = vmatpush1.msra.mxu0 0.0
    %3394 = vmatprep.subr.mxu0 0.0
    %3395 = vmatpush1.msra.mxu0 0.0
    %3396 = vmatprep.subr.mxu0 0.0
    %3397 = vmatpush1.msra.mxu0 0.0
    %3398 = vmatprep.subr.mxu0 0.0
    %3399 = vmatpush1.msra.mxu0 0.0
    %3400 = vmatprep.subr.mxu0 0.0
    %3401 = vmatpush1.msra.mxu0 0.0
    %3402 = vmatprep.mubr.f32.mxu0 0.0
    %3403 = vmatmul.mubr.f32.gmra.mrb[0].mxu0 %v3336
    %v3404 = vpop.f32.mrb[0].mxu0
    %v3405 = vadd.f32 %v564, %v3404
    %v3406 = vpop.f32.mrb[0].mxu0
    %3407 = vdwg.mxu0
    %v3408 = vtanh.pop %v3405
    %v3409 = vmul.f32 %v3334, %v3408
    %v3410 = vsel %vm401, %v3409, 0.0
    %3411 = vadd.xlane.f32.xlu0 %v3410
    %v3412 = vpop.xlane.xlu0 %3411
    %3414 = vrot.lane.b32.xlu0 %v3409, 96
    %v3415 = vpop.permute.xlu0 %3414
    %v3417 = vsel %vm401, %v3415, 0.0
    %3418 = vadd.xlane.f32.xlu0 %v3417
    %v3419 = vpop.xlane.xlu0 %3418
    %3420 = vrot.lane.b32.xlu0 %v3409, 64
    %v3421 = vpop.permute.xlu0 %3420
    %v3423 = vsel %vm401, %v3421, 0.0
    %3424 = vadd.xlane.f32.xlu0 %v3423
    %v3425 = vpop.xlane.xlu0 %3424
    %v3426 = vmax.f32 %v3412, %v3419
    %v3427 = vmax.f32 %v3426, %v3425
    %v3428 = vsub.f32 %v3412, %v3427
    %v3429 = vmul.f32 %v3428, 1.442695
    %v3430 = vpow.pop %v3429
    %v3431 = vsub.f32 %v3419, %v3427
    %v3432 = vmul.f32 %v3431, 1.442695
    %v3433 = vpow.pop %v3432
    %v3434 = vsub.f32 %v3425, %v3427
    %v3435 = vmul.f32 %v3434, 1.442695
    %v3436 = vpow.pop %v3435
    %v3437 = vadd.f32 %v3430, %v3433
    %v3438 = vadd.f32 %v3437, %v3436
    %v3439 = vmul.f32 %v3430, %v3334
    %v3440 = vmul.f32 %v3433, %v3334
    %3442 = vrot.lane.b32.xlu0 %v3440, 96
    %v3443 = vpop.permute.xlu0 %3442
    %v3445 = vadd.f32 %v3439, %v3443
    %v3446 = vmul.f32 %v3436, %v3334
    %3448 = vrot.lane.b32.xlu0 %v3446, 64
    %v3449 = vpop.permute.xlu0 %3448
    %v3451 = vadd.f32 %v3445, %v3449
    %v3452 = vrcp.pop %v3438
    %v3453 = vmul.f32 %v3451, %v3452
    %v3454 = vmul.f32 %v3330, %v2993
    %v3455 = vadd.f32 %v3454, %v3453
    %v3456 = vtanh.pop %v3455
    %3458 = vrot.lane.b32.xlu0 %v3456, 32
    %v3459 = vpop.permute.xlu0 %3458
    %v3461 = vmul.f32 %v3330, %v3459
    %s3462 = scalar_lea.vmem [#allocation3], 224
    %v3463 = vld [vmem:[%s3462] sm:$0xff]
    %v3464 = vld [vmem:[%s3462 + $0x8] sm:$0xff]
    %v3465 = vld [vmem:[%s3462 + $0x10] sm:$0xff]
    %v3466 = vld [vmem:[%s3462 + $0x18] sm:$0xff]
    %3467 = vmatprep.subr.mxu0 %v82
    %3468 = vmatpush1.msra.mxu0 %v81
    %3469 = vmatprep.subr.mxu0 %v86
    %3470 = vmatpush1.msra.mxu0 %v85
    %3471 = vmatprep.subr.mxu0 %v90
    %3472 = vmatpush1.msra.mxu0 %v89
    %3473 = vmatprep.subr.mxu0 %v94
    %3474 = vmatpush1.msra.mxu0 %v93
    %3475 = vmatprep.subr.mxu0 %v98
    %3476 = vmatpush1.msra.mxu0 %v97
    %3477 = vmatprep.subr.mxu0 %v102
    %3478 = vmatpush1.msra.mxu0 %v101
    %3479 = vmatprep.subr.mxu0 %v106
    %3480 = vmatpush1.msra.mxu0 %v105
    %3481 = vmatprep.subr.mxu0 %v110
    %3482 = vmatpush1.msra.mxu0 %v109
    %3483 = vmatprep.subr.mxu0 %v114
    %3484 = vmatpush1.msra.mxu0 %v113
    %3485 = vmatprep.subr.mxu0 %v118
    %3486 = vmatpush1.msra.mxu0 %v117
    %3487 = vmatprep.subr.mxu0 %v122
    %3488 = vmatpush1.msra.mxu0 %v121
    %3489 = vmatprep.subr.mxu0 %v126
    %3490 = vmatpush1.msra.mxu0 %v125
    %3491 = vmatprep.subr.mxu0 %v130
    %3492 = vmatpush1.msra.mxu0 %v129
    %3493 = vmatprep.subr.mxu0 %v134
    %3494 = vmatpush1.msra.mxu0 %v133
    %3495 = vmatprep.subr.mxu0 %v138
    %3496 = vmatpush1.msra.mxu0 %v137
    %3497 = vmatprep.subr.mxu0 %v142
    %3498 = vmatpush1.msra.mxu0 %v141
    %3499 = vmatprep.subr.mxu0 0.0
    %3500 = vmatpush1.msra.mxu0 0.0
    %3501 = vmatprep.subr.mxu0 0.0
    %3502 = vmatpush1.msra.mxu0 0.0
    %3503 = vmatprep.subr.mxu0 0.0
    %3504 = vmatpush1.msra.mxu0 0.0
    %3505 = vmatprep.subr.mxu0 0.0
    %3506 = vmatpush1.msra.mxu0 0.0
    %3507 = vmatprep.subr.mxu0 0.0
    %3508 = vmatpush1.msra.mxu0 0.0
    %3509 = vmatprep.subr.mxu0 0.0
    %3510 = vmatpush1.msra.mxu0 0.0
    %3511 = vmatprep.subr.mxu0 0.0
    %3512 = vmatpush1.msra.mxu0 0.0
    %3513 = vmatprep.subr.mxu0 0.0
    %3514 = vmatpush1.msra.mxu0 0.0
    %3515 = vmatprep.subr.mxu0 0.0
    %3516 = vmatpush1.msra.mxu0 0.0
    %3517 = vmatprep.subr.mxu0 0.0
    %3518 = vmatpush1.msra.mxu0 0.0
    %3519 = vmatprep.subr.mxu0 0.0
    %3520 = vmatpush1.msra.mxu0 0.0
    %3521 = vmatprep.subr.mxu0 0.0
    %3522 = vmatpush1.msra.mxu0 0.0
    %3523 = vmatprep.subr.mxu0 0.0
    %3524 = vmatpush1.msra.mxu0 0.0
    %3525 = vmatprep.subr.mxu0 0.0
    %3526 = vmatpush1.msra.mxu0 0.0
    %3527 = vmatprep.subr.mxu0 0.0
    %3528 = vmatpush1.msra.mxu0 0.0
    %3529 = vmatprep.subr.mxu0 0.0
    %3530 = vmatpush1.msra.mxu0 0.0
    %3531 = vmatprep.mubr.f32.mxu0 0.0
    %3532 = vmatmul.mubr.f32.gmra.mrb[0].mxu0 %v3174
    %v3533 = vpop.f32.mrb[0].mxu0
    %v3534 = vadd.f32 0.0, %v3533
    %v3535 = vpop.f32.mrb[0].mxu0
    %v3536 = vadd.f32 0.0, %v3535
    %3537 = vdwg.mxu0
    %3538 = vmatprep.subr.mxu0 %v84
    %3539 = vmatpush1.msra.mxu0 %v83
    %3540 = vmatprep.subr.mxu0 %v88
    %3541 = vmatpush1.msra.mxu0 %v87
    %3542 = vmatprep.subr.mxu0 %v92
    %3543 = vmatpush1.msra.mxu0 %v91
    %3544 = vmatprep.subr.mxu0 %v96
    %3545 = vmatpush1.msra.mxu0 %v95
    %3546 = vmatprep.subr.mxu0 %v100
    %3547 = vmatpush1.msra.mxu0 %v99
    %3548 = vmatprep.subr.mxu0 %v104
    %3549 = vmatpush1.msra.mxu0 %v103
    %3550 = vmatprep.subr.mxu0 %v108
    %3551 = vmatpush1.msra.mxu0 %v107
    %3552 = vmatprep.subr.mxu0 %v112
    %3553 = vmatpush1.msra.mxu0 %v111
    %3554 = vmatprep.subr.mxu0 %v116
    %3555 = vmatpush1.msra.mxu0 %v115
    %3556 = vmatprep.subr.mxu0 %v120
    %3557 = vmatpush1.msra.mxu0 %v119
    %3558 = vmatprep.subr.mxu0 %v124
    %3559 = vmatpush1.msra.mxu0 %v123
    %3560 = vmatprep.subr.mxu0 %v128
    %3561 = vmatpush1.msra.mxu0 %v127
    %3562 = vmatprep.subr.mxu0 %v132
    %3563 = vmatpush1.msra.mxu0 %v131
    %3564 = vmatprep.subr.mxu0 %v136
    %3565 = vmatpush1.msra.mxu0 %v135
    %3566 = vmatprep.subr.mxu0 %v140
    %3567 = vmatpush1.msra.mxu0 %v139
    %3568 = vmatprep.subr.mxu0 %v144
    %3569 = vmatpush1.msra.mxu0 %v143
    %3570 = vmatprep.subr.mxu0 0.0
    %3571 = vmatpush1.msra.mxu0 0.0
    %3572 = vmatprep.subr.mxu0 0.0
    %3573 = vmatpush1.msra.mxu0 0.0
    %3574 = vmatprep.subr.mxu0 0.0
    %3575 = vmatpush1.msra.mxu0 0.0
    %3576 = vmatprep.subr.mxu0 0.0
    %3577 = vmatpush1.msra.mxu0 0.0
    %3578 = vmatprep.subr.mxu0 0.0
    %3579 = vmatpush1.msra.mxu0 0.0
    %3580 = vmatprep.subr.mxu0 0.0
    %3581 = vmatpush1.msra.mxu0 0.0
    %3582 = vmatprep.subr.mxu0 0.0
    %3583 = vmatpush1.msra.mxu0 0.0
    %3584 = vmatprep.subr.mxu0 0.0
    %3585 = vmatpush1.msra.mxu0 0.0
    %3586 = vmatprep.subr.mxu0 0.0
    %3587 = vmatpush1.msra.mxu0 0.0
    %3588 = vmatprep.subr.mxu0 0.0
    %3589 = vmatpush1.msra.mxu0 0.0
    %3590 = vmatprep.subr.mxu0 0.0
    %3591 = vmatpush1.msra.mxu0 0.0
    %3592 = vmatprep.subr.mxu0 0.0
    %3593 = vmatpush1.msra.mxu0 0.0
    %3594 = vmatprep.subr.mxu0 0.0
    %3595 = vmatpush1.msra.mxu0 0.0
    %3596 = vmatprep.subr.mxu0 0.0
    %3597 = vmatpush1.msra.mxu0 0.0
    %3598 = vmatprep.subr.mxu0 0.0
    %3599 = vmatpush1.msra.mxu0 0.0
    %3600 = vmatprep.subr.mxu0 0.0
    %3601 = vmatpush1.msra.mxu0 0.0
    %3602 = vmatprep.mubr.f32.mxu0 0.0
    %3603 = vmatmul.mubr.f32.gmra.mrb[0].mxu0 %v3174
    %v3604 = vpop.f32.mrb[0].mxu0
    %v3605 = vadd.f32 0.0, %v3604
    %v3606 = vpop.f32.mrb[0].mxu0
    %v3607 = vadd.f32 0.0, %v3606
    %3608 = vdwg.mxu0
    %v3609 = vadd.f32 %v3463, %v3534
    %v3610 = vadd.f32 %v3464, %v3536
    %v3611 = vadd.f32 %v3465, %v3605
    %v3612 = vadd.f32 %v3466, %v3607
    %v3613 = vxor.u32 %v3609, 2147483648
    %v3614 = vmul.f32 %v3613, 1.442695
    %v3615 = vpow.pop %v3614
    %v3616 = vadd.f32 %v3615, 1.0
    %v3617 = vrcp.pop %v3616
    %v3618 = vmul.f32 1.0, %v3617
    %v3619 = vxor.u32 %v3610, 2147483648
    %v3620 = vmul.f32 %v3619, 1.442695
    %v3621 = vpow.pop %v3620
    %v3622 = vadd.f32 %v3621, 1.0
    %v3623 = vrcp.pop %v3622
    %v3624 = vmul.f32 1.0, %v3623
    %v3625 = vtanh.pop %v3611
    %v3626 = vxor.u32 %v3612, 2147483648
    %v3627 = vmul.f32 %v3626, 1.442695
    %v3628 = vpow.pop %v3627
    %v3629 = vadd.f32 %v3628, 1.0
    %v3630 = vrcp.pop %v3629
    %v3631 = vmul.f32 1.0, %v3630
    %v3632 = vmul.f32 %v3624, %v3172
    %v3633 = vmul.f32 %v3618, %v3625
    %v3634 = vadd.f32 %v3632, %v3633
    %v3635 = vtanh.pop %v3634
    %v3636 = vmul.f32 %v3631, %v3635
    %3638 = vrot.lane.b32.xlu0 %v3461, 96
    %v3639 = vpop.permute.xlu0 %3638
    %v3640 = vsel %vm401, %v3639, 0
    %3642 = vmatprep.subr.mxu0 %v146
    %3643 = vmatpush1.msra.mxu0 %v145
    %3644 = vmatprep.subr.mxu0 %v149
    %3645 = vmatpush1.msra.mxu0 %v148
    %3646 = vmatprep.subr.mxu0 %v152
    %3647 = vmatpush1.msra.mxu0 %v151
    %3648 = vmatprep.subr.mxu0 %v155
    %3649 = vmatpush1.msra.mxu0 %v154
    %3650 = vmatprep.subr.mxu0 %v158
    %3651 = vmatpush1.msra.mxu0 %v157
    %3652 = vmatprep.subr.mxu0 %v161
    %3653 = vmatpush1.msra.mxu0 %v160
    %3654 = vmatprep.subr.mxu0 %v164
    %3655 = vmatpush1.msra.mxu0 %v163
    %3656 = vmatprep.subr.mxu0 %v167
    %3657 = vmatpush1.msra.mxu0 %v166
    %3658 = vmatprep.subr.mxu0 %v170
    %3659 = vmatpush1.msra.mxu0 %v169
    %3660 = vmatprep.subr.mxu0 %v173
    %3661 = vmatpush1.msra.mxu0 %v172
    %3662 = vmatprep.subr.mxu0 %v176
    %3663 = vmatpush1.msra.mxu0 %v175
    %3664 = vmatprep.subr.mxu0 %v179
    %3665 = vmatpush1.msra.mxu0 %v178
    %3666 = vmatprep.subr.mxu0 %v182
    %3667 = vmatpush1.msra.mxu0 %v181
    %3668 = vmatprep.subr.mxu0 %v185
    %3669 = vmatpush1.msra.mxu0 %v184
    %3670 = vmatprep.subr.mxu0 %v188
    %3671 = vmatpush1.msra.mxu0 %v187
    %3672 = vmatprep.subr.mxu0 %v191
    %3673 = vmatpush1.msra.mxu0 %v190
    %3674 = vmatprep.subr.mxu0 %v194
    %3675 = vmatpush1.msra.mxu0 %v193
    %3676 = vmatprep.subr.mxu0 %v197
    %3677 = vmatpush1.msra.mxu0 %v196
    %3678 = vmatprep.subr.mxu0 %v200
    %3679 = vmatpush1.msra.mxu0 %v199
    %3680 = vmatprep.subr.mxu0 %v203
    %3681 = vmatpush1.msra.mxu0 %v202
    %3682 = vmatprep.subr.mxu0 0.0
    %3683 = vmatpush1.msra.mxu0 0.0
    %3684 = vmatprep.subr.mxu0 0.0
    %3685 = vmatpush1.msra.mxu0 0.0
    %3686 = vmatprep.subr.mxu0 0.0
    %3687 = vmatpush1.msra.mxu0 0.0
    %3688 = vmatprep.subr.mxu0 0.0
    %3689 = vmatpush1.msra.mxu0 0.0
    %3690 = vmatprep.subr.mxu0 0.0
    %3691 = vmatpush1.msra.mxu0 0.0
    %3692 = vmatprep.subr.mxu0 0.0
    %3693 = vmatpush1.msra.mxu0 0.0
    %3694 = vmatprep.subr.mxu0 0.0
    %3695 = vmatpush1.msra.mxu0 0.0
    %3696 = vmatprep.subr.mxu0 0.0
    %3697 = vmatpush1.msra.mxu0 0.0
    %3698 = vmatprep.subr.mxu0 0.0
    %3699 = vmatpush1.msra.mxu0 0.0
    %3700 = vmatprep.subr.mxu0 0.0
    %3701 = vmatpush1.msra.mxu0 0.0
    %3702 = vmatprep.subr.mxu0 0.0
    %3703 = vmatpush1.msra.mxu0 0.0
    %3704 = vmatprep.subr.mxu0 0.0
    %3705 = vmatpush1.msra.mxu0 0.0
    %3706 = vmatprep.mubr.f32.mxu0 %v3640
    %3707 = vmatmul.mubr.f32.gmra.mrb[0].mxu0 %v3636
    %v3708 = vpop.f32.mrb[0].mxu0
    %v3709 = vadd.f32 %v389, %v3708
    %v3710 = vpop.f32.mrb[0].mxu0
    %v3711 = vadd.f32 %v393, %v3710
    %3712 = vdwg.mxu0
    %3713 = vmatprep.subr.mxu0 0.0
    %3714 = vmatpush1.msra.mxu0 %v147
    %3715 = vmatprep.subr.mxu0 0.0
    %3716 = vmatpush1.msra.mxu0 %v150
    %3717 = vmatprep.subr.mxu0 0.0
    %3718 = vmatpush1.msra.mxu0 %v153
    %3719 = vmatprep.subr.mxu0 0.0
    %3720 = vmatpush1.msra.mxu0 %v156
    %3721 = vmatprep.subr.mxu0 0.0
    %3722 = vmatpush1.msra.mxu0 %v159
    %3723 = vmatprep.subr.mxu0 0.0
    %3724 = vmatpush1.msra.mxu0 %v162
    %3725 = vmatprep.subr.mxu0 0.0
    %3726 = vmatpush1.msra.mxu0 %v165
    %3727 = vmatprep.subr.mxu0 0.0
    %3728 = vmatpush1.msra.mxu0 %v168
    %3729 = vmatprep.subr.mxu0 0.0
    %3730 = vmatpush1.msra.mxu0 %v171
    %3731 = vmatprep.subr.mxu0 0.0
    %3732 = vmatpush1.msra.mxu0 %v174
    %3733 = vmatprep.subr.mxu0 0.0
    %3734 = vmatpush1.msra.mxu0 %v177
    %3735 = vmatprep.subr.mxu0 0.0
    %3736 = vmatpush1.msra.mxu0 %v180
    %3737 = vmatprep.subr.mxu0 0.0
    %3738 = vmatpush1.msra.mxu0 %v183
    %3739 = vmatprep.subr.mxu0 0.0
    %3740 = vmatpush1.msra.mxu0 %v186
    %3741 = vmatprep.subr.mxu0 0.0
    %3742 = vmatpush1.msra.mxu0 %v189
    %3743 = vmatprep.subr.mxu0 0.0
    %3744 = vmatpush1.msra.mxu0 %v192
    %3745 = vmatprep.subr.mxu0 0.0
    %3746 = vmatpush1.msra.mxu0 %v195
    %3747 = vmatprep.subr.mxu0 0.0
    %3748 = vmatpush1.msra.mxu0 %v198
    %3749 = vmatprep.subr.mxu0 0.0
    %3750 = vmatpush1.msra.mxu0 %v201
    %3751 = vmatprep.subr.mxu0 0.0
    %3752 = vmatpush1.msra.mxu0 %v204
    %3753 = vmatprep.subr.mxu0 0.0
    %3754 = vmatpush1.msra.mxu0 0.0
    %3755 = vmatprep.subr.mxu0 0.0
    %3756 = vmatpush1.msra.mxu0 0.0
    %3757 = vmatprep.subr.mxu0 0.0
    %3758 = vmatpush1.msra.mxu0 0.0
    %3759 = vmatprep.subr.mxu0 0.0
    %3760 = vmatpush1.msra.mxu0 0.0
    %3761 = vmatprep.subr.mxu0 0.0
    %3762 = vmatpush1.msra.mxu0 0.0
    %3763 = vmatprep.subr.mxu0 0.0
    %3764 = vmatpush1.msra.mxu0 0.0
    %3765 = vmatprep.subr.mxu0 0.0
    %3766 = vmatpush1.msra.mxu0 0.0
    %3767 = vmatprep.subr.mxu0 0.0
    %3768 = vmatpush1.msra.mxu0 0.0
    %3769 = vmatprep.subr.mxu0 0.0
    %3770 = vmatpush1.msra.mxu0 0.0
    %3771 = vmatprep.subr.mxu0 0.0
    %3772 = vmatpush1.msra.mxu0 0.0
    %3773 = vmatprep.subr.mxu0 0.0
    %3774 = vmatpush1.msra.mxu0 0.0
    %3775 = vmatprep.subr.mxu0 0.0
    %3776 = vmatpush1.msra.mxu0 0.0
    %3777 = vmatprep.mubr.f32.mxu0 %v3640
    %3778 = vmatmul.mubr.f32.gmra.mrb[0].mxu0 %v3636
    %v3779 = vpop.f32.mrb[0].mxu0
    %v3780 = vadd.f32 %v397, %v3779
    %v3781 = vpop.f32.mrb[0].mxu0
    %3782 = vdwg.mxu0
    %v3783 = vxor.u32 %v3709, 2147483648
    %v3784 = vxor.u32 %v3711, 2147483648
    %v3785 = vmul.f32 %v3783, 1.442695
    %v3786 = vpow.pop %v3785
    %v3787 = vmul.f32 %v3784, 1.442695
    %v3788 = vpow.pop %v3787
    %v3789 = vadd.f32 %v3786, 1.0
    %v3790 = vadd.f32 %v3788, 1.0
    %v3791 = vrcp.pop %v3789
    %v3792 = vmul.f32 1.0, %v3791
    %v3793 = vrcp.pop %v3790
    %v3794 = vmul.f32 1.0, %v3793
    %v3795 = vtanh.pop %v3780
    %v3796 = vmul.f32 %v3794, %v3795
    %v3798 = vsel %vm401, %v3455, 0
    %3800 = vmatprep.subr.mxu0 0.0
    %3801 = vmatpush1.msra.mxu0 %v206
    %3802 = vmatprep.subr.mxu0 0.0
    %3803 = vmatpush1.msra.mxu0 %v207
    %3804 = vmatprep.subr.mxu0 0.0
    %3805 = vmatpush1.msra.mxu0 %v208
    %3806 = vmatprep.subr.mxu0 0.0
    %3807 = vmatpush1.msra.mxu0 %v209
    %3808 = vmatprep.subr.mxu0 0.0
    %3809 = vmatpush1.msra.mxu0 0.0
    %3810 = vmatprep.subr.mxu0 0.0
    %3811 = vmatpush1.msra.mxu0 0.0
    %3812 = vmatprep.subr.mxu0 0.0
    %3813 = vmatpush1.msra.mxu0 0.0
    %3814 = vmatprep.subr.mxu0 0.0
    %3815 = vmatpush1.msra.mxu0 0.0
    %3816 = vmatprep.subr.mxu0 0.0
    %3817 = vmatpush1.msra.mxu0 0.0
    %3818 = vmatprep.subr.mxu0 0.0
    %3819 = vmatpush1.msra.mxu0 0.0
    %3820 = vmatprep.subr.mxu0 0.0
    %3821 = vmatpush1.msra.mxu0 0.0
    %3822 = vmatprep.subr.mxu0 0.0
    %3823 = vmatpush1.msra.mxu0 0.0
    %3824 = vmatprep.subr.mxu0 0.0
    %3825 = vmatpush1.msra.mxu0 0.0
    %3826 = vmatprep.subr.mxu0 0.0
    %3827 = vmatpush1.msra.mxu0 0.0
    %3828 = vmatprep.subr.mxu0 0.0
    %3829 = vmatpush1.msra.mxu0 0.0
    %3830 = vmatprep.subr.mxu0 0.0
    %3831 = vmatpush1.msra.mxu0 0.0
    %3832 = vmatprep.subr.mxu0 0.0
    %3833 = vmatpush1.msra.mxu0 0.0
    %3834 = vmatprep.subr.mxu0 0.0
    %3835 = vmatpush1.msra.mxu0 0.0
    %3836 = vmatprep.subr.mxu0 0.0
    %3837 = vmatpush1.msra.mxu0 0.0
    %3838 = vmatprep.subr.mxu0 0.0
    %3839 = vmatpush1.msra.mxu0 0.0
    %3840 = vmatprep.subr.mxu0 0.0
    %3841 = vmatpush1.msra.mxu0 0.0
    %3842 = vmatprep.subr.mxu0 0.0
    %3843 = vmatpush1.msra.mxu0 0.0
    %3844 = vmatprep.subr.mxu0 0.0
    %3845 = vmatpush1.msra.mxu0 0.0
    %3846 = vmatprep.subr.mxu0 0.0
    %3847 = vmatpush1.msra.mxu0 0.0
    %3848 = vmatprep.subr.mxu0 0.0
    %3849 = vmatpush1.msra.mxu0 0.0
    %3850 = vmatprep.subr.mxu0 0.0
    %3851 = vmatpush1.msra.mxu0 0.0
    %3852 = vmatprep.subr.mxu0 0.0
    %3853 = vmatpush1.msra.mxu0 0.0
    %3854 = vmatprep.subr.mxu0 0.0
    %3855 = vmatpush1.msra.mxu0 0.0
    %3856 = vmatprep.subr.mxu0 0.0
    %3857 = vmatpush1.msra.mxu0 0.0
    %3858 = vmatprep.subr.mxu0 0.0
    %3859 = vmatpush1.msra.mxu0 0.0
    %3860 = vmatprep.subr.mxu0 0.0
    %3861 = vmatpush1.msra.mxu0 0.0
    %3862 = vmatprep.subr.mxu0 0.0
    %3863 = vmatpush1.msra.mxu0 0.0
    %3864 = vmatprep.mubr.f32.mxu0 0.0
    %3865 = vmatmul.mubr.f32.gmra.mrb[0].mxu0 %v3798
    %v3866 = vpop.f32.mrb[0].mxu0
    %v3867 = vadd.f32 %v564, %v3866
    %v3868 = vpop.f32.mrb[0].mxu0
    %3869 = vdwg.mxu0
    %v3870 = vtanh.pop %v3867
    %v3871 = vmul.f32 %v3796, %v3870
    %v3872 = vsel %vm401, %v3871, 0.0
    %3873 = vadd.xlane.f32.xlu0 %v3872
    %v3874 = vpop.xlane.xlu0 %3873
    %3876 = vrot.lane.b32.xlu0 %v3871, 96
    %v3877 = vpop.permute.xlu0 %3876
    %v3879 = vsel %vm401, %v3877, 0.0
    %3880 = vadd.xlane.f32.xlu0 %v3879
    %v3881 = vpop.xlane.xlu0 %3880
    %3882 = vrot.lane.b32.xlu0 %v3871, 64
    %v3883 = vpop.permute.xlu0 %3882
    %v3885 = vsel %vm401, %v3883, 0.0
    %3886 = vadd.xlane.f32.xlu0 %v3885
    %v3887 = vpop.xlane.xlu0 %3886
    %v3888 = vmax.f32 %v3874, %v3881
    %v3889 = vmax.f32 %v3888, %v3887
    %v3890 = vsub.f32 %v3874, %v3889
    %v3891 = vmul.f32 %v3890, 1.442695
    %v3892 = vpow.pop %v3891
    %v3893 = vsub.f32 %v3881, %v3889
    %v3894 = vmul.f32 %v3893, 1.442695
    %v3895 = vpow.pop %v3894
    %v3896 = vsub.f32 %v3887, %v3889
    %v3897 = vmul.f32 %v3896, 1.442695
    %v3898 = vpow.pop %v3897
    %v3899 = vadd.f32 %v3892, %v3895
    %v3900 = vadd.f32 %v3899, %v3898
    %v3901 = vmul.f32 %v3892, %v3796
    %v3902 = vmul.f32 %v3895, %v3796
    %3904 = vrot.lane.b32.xlu0 %v3902, 96
    %v3905 = vpop.permute.xlu0 %3904
    %v3907 = vadd.f32 %v3901, %v3905
    %v3908 = vmul.f32 %v3898, %v3796
    %3910 = vrot.lane.b32.xlu0 %v3908, 64
    %v3911 = vpop.permute.xlu0 %3910
    %v3913 = vadd.f32 %v3907, %v3911
    %v3914 = vrcp.pop %v3900
    %v3915 = vmul.f32 %v3913, %v3914
    %v3916 = vmul.f32 %v3792, %v3455
    %v3917 = vadd.f32 %v3916, %v3915
    %v3918 = vtanh.pop %v3917
    %3920 = vrot.lane.b32.xlu0 %v3918, 32
    %v3921 = vpop.permute.xlu0 %3920
    %v3923 = vmul.f32 %v3792, %v3921
    %v3924 = vld [vmem:[%s6] sm:$0xff]
    %v3925 = vld [vmem:[%s6 + $0x8] sm:$0xff]
    %v3926 = vld [vmem:[%s6 + $0x10] sm:$0xff]
    %v3927 = vld [vmem:[%s6 + $0x18] sm:$0xff]
    %v3928 = vld [vmem:[%s7] sm:$0x1]
    %v3930 = vlaneseq
    %v3931 = vshrl.u32 %v3930, 7
    %v3932 = vsub.s32 0, %v3931
    %v3933 = vrot.slane %v3928, %v3932
    %3936 = vrot.lane.b32.xlu0 %v3923, 96
    %v3937 = vpop.permute.xlu0 %3936
    %v3938 = vsel %vm401, %v3937, 0
    %3940 = vmatprep.subr.mxu0 0.0
    %3941 = vmatpush1.msra.mxu0 %v3924
    %3942 = vmatprep.subr.mxu0 0.0
    %3943 = vmatpush1.msra.mxu0 %v3925
    %3944 = vmatprep.subr.mxu0 0.0
    %3945 = vmatpush1.msra.mxu0 %v3926
    %3946 = vmatprep.subr.mxu0 0.0
    %3947 = vmatpush1.msra.mxu0 %v3927
    %3948 = vmatprep.subr.mxu0 0.0
    %3949 = vmatpush1.msra.mxu0 0.0
    %3950 = vmatprep.subr.mxu0 0.0
    %3951 = vmatpush1.msra.mxu0 0.0
    %3952 = vmatprep.subr.mxu0 0.0
    %3953 = vmatpush1.msra.mxu0 0.0
    %3954 = vmatprep.subr.mxu0 0.0
    %3955 = vmatpush1.msra.mxu0 0.0
    %3956 = vmatprep.subr.mxu0 0.0
    %3957 = vmatpush1.msra.mxu0 0.0
    %3958 = vmatprep.subr.mxu0 0.0
    %3959 = vmatpush1.msra.mxu0 0.0
    %3960 = vmatprep.subr.mxu0 0.0
    %3961 = vmatpush1.msra.mxu0 0.0
    %3962 = vmatprep.subr.mxu0 0.0
    %3963 = vmatpush1.msra.mxu0 0.0
    %3964 = vmatprep.subr.mxu0 0.0
    %3965 = vmatpush1.msra.mxu0 0.0
    %3966 = vmatprep.subr.mxu0 0.0
    %3967 = vmatpush1.msra.mxu0 0.0
    %3968 = vmatprep.subr.mxu0 0.0
    %3969 = vmatpush1.msra.mxu0 0.0
    %3970 = vmatprep.subr.mxu0 0.0
    %3971 = vmatpush1.msra.mxu0 0.0
    %3972 = vmatprep.subr.mxu0 0.0
    %3973 = vmatpush1.msra.mxu0 0.0
    %3974 = vmatprep.subr.mxu0 0.0
    %3975 = vmatpush1.msra.mxu0 0.0
    %3976 = vmatprep.subr.mxu0 0.0
    %3977 = vmatpush1.msra.mxu0 0.0
    %3978 = vmatprep.subr.mxu0 0.0
    %3979 = vmatpush1.msra.mxu0 0.0
    %3980 = vmatprep.subr.mxu0 0.0
    %3981 = vmatpush1.msra.mxu0 0.0
    %3982 = vmatprep.subr.mxu0 0.0
    %3983 = vmatpush1.msra.mxu0 0.0
    %3984 = vmatprep.subr.mxu0 0.0
    %3985 = vmatpush1.msra.mxu0 0.0
    %3986 = vmatprep.subr.mxu0 0.0
    %3987 = vmatpush1.msra.mxu0 0.0
    %3988 = vmatprep.subr.mxu0 0.0
    %3989 = vmatpush1.msra.mxu0 0.0
    %3990 = vmatprep.subr.mxu0 0.0
    %3991 = vmatpush1.msra.mxu0 0.0
    %3992 = vmatprep.subr.mxu0 0.0
    %3993 = vmatpush1.msra.mxu0 0.0
    %3994 = vmatprep.subr.mxu0 0.0
    %3995 = vmatpush1.msra.mxu0 0.0
    %3996 = vmatprep.subr.mxu0 0.0
    %3997 = vmatpush1.msra.mxu0 0.0
    %3998 = vmatprep.subr.mxu0 0.0
    %3999 = vmatpush1.msra.mxu0 0.0
    %4000 = vmatprep.subr.mxu0 0.0
    %4001 = vmatpush1.msra.mxu0 0.0
    %4002 = vmatprep.subr.mxu0 0.0
    %4003 = vmatpush1.msra.mxu0 0.0
    %4004 = vmatprep.mubr.f32.mxu0 0.0
    %4005 = vmatmul.mubr.f32.gmra.mrb[0].mxu0 %v868
    %v4006 = vpop.f32.mrb[0].mxu0
    %v4007 = vadd.f32 %v3933, %v4006
    %v4008 = vpop.f32.mrb[0].mxu0
    %4009 = vmatprep.mubr.f32.mxu0 0.0
    %4010 = vmatmul.mubr.f32.gmra.mrb[0].mxu0 %v1330
    %v4011 = vpop.f32.mrb[0].mxu0
    %v4012 = vadd.f32 %v3933, %v4011
    %v4013 = vpop.f32.mrb[0].mxu0
    %4014 = vmatprep.mubr.f32.mxu0 0.0
    %4015 = vmatmul.mubr.f32.gmra.mrb[0].mxu0 %v1792
    %v4016 = vpop.f32.mrb[0].mxu0
    %v4017 = vadd.f32 %v3933, %v4016
    %v4018 = vpop.f32.mrb[0].mxu0
    %4019 = vmatprep.mubr.f32.mxu0 0.0
    %4020 = vmatmul.mubr.f32.gmra.mrb[0].mxu0 %v2254
    %v4021 = vpop.f32.mrb[0].mxu0
    %v4022 = vadd.f32 %v3933, %v4021
    %v4023 = vpop.f32.mrb[0].mxu0
    %4024 = vmatprep.mubr.f32.mxu0 0.0
    %4025 = vmatmul.mubr.f32.gmra.mrb[0].mxu0 %v2716
    %v4026 = vpop.f32.mrb[0].mxu0
    %v4027 = vadd.f32 %v3933, %v4026
    %v4028 = vpop.f32.mrb[0].mxu0
    %4029 = vmatprep.mubr.f32.mxu0 0.0
    %4030 = vmatmul.mubr.f32.gmra.mrb[0].mxu0 %v3178
    %v4031 = vpop.f32.mrb[0].mxu0
    %v4032 = vadd.f32 %v3933, %v4031
    %v4033 = vpop.f32.mrb[0].mxu0
    %4034 = vmatprep.mubr.f32.mxu0 0.0
    %4035 = vmatmul.mubr.f32.gmra.mrb[0].mxu0 %v3640
    %v4036 = vpop.f32.mrb[0].mxu0
    %v4037 = vadd.f32 %v3933, %v4036
    %v4038 = vpop.f32.mrb[0].mxu0
    %4039 = vmatprep.mubr.f32.mxu0 0.0
    %4040 = vmatmul.mubr.f32.gmra.mrb[0].mxu0 %v3938
    %v4041 = vpop.f32.mrb[0].mxu0
    %v4042 = vadd.f32 %v3933, %v4041
    %v4043 = vpop.f32.mrb[0].mxu0
    %4044 = vdwg.mxu0
    %v4045 = vtanh.pop %v4007
    %v4046 = vtanh.pop %v4012
    %v4047 = vtanh.pop %v4017
    %v4048 = vtanh.pop %v4022
    %v4049 = vtanh.pop %v4027
    %v4050 = vtanh.pop %v4032
    %v4051 = vtanh.pop %v4037
    %v4052 = vtanh.pop %v4042
    %v4053 = vld [vmem:[%s8] sm:$0xff]
    %v4054 = vld [vmem:[%s8 + $0x8] sm:$0xff]
    %v4055 = vld [vmem:[%s8 + $0x10] sm:$0xff]
    %v4056 = vld [vmem:[%s8 + $0x18] sm:$0xff]
    %v4058 = vsel %vm401, %v4045, 0
    %v4061 = vsel %vm401, %v4046, 0
    %v4064 = vsel %vm401, %v4047, 0
    %v4067 = vsel %vm401, %v4048, 0
    %v4070 = vsel %vm401, %v4049, 0
    %v4073 = vsel %vm401, %v4050, 0
    %v4076 = vsel %vm401, %v4051, 0
    %v4079 = vsel %vm401, %v4052, 0
    %4081 = vmatprep.subr.mxu0 0.0
    %4082 = vmatpush1.msra.mxu0 %v4053
    %4083 = vmatprep.subr.mxu0 0.0
    %4084 = vmatpush1.msra.mxu0 %v4054
    %4085 = vmatprep.subr.mxu0 0.0
    %4086 = vmatpush1.msra.mxu0 %v4055
    %4087 = vmatprep.subr.mxu0 0.0
    %4088 = vmatpush1.msra.mxu0 %v4056
    %4089 = vmatprep.subr.mxu0 0.0
    %4090 = vmatpush1.msra.mxu0 0.0
    %4091 = vmatprep.subr.mxu0 0.0
    %4092 = vmatpush1.msra.mxu0 0.0
    %4093 = vmatprep.subr.mxu0 0.0
    %4094 = vmatpush1.msra.mxu0 0.0
    %4095 = vmatprep.subr.mxu0 0.0
    %4096 = vmatpush1.msra.mxu0 0.0
    %4097 = vmatprep.subr.mxu0 0.0
    %4098 = vmatpush1.msra.mxu0 0.0
    %4099 = vmatprep.subr.mxu0 0.0
    %4100 = vmatpush1.msra.mxu0 0.0
    %4101 = vmatprep.subr.mxu0 0.0
    %4102 = vmatpush1.msra.mxu0 0.0
    %4103 = vmatprep.subr.mxu0 0.0
    %4104 = vmatpush1.msra.mxu0 0.0
    %4105 = vmatprep.subr.mxu0 0.0
    %4106 = vmatpush1.msra.mxu0 0.0
    %4107 = vmatprep.subr.mxu0 0.0
    %4108 = vmatpush1.msra.mxu0 0.0
    %4109 = vmatprep.subr.mxu0 0.0
    %4110 = vmatpush1.msra.mxu0 0.0
    %4111 = vmatprep.subr.mxu0 0.0
    %4112 = vmatpush1.msra.mxu0 0.0
    %4113 = vmatprep.subr.mxu0 0.0
    %4114 = vmatpush1.msra.mxu0 0.0
    %4115 = vmatprep.subr.mxu0 0.0
    %4116 = vmatpush1.msra.mxu0 0.0
    %4117 = vmatprep.subr.mxu0 0.0
    %4118 = vmatpush1.msra.mxu0 0.0
    %4119 = vmatprep.subr.mxu0 0.0
    %4120 = vmatpush1.msra.mxu0 0.0
    %4121 = vmatprep.subr.mxu0 0.0
    %4122 = vmatpush1.msra.mxu0 0.0
    %4123 = vmatprep.subr.mxu0 0.0
    %4124 = vmatpush1.msra.mxu0 0.0
    %4125 = vmatprep.subr.mxu0 0.0
    %4126 = vmatpush1.msra.mxu0 0.0
    %4127 = vmatprep.subr.mxu0 0.0
    %4128 = vmatpush1.msra.mxu0 0.0
    %4129 = vmatprep.subr.mxu0 0.0
    %4130 = vmatpush1.msra.mxu0 0.0
    %4131 = vmatprep.subr.mxu0 0.0
    %4132 = vmatpush1.msra.mxu0 0.0
    %4133 = vmatprep.subr.mxu0 0.0
    %4134 = vmatpush1.msra.mxu0 0.0
    %4135 = vmatprep.subr.mxu0 0.0
    %4136 = vmatpush1.msra.mxu0 0.0
    %4137 = vmatprep.subr.mxu0 0.0
    %4138 = vmatpush1.msra.mxu0 0.0
    %4139 = vmatprep.subr.mxu0 0.0
    %4140 = vmatpush1.msra.mxu0 0.0
    %4141 = vmatprep.subr.mxu0 0.0
    %4142 = vmatpush1.msra.mxu0 0.0
    %4143 = vmatprep.subr.mxu0 0.0
    %4144 = vmatpush1.msra.mxu0 0.0
    %4145 = vmatprep.mubr.f32.mxu0 0.0
    %4146 = vmatmul.mubr.f32.gmra.mrb[0].mxu0 %v4058
    %v4147 = vpop.f32.mrb[0].mxu0
    %v4148 = vadd.f32 0.0, %v4147
    %v4149 = vpop.f32.mrb[0].mxu0
    %4150 = vmatprep.mubr.f32.mxu0 0.0
    %4151 = vmatmul.mubr.f32.gmra.mrb[0].mxu0 %v4061
    %v4152 = vpop.f32.mrb[0].mxu0
    %v4153 = vadd.f32 0.0, %v4152
    %v4154 = vpop.f32.mrb[0].mxu0
    %4155 = vmatprep.mubr.f32.mxu0 0.0
    %4156 = vmatmul.mubr.f32.gmra.mrb[0].mxu0 %v4064
    %v4157 = vpop.f32.mrb[0].mxu0
    %v4158 = vadd.f32 0.0, %v4157
    %v4159 = vpop.f32.mrb[0].mxu0
    %4160 = vmatprep.mubr.f32.mxu0 0.0
    %4161 = vmatmul.mubr.f32.gmra.mrb[0].mxu0 %v4067
    %v4162 = vpop.f32.mrb[0].mxu0
    %v4163 = vadd.f32 0.0, %v4162
    %v4164 = vpop.f32.mrb[0].mxu0
    %4165 = vmatprep.mubr.f32.mxu0 0.0
    %4166 = vmatmul.mubr.f32.gmra.mrb[0].mxu0 %v4070
    %v4167 = vpop.f32.mrb[0].mxu0
    %v4168 = vadd.f32 0.0, %v4167
    %v4169 = vpop.f32.mrb[0].mxu0
    %4170 = vmatprep.mubr.f32.mxu0 0.0
    %4171 = vmatmul.mubr.f32.gmra.mrb[0].mxu0 %v4073
    %v4172 = vpop.f32.mrb[0].mxu0
    %v4173 = vadd.f32 0.0, %v4172
    %v4174 = vpop.f32.mrb[0].mxu0
    %4175 = vmatprep.mubr.f32.mxu0 0.0
    %4176 = vmatmul.mubr.f32.gmra.mrb[0].mxu0 %v4076
    %v4177 = vpop.f32.mrb[0].mxu0
    %v4178 = vadd.f32 0.0, %v4177
    %v4179 = vpop.f32.mrb[0].mxu0
    %4180 = vmatprep.mubr.f32.mxu0 0.0
    %4181 = vmatmul.mubr.f32.gmra.mrb[0].mxu0 %v4079
    %v4182 = vpop.f32.mrb[0].mxu0
    %v4183 = vadd.f32 0.0, %v4182
    %v4184 = vpop.f32.mrb[0].mxu0
    %4185 = vdwg.mxu0
    %4187 = vrot.lane.b32.xlu0 %v4153, 1
    %v4188 = vpop.permute.xlu0 %4187
    %4191 = vrot.lane.b32.xlu0 %v4158, 2
    %v4192 = vpop.permute.xlu0 %4191
    %4195 = vrot.lane.b32.xlu0 %v4163, 3
    %v4196 = vpop.permute.xlu0 %4195
    %4199 = vrot.lane.b32.xlu0 %v4168, 4
    %v4200 = vpop.permute.xlu0 %4199
    %4203 = vrot.lane.b32.xlu0 %v4173, 5
    %v4204 = vpop.permute.xlu0 %4203
    %4207 = vrot.lane.b32.xlu0 %v4178, 6
    %v4208 = vpop.permute.xlu0 %4207
    %4211 = vrot.lane.b32.xlu0 %v4183, 7
    %v4212 = vpop.permute.xlu0 %4211
    %vm4214 = vcmask 7168
    %v4215 = vsel %vm4214, %v4148, %v4188
    %vm4216 = vcmask 15360
    %v4217 = vsel %vm4216, %v4215, %v4192
    %vm4218 = vcmask 23552
    %v4219 = vsel %vm4218, %v4217, %v4196
    %vm4220 = vcmask 31744
    %v4221 = vsel %vm4220, %v4219, %v4200
    %vm4222 = vcmask 39936
    %v4223 = vsel %vm4222, %v4221, %v4204
    %vm4224 = vcmask 48128
    %v4225 = vsel %vm4224, %v4223, %v4208
    %vm4226 = vcmask 56320
    %v4227 = vsel %vm4226, %v4225, %v4212
    %vm4228 = vcmask 64512
    %v4229 = vsel %vm4228, %v4227, -inf
    %4230 = vmax.xlane.f32.xlu0 %v4229
    %v4231 = vpop.xlane.xlu0 %4230
    %v4232 = vsub.f32 %v4227, %v4231
    %v4233 = vmul.f32 %v4232, 1.442695
    %v4234 = vpow.pop %v4233
    %v4235 = vsel %vm4228, %v4234, 0.0
    %4236 = vadd.xlane.f32.xlu0 %v4235
    %v4237 = vpop.xlane.xlu0 %4236
    %v4238 = vrcp.pop %v4237
    %v4239 = vmul.f32 %v4234, %v4238
    %4241 = vset.pattern.permute.xlu0 0
    %4242 = vperm.xlu0 %4241, %v4239
    %v4243 = vpop.permute.xlu0 %4242
    %v4245 = vmul.f32 %v4243, %v689
    %v4246 = vadd.f32 %v4245, 0.0
    %4247 = vset.pattern.permute.xlu0 1
    %4248 = vperm.xlu0 %4247, %v4239
    %v4249 = vpop.permute.xlu0 %4248
    %v4251 = vmul.f32 %v4249, %v1151
    %v4252 = vadd.f32 %v4246, %v4251
    %4253 = vset.pattern.permute.xlu0 2
    %4254 = vperm.xlu0 %4253, %v4239
    %v4255 = vpop.permute.xlu0 %4254
    %v4257 = vmul.f32 %v4255, %v1613
    %v4258 = vadd.f32 %v4252, %v4257
    %4259 = vset.pattern.permute.xlu0 3
    %4260 = vperm.xlu0 %4259, %v4239
    %v4261 = vpop.permute.xlu0 %4260
    %v4263 = vmul.f32 %v4261, %v2075
    %v4264 = vadd.f32 %v4258, %v4263
    %4265 = vset.pattern.permute.xlu0 4
    %4266 = vperm.xlu0 %4265, %v4239
    %v4267 = vpop.permute.xlu0 %4266
    %v4269 = vmul.f32 %v4267, %v2537
    %v4270 = vadd.f32 %v4264, %v4269
    %4271 = vset.pattern.permute.xlu0 5
    %4272 = vperm.xlu0 %4271, %v4239
    %v4273 = vpop.permute.xlu0 %4272
    %v4275 = vmul.f32 %v4273, %v2999
    %v4276 = vadd.f32 %v4270, %v4275
    %4277 = vset.pattern.permute.xlu0 6
    %4278 = vperm.xlu0 %4277, %v4239
    %v4279 = vpop.permute.xlu0 %4278
    %v4281 = vmul.f32 %v4279, %v3461
    %v4282 = vadd.f32 %v4276, %v4281
    %4283 = vset.pattern.permute.xlu0 7
    %4284 = vperm.xlu0 %4283, %v4239
    %v4285 = vpop.permute.xlu0 %4284
    %v4287 = vmul.f32 %v4285, %v3923
    %v4288 = vadd.f32 %v4282, %v4287
    %v4289 = vld [vmem:[%s9] sm:$0xff]
    %v4290 = vld [vmem:[%s9 + $0x8] sm:$0xff]
    %v4291 = vld [vmem:[%s9 + $0x10] sm:$0xff]
    %v4292 = vld [vmem:[%s9 + $0x18] sm:$0xff]
    %v4293 = vld [vmem:[#allocation2] sm:$0x1]
    %v4295 = vlaneseq
    %v4296 = vshrl.u32 %v4295, 7
    %v4297 = vsub.s32 0, %v4296
    %v4298 = vrot.slane %v4293, %v4297
    %4301 = vrot.lane.b32.xlu0 %v4288, 96
    %v4302 = vpop.permute.xlu0 %4301
    %v4303 = vsel %vm401, %v4302, 0
    %4305 = vmatprep.subr.mxu0 0.0
    %4306 = vmatpush1.msra.mxu0 %v4289
    %4307 = vmatprep.subr.mxu0 0.0
    %4308 = vmatpush1.msra.mxu0 %v4290
    %4309 = vmatprep.subr.mxu0 0.0
    %4310 = vmatpush1.msra.mxu0 %v4291
    %4311 = vmatprep.subr.mxu0 0.0
    %4312 = vmatpush1.msra.mxu0 %v4292
    %4313 = vmatprep.subr.mxu0 0.0
    %4314 = vmatpush1.msra.mxu0 0.0
    %4315 = vmatprep.subr.mxu0 0.0
    %4316 = vmatpush1.msra.mxu0 0.0
    %4317 = vmatprep.subr.mxu0 0.0
    %4318 = vmatpush1.msra.mxu0 0.0
    %4319 = vmatprep.subr.mxu0 0.0
    %4320 = vmatpush1.msra.mxu0 0.0
    %4321 = vmatprep.subr.mxu0 0.0
    %4322 = vmatpush1.msra.mxu0 0.0
    %4323 = vmatprep.subr.mxu0 0.0
    %4324 = vmatpush1.msra.mxu0 0.0
    %4325 = vmatprep.subr.mxu0 0.0
    %4326 = vmatpush1.msra.mxu0 0.0
    %4327 = vmatprep.subr.mxu0 0.0
    %4328 = vmatpush1.msra.mxu0 0.0
    %4329 = vmatprep.subr.mxu0 0.0
    %4330 = vmatpush1.msra.mxu0 0.0
    %4331 = vmatprep.subr.mxu0 0.0
    %4332 = vmatpush1.msra.mxu0 0.0
    %4333 = vmatprep.subr.mxu0 0.0
    %4334 = vmatpush1.msra.mxu0 0.0
    %4335 = vmatprep.subr.mxu0 0.0
    %4336 = vmatpush1.msra.mxu0 0.0
    %4337 = vmatprep.subr.mxu0 0.0
    %4338 = vmatpush1.msra.mxu0 0.0
    %4339 = vmatprep.subr.mxu0 0.0
    %4340 = vmatpush1.msra.mxu0 0.0
    %4341 = vmatprep.subr.mxu0 0.0
    %4342 = vmatpush1.msra.mxu0 0.0
    %4343 = vmatprep.subr.mxu0 0.0
    %4344 = vmatpush1.msra.mxu0 0.0
    %4345 = vmatprep.subr.mxu0 0.0
    %4346 = vmatpush1.msra.mxu0 0.0
    %4347 = vmatprep.subr.mxu0 0.0
    %4348 = vmatpush1.msra.mxu0 0.0
    %4349 = vmatprep.subr.mxu0 0.0
    %4350 = vmatpush1.msra.mxu0 0.0
    %4351 = vmatprep.subr.mxu0 0.0
    %4352 = vmatpush1.msra.mxu0 0.0
    %4353 = vmatprep.subr.mxu0 0.0
    %4354 = vmatpush1.msra.mxu0 0.0
    %4355 = vmatprep.subr.mxu0 0.0
    %4356 = vmatpush1.msra.mxu0 0.0
    %4357 = vmatprep.subr.mxu0 0.0
    %4358 = vmatpush1.msra.mxu0 0.0
    %4359 = vmatprep.subr.mxu0 0.0
    %4360 = vmatpush1.msra.mxu0 0.0
    %4361 = vmatprep.subr.mxu0 0.0
    %4362 = vmatpush1.msra.mxu0 0.0
    %4363 = vmatprep.subr.mxu0 0.0
    %4364 = vmatpush1.msra.mxu0 0.0
    %4365 = vmatprep.subr.mxu0 0.0
    %4366 = vmatpush1.msra.mxu0 0.0
    %4367 = vmatprep.subr.mxu0 0.0
    %4368 = vmatpush1.msra.mxu0 0.0
    %4369 = vmatprep.mubr.f32.mxu0 0.0
    %4370 = vmatmul.mubr.f32.gmra.mrb[0].mxu0 %v4303
    %v4371 = vpop.f32.mrb[0].mxu0
    %v4372 = vadd.f32 %v4298, %v4371
    %v4373 = vpop.f32.mrb[0].mxu0
    %4374 = vdwg.mxu0
    %v4375 = vmax.f32 %v4372, 0.0
    %4376 = vst.msk [vmem:[%s11] sm:$0xff] %vm4214, %v4375
    // Predicated region
    $region58: #{tpu_custom_call.1} parent=1 // pred_check
      _
    $region59: #{tpu_custom_call.1} parent=1 // pred_check_branch
      %4378 = sbr.rel (0) target = $region61
    $region60: #{tpu_custom_call.1} parent=1 // pred_region
      _
    $region61: #{tpu_custom_call.1} parent=1 // pred_fallthru
      _
    // Predicated region
    $region62: #{tpu_custom_call.1} parent=1 // pred_check
      _
    $region63: #{tpu_custom_call.1} parent=1 // pred_check_branch
      %4380 = sbr.rel (0) target = $region65
    $region64: #{tpu_custom_call.1} parent=1 // pred_region
      _
    $region65: #{tpu_custom_call.1} parent=1 // pred_fallthru
      _
    %4381 = vsyncpa [#allocation4], 1
    %4382 = vsyncpa [#allocation6], 1

</llo_original>
